<compile_context>
chip_gen: v6e
topology: v6e:2x2x1
jax: 0.10.0
libtpu: 0.0.40
codegen_flags: <defaults>
</compile_context>

<pallas_src>
import functools
import math

import jax
import jax.numpy as jnp
from jax import lax
from jax.experimental import pallas as pl
from jax.experimental.pallas import tpu as pltpu


# ------------------------------- fused kernel -------------------------------

def _cross_attention_fused_kernel(hid_ref, ctx_ref, mask_ref, dww_ref, pww_ref,
                                  bfb_ref, o_ref, *, C, H, W):
    """One batch element end-to-end: q/k/v Depth_conv + batched attention.

    hid_ref/ctx_ref : (1, C, H*W) f32   NCHW input, spatial flattened (lane-dense)
    mask_ref        : (9, H*W)   f32    per-tap zero-pad halo masks (0/1)
    dww_ref         : (3, C, 9)  f32    depthwise 3x3 weights (q,k,v); tap = 3*(dy+1)+(dx+1)
    pww_ref         : (3, C, C)  bf16   pointwise 1x1 weights (out, in); query pre-scaled
    bfb_ref         : (3, C, 1)  f32    fused bias  W_pw @ b_dw + b_pw  (query pre-scaled)
    o_ref           : (1, C, H*W)       NCHW output, lane-dense store
    """
    HW = H * W
    hid = hid_ref[0].astype(jnp.float32)    # (C, HW)
    ctx = ctx_ref[0].astype(jnp.float32)    # (C, HW)
    masks = mask_ref[...]                   # (9, HW)
    dw_w = dww_ref[...]                     # (3, C, 9) f32
    pw_w = pww_ref[...]                     # (3, C, C) bf16
    b_f = bfb_ref[...]                      # (3, C, 1) f32

    shifts = tuple(dy * W + dx for dy in (-1, 0, 1) for dx in (-1, 0, 1))

    def halo_taps(x):
        # shifted[c, p] == x[c, p + shift]; wrap-around / cross-row lanes are
        # zeroed by the precomputed masks, so roll semantics are exact.
        taps = []
        for t, shift in enumerate(shifts):
            if shift == 0:
                taps.append(x)
            else:
                shifted = pltpu.roll(x, (-shift) % HW, 1)   # XLU lane rotate
                taps.append(shifted * masks[t:t + 1, :])
        return taps

    def depthwise(taps, proj):
        w = dw_w[proj]                      # (C, 9)
        acc = taps[0] * w[:, 0:1]
        for t in range(1, 9):
            acc = acc + taps[t] * w[:, t:t + 1]
        return acc                          # (C, HW) f32, no bias (folded)

    def pointwise(acc, proj):
        # bf16 MXU matmul, f32 accumulate, fused bias add.
        return jnp.dot(pw_w[proj], acc.astype(jnp.bfloat16),
                       preferred_element_type=jnp.float32) + b_f[proj]

    hid_taps = halo_taps(hid)
    ctx_taps = halo_taps(ctx)               # reused for both k and v

    q = pointwise(depthwise(hid_taps, 0), 0)    # (C, HW), softmax scale folded in
    k = pointwise(depthwise(ctx_taps, 1), 1)
    v = pointwise(depthwise(ctx_taps, 2), 2)

    # transpose_for_scores == permute(0, 2, 1, 3): attention is independent per
    # spatial row h; batch all H rows in one dot_general each way.
    q3 = q.reshape(C, H, W).astype(jnp.bfloat16)
    k3 = k.reshape(C, H, W).astype(jnp.bfloat16)
    v3 = v.reshape(C, H, W).astype(jnp.bfloat16)

    s = jnp.einsum("chw,khw->hck", q3, k3,
                   preferred_element_type=jnp.float32)      # (H, C, C)
    s = s - jnp.max(s, axis=-1, keepdims=True)
    e = jnp.exp(s)
    p = e * pl.reciprocal(jnp.sum(e, axis=-1, keepdims=True), approx=True)
    # TODO(synk): nn.Dropout(p=0.0) is an identity at inference; not implemented.
    out = jnp.einsum("hck,khw->chw", p.astype(jnp.bfloat16), v3,
                     preferred_element_type=jnp.float32)    # (C, H, W)

    # Single lane-dense (C, H*W) store -- output is already NCHW.
    o_ref[0] = out.reshape(C, HW).astype(o_ref.dtype)


# ------------------------------ module forward ------------------------------

@functools.partial(jax.jit, static_argnames=("num_heads",))
def cross_attention_forward(hidden_states, ctx, params, num_heads):
    """cross_attention.forward: q/k/v Depth_conv projections + attention."""
    B, C, H, W = hidden_states.shape
    HW = H * W
    scale = 1.0 / math.sqrt(C // num_heads)

    order = ("query", "key", "value")
    dw_w = jnp.stack([params[n][0].reshape(C, 9) for n in order])          # (3, C, 9)
    dw_b = jnp.stack([params[n][1] for n in order])                        # (3, C)
    pw_w = jnp.stack([params[n][2] for n in order]).astype(jnp.float32)    # (3, C, C)
    pw_b = jnp.stack([params[n][3] for n in order])                        # (3, C)

    # Fold depthwise bias into pointwise bias (exact): b_fused = W_pw @ b_dw + b_pw.
    b_fused = jnp.einsum("pij,pj->pi", pw_w, dw_b) + pw_b                  # (3, C)
    # Fold the softmax scale into the *query* projection (exact).
    scale_vec = jnp.array([scale, 1.0, 1.0], jnp.float32)
    pw_w = pw_w * scale_vec[:, None, None]
    b_fused = (b_fused * scale_vec[:, None]).reshape(3, C, 1)
    pw_w = pw_w.astype(jnp.bfloat16)                                       # MXU feed

    # Precompute the 9 zero-pad halo masks (destination validity per tap).
    pos = jnp.arange(HW, dtype=jnp.int32)
    hh, ww = pos // W, pos % W
    mask_rows = []
    for dy in (-1, 0, 1):
        for dx in (-1, 0, 1):
            ok = ((hh + dy >= 0) & (hh + dy < H) &
                  (ww + dx >= 0) & (ww + dx < W))
            mask_rows.append(ok.astype(jnp.float32))
    halo_masks = jnp.stack(mask_rows)                                      # (9, HW)

    kernel = functools.partial(_cross_attention_fused_kernel, C=C, H=H, W=W)

    def _const_spec(shape):
        return pl.BlockSpec(shape, lambda b: (0,) * len(shape))

    out = pl.pallas_call(
        kernel,
        out_shape=jax.ShapeDtypeStruct((B, C, HW), hidden_states.dtype),
        grid=(B,),
        in_specs=[
            pl.BlockSpec((1, C, HW), lambda b: (b, 0, 0)),   # hidden_states
            pl.BlockSpec((1, C, HW), lambda b: (b, 0, 0)),   # ctx
            _const_spec((9, HW)),                            # halo masks
            _const_spec((3, C, 9)),                          # depthwise weights
            _const_spec((3, C, C)),                          # pointwise weights (bf16)
            _const_spec((3, C, 1)),                          # fused bias
        ],
        out_specs=pl.BlockSpec((1, C, HW), lambda b: (b, 0, 0)),
        compiler_params=pltpu.CompilerParams(dimension_semantics=("parallel",)),
    )(hidden_states.reshape(B, C, HW), ctx.reshape(B, C, HW),
      halo_masks, dw_w, pw_w, b_fused)
    return out.reshape(B, C, H, W)


# -------------------------- params & pure-JAX reference ---------------------

def init_depth_conv_params(key, dim):
    k1, k2, k3, k4 = jax.random.split(key, 4)
    dw_w = jax.random.normal(k1, (dim, 3, 3), jnp.float32) * 0.1   # (C, kh, kw)
    dw_b = jax.random.normal(k2, (dim,), jnp.float32) * 0.1
    pw_w = jax.random.normal(k3, (dim, dim), jnp.float32) * 0.1    # (Cout, Cin)
    pw_b = jax.random.normal(k4, (dim,), jnp.float32) * 0.1
    return (dw_w, dw_b, pw_w, pw_b)


def depth_conv_ref(x_nchw, params):
    dw_w, dw_b, pw_w, pw_b = params
    C = x_nchw.shape[1]
    y = lax.conv_general_dilated(
        x_nchw, dw_w[:, None, :, :], (1, 1), ((1, 1), (1, 1)),
        feature_group_count=C, dimension_numbers=("NCHW", "OIHW", "NCHW"))
    y = y + dw_b[None, :, None, None]
    z = lax.conv_general_dilated(
        y, pw_w[:, :, None, None], (1, 1), ((0, 0), (0, 0)),
        dimension_numbers=("NCHW", "OIHW", "NCHW"))
    return z + pw_b[None, :, None, None]


def cross_attention_ref(hidden, ctx, params, num_heads):
    dim = hidden.shape[1]
    scale = 1.0 / math.sqrt(dim // num_heads)
    q = jnp.transpose(depth_conv_ref(hidden, params["query"]), (0, 2, 1, 3))
    k = jnp.transpose(depth_conv_ref(ctx, params["key"]), (0, 2, 1, 3))
    v = jnp.transpose(depth_conv_ref(ctx, params["value"]), (0, 2, 1, 3))
    s = jnp.einsum("bhcw,bhkw->bhck", q, k) * scale
    p = jax.nn.softmax(s, axis=-1)
    o = jnp.einsum("bhck,bhkw->bhcw", p, v)
    return jnp.transpose(o, (0, 2, 1, 3))


# ----------------------------------- main -----------------------------------

if __name__ == "__main__":
    B, dim, H, W = 2, 8, 8, 16     # per batch: (C, H*W) = (8, 128), one vreg
    num_heads = 2

    key = jax.random.PRNGKey(0)
    k_h, k_c, k_q, k_k, k_v = jax.random.split(key, 5)
    hidden_states = jax.random.normal(k_h, (B, dim, H, W), jnp.float32)
    ctx = jax.random.normal(k_c, (B, dim, H, W), jnp.float32)
    params = {
        "query": init_depth_conv_params(k_q, dim),
        "key": init_depth_conv_params(k_k, dim),
        "value": init_depth_conv_params(k_v, dim),
    }

    out = cross_attention_forward(hidden_states, ctx, params, num_heads)
    out = jax.block_until_ready(out)

    ref = cross_attention_ref(hidden_states, ctx, params, num_heads)
    assert out.shape == (B, dim, H, W), out.shape
    # Tolerance reflects bf16-fed MXU matmuls (f32 accumulate) plus the EUP
    # approximate reciprocal in the softmax denominator.
    assert jnp.allclose(out, ref, atol=3e-2, rtol=3e-2), \
        float(jnp.max(jnp.abs(out - ref)))

    print("KERNEL_OK")
</pallas_src>

<mosaic_0001>
module attributes {stable_mosaic.version = 11 : i64} {
  func.func @_cross_attention_fused_kernel(%arg0: i32, %arg1: memref<1x8x128xf32, #tpu.memory_space<vmem>>, %arg2: memref<1x8x128xf32, #tpu.memory_space<vmem>>, %arg3: memref<9x128xf32, #tpu.memory_space<vmem>>, %arg4: memref<3x8x9xf32, #tpu.memory_space<vmem>>, %arg5: memref<3x8x8xbf16, #tpu.memory_space<vmem>>, %arg6: memref<3x8x1xf32, #tpu.memory_space<vmem>>, %arg7: memref<1x8x128xf32, #tpu.memory_space<vmem>>) attributes {dimension_semantics = [#tpu.dimension_semantics<parallel>], iteration_bounds = array<i64: 2>, scalar_prefetch = 0 : i64, scratch_operands = 0 : i64, tpu.core_type = #tpu.core_type<tc>, window_params = [{transform_indices = @transform_0, window_bounds = array<i64: 1, 8, 128>}, {transform_indices = @transform_1, window_bounds = array<i64: 1, 8, 128>}, {pipeline_mode = #tpu.pipeline_mode<synchronous>, transform_indices = @transform_2, window_bounds = array<i64: 9, 128>}, {pipeline_mode = #tpu.pipeline_mode<synchronous>, transform_indices = @transform_3, window_bounds = array<i64: 3, 8, 9>}, {pipeline_mode = #tpu.pipeline_mode<synchronous>, transform_indices = @transform_4, window_bounds = array<i64: 3, 8, 8>}, {pipeline_mode = #tpu.pipeline_mode<synchronous>, transform_indices = @transform_5, window_bounds = array<i64: 3, 8, 1>}, {transform_indices = @transform_6, window_bounds = array<i64: 1, 8, 128>}]} {
    %c0 = arith.constant 0 : index
    %c0_0 = arith.constant 0 : index
    %c0_1 = arith.constant 0 : index
    %0 = vector.load %arg1[%c0, %c0_0, %c0_1] : memref<1x8x128xf32, #tpu.memory_space<vmem>>, vector<1x8x128xf32>
    %1 = vector.shape_cast %0 : vector<1x8x128xf32> to vector<8x128xf32>
    %c0_2 = arith.constant 0 : index
    %c0_3 = arith.constant 0 : index
    %c0_4 = arith.constant 0 : index
    %2 = vector.load %arg2[%c0_2, %c0_3, %c0_4] : memref<1x8x128xf32, #tpu.memory_space<vmem>>, vector<1x8x128xf32>
    %3 = vector.shape_cast %2 : vector<1x8x128xf32> to vector<8x128xf32>
    %c0_5 = arith.constant 0 : index
    %c0_6 = arith.constant 0 : index
    %4 = vector.load %arg3[%c0_5, %c0_6] : memref<9x128xf32, #tpu.memory_space<vmem>>, vector<9x128xf32>
    %c0_7 = arith.constant 0 : index
    %c0_8 = arith.constant 0 : index
    %c0_9 = arith.constant 0 : index
    %5 = vector.load %arg4[%c0_7, %c0_8, %c0_9] : memref<3x8x9xf32, #tpu.memory_space<vmem>>, vector<3x8x9xf32>
    %c0_10 = arith.constant 0 : index
    %c0_11 = arith.constant 0 : index
    %c0_12 = arith.constant 0 : index
    %6 = vector.load %arg5[%c0_10, %c0_11, %c0_12] : memref<3x8x8xbf16, #tpu.memory_space<vmem>>, vector<3x8x8xbf16>
    %c0_13 = arith.constant 0 : index
    %c0_14 = arith.constant 0 : index
    %c0_15 = arith.constant 0 : index
    %7 = vector.load %arg6[%c0_13, %c0_14, %c0_15] : memref<3x8x1xf32, #tpu.memory_space<vmem>>, vector<3x8x1xf32>
    %c17_i32 = arith.constant 17 : i32
    %8 = tpu.dynamic_rotate %1 by %c17_i32 dim 1 : vector<8x128xf32>, i32 -> vector<8x128xf32>
    %9 = vector.extract_strided_slice %4 {offsets = [0, 0], sizes = [1, 128], strides = [1, 1]} : vector<9x128xf32> to vector<1x128xf32>
    %10 = vector.broadcast %9 : vector<1x128xf32> to vector<8x128xf32>
    %11 = arith.mulf %8, %10 : vector<8x128xf32>
    %c16_i32 = arith.constant 16 : i32
    %12 = tpu.dynamic_rotate %1 by %c16_i32 dim 1 : vector<8x128xf32>, i32 -> vector<8x128xf32>
    %13 = vector.extract_strided_slice %4 {offsets = [1, 0], sizes = [1, 128], strides = [1, 1]} : vector<9x128xf32> to vector<1x128xf32>
    %14 = vector.broadcast %13 : vector<1x128xf32> to vector<8x128xf32>
    %15 = arith.mulf %12, %14 : vector<8x128xf32>
    %c15_i32 = arith.constant 15 : i32
    %16 = tpu.dynamic_rotate %1 by %c15_i32 dim 1 : vector<8x128xf32>, i32 -> vector<8x128xf32>
    %17 = vector.extract_strided_slice %4 {offsets = [2, 0], sizes = [1, 128], strides = [1, 1]} : vector<9x128xf32> to vector<1x128xf32>
    %18 = vector.broadcast %17 : vector<1x128xf32> to vector<8x128xf32>
    %19 = arith.mulf %16, %18 : vector<8x128xf32>
    %c1_i32 = arith.constant 1 : i32
    %20 = tpu.dynamic_rotate %1 by %c1_i32 dim 1 : vector<8x128xf32>, i32 -> vector<8x128xf32>
    %21 = vector.extract_strided_slice %4 {offsets = [3, 0], sizes = [1, 128], strides = [1, 1]} : vector<9x128xf32> to vector<1x128xf32>
    %22 = vector.broadcast %21 : vector<1x128xf32> to vector<8x128xf32>
    %23 = arith.mulf %20, %22 : vector<8x128xf32>
    %c127_i32 = arith.constant 127 : i32
    %24 = tpu.dynamic_rotate %1 by %c127_i32 dim 1 : vector<8x128xf32>, i32 -> vector<8x128xf32>
    %25 = vector.extract_strided_slice %4 {offsets = [5, 0], sizes = [1, 128], strides = [1, 1]} : vector<9x128xf32> to vector<1x128xf32>
    %26 = vector.broadcast %25 : vector<1x128xf32> to vector<8x128xf32>
    %27 = arith.mulf %24, %26 : vector<8x128xf32>
    %c113_i32 = arith.constant 113 : i32
    %28 = tpu.dynamic_rotate %1 by %c113_i32 dim 1 : vector<8x128xf32>, i32 -> vector<8x128xf32>
    %29 = vector.extract_strided_slice %4 {offsets = [6, 0], sizes = [1, 128], strides = [1, 1]} : vector<9x128xf32> to vector<1x128xf32>
    %30 = vector.broadcast %29 : vector<1x128xf32> to vector<8x128xf32>
    %31 = arith.mulf %28, %30 : vector<8x128xf32>
    %c112_i32 = arith.constant 112 : i32
    %32 = tpu.dynamic_rotate %1 by %c112_i32 dim 1 : vector<8x128xf32>, i32 -> vector<8x128xf32>
    %33 = vector.extract_strided_slice %4 {offsets = [7, 0], sizes = [1, 128], strides = [1, 1]} : vector<9x128xf32> to vector<1x128xf32>
    %34 = vector.broadcast %33 : vector<1x128xf32> to vector<8x128xf32>
    %35 = arith.mulf %32, %34 : vector<8x128xf32>
    %c111_i32 = arith.constant 111 : i32
    %36 = tpu.dynamic_rotate %1 by %c111_i32 dim 1 : vector<8x128xf32>, i32 -> vector<8x128xf32>
    %37 = vector.extract_strided_slice %4 {offsets = [8, 0], sizes = [1, 128], strides = [1, 1]} : vector<9x128xf32> to vector<1x128xf32>
    %38 = vector.broadcast %37 : vector<1x128xf32> to vector<8x128xf32>
    %39 = arith.mulf %36, %38 : vector<8x128xf32>
    %c17_i32_16 = arith.constant 17 : i32
    %40 = tpu.dynamic_rotate %3 by %c17_i32_16 dim 1 : vector<8x128xf32>, i32 -> vector<8x128xf32>
    %41 = vector.extract_strided_slice %4 {offsets = [0, 0], sizes = [1, 128], strides = [1, 1]} : vector<9x128xf32> to vector<1x128xf32>
    %42 = vector.broadcast %41 : vector<1x128xf32> to vector<8x128xf32>
    %43 = arith.mulf %40, %42 : vector<8x128xf32>
    %c16_i32_17 = arith.constant 16 : i32
    %44 = tpu.dynamic_rotate %3 by %c16_i32_17 dim 1 : vector<8x128xf32>, i32 -> vector<8x128xf32>
    %45 = vector.extract_strided_slice %4 {offsets = [1, 0], sizes = [1, 128], strides = [1, 1]} : vector<9x128xf32> to vector<1x128xf32>
    %46 = vector.broadcast %45 : vector<1x128xf32> to vector<8x128xf32>
    %47 = arith.mulf %44, %46 : vector<8x128xf32>
    %c15_i32_18 = arith.constant 15 : i32
    %48 = tpu.dynamic_rotate %3 by %c15_i32_18 dim 1 : vector<8x128xf32>, i32 -> vector<8x128xf32>
    %49 = vector.extract_strided_slice %4 {offsets = [2, 0], sizes = [1, 128], strides = [1, 1]} : vector<9x128xf32> to vector<1x128xf32>
    %50 = vector.broadcast %49 : vector<1x128xf32> to vector<8x128xf32>
    %51 = arith.mulf %48, %50 : vector<8x128xf32>
    %c1_i32_19 = arith.constant 1 : i32
    %52 = tpu.dynamic_rotate %3 by %c1_i32_19 dim 1 : vector<8x128xf32>, i32 -> vector<8x128xf32>
    %53 = vector.extract_strided_slice %4 {offsets = [3, 0], sizes = [1, 128], strides = [1, 1]} : vector<9x128xf32> to vector<1x128xf32>
    %54 = vector.broadcast %53 : vector<1x128xf32> to vector<8x128xf32>
    %55 = arith.mulf %52, %54 : vector<8x128xf32>
    %c127_i32_20 = arith.constant 127 : i32
    %56 = tpu.dynamic_rotate %3 by %c127_i32_20 dim 1 : vector<8x128xf32>, i32 -> vector<8x128xf32>
    %57 = vector.extract_strided_slice %4 {offsets = [5, 0], sizes = [1, 128], strides = [1, 1]} : vector<9x128xf32> to vector<1x128xf32>
    %58 = vector.broadcast %57 : vector<1x128xf32> to vector<8x128xf32>
    %59 = arith.mulf %56, %58 : vector<8x128xf32>
    %c113_i32_21 = arith.constant 113 : i32
    %60 = tpu.dynamic_rotate %3 by %c113_i32_21 dim 1 : vector<8x128xf32>, i32 -> vector<8x128xf32>
    %61 = vector.extract_strided_slice %4 {offsets = [6, 0], sizes = [1, 128], strides = [1, 1]} : vector<9x128xf32> to vector<1x128xf32>
    %62 = vector.broadcast %61 : vector<1x128xf32> to vector<8x128xf32>
    %63 = arith.mulf %60, %62 : vector<8x128xf32>
    %c112_i32_22 = arith.constant 112 : i32
    %64 = tpu.dynamic_rotate %3 by %c112_i32_22 dim 1 : vector<8x128xf32>, i32 -> vector<8x128xf32>
    %65 = vector.extract_strided_slice %4 {offsets = [7, 0], sizes = [1, 128], strides = [1, 1]} : vector<9x128xf32> to vector<1x128xf32>
    %66 = vector.broadcast %65 : vector<1x128xf32> to vector<8x128xf32>
    %67 = arith.mulf %64, %66 : vector<8x128xf32>
    %c111_i32_23 = arith.constant 111 : i32
    %68 = tpu.dynamic_rotate %3 by %c111_i32_23 dim 1 : vector<8x128xf32>, i32 -> vector<8x128xf32>
    %69 = vector.extract_strided_slice %4 {offsets = [8, 0], sizes = [1, 128], strides = [1, 1]} : vector<9x128xf32> to vector<1x128xf32>
    %70 = vector.broadcast %69 : vector<1x128xf32> to vector<8x128xf32>
    %71 = arith.mulf %68, %70 : vector<8x128xf32>
    %72 = vector.extract_strided_slice %5 {offsets = [0, 0, 0], sizes = [1, 8, 9], strides = [1, 1, 1]} : vector<3x8x9xf32> to vector<1x8x9xf32>
    %73 = vector.shape_cast %72 : vector<1x8x9xf32> to vector<8x9xf32>
    %74 = vector.extract_strided_slice %73 {offsets = [0, 0], sizes = [8, 1], strides = [1, 1]} : vector<8x9xf32> to vector<8x1xf32>
    %75 = vector.broadcast %74 : vector<8x1xf32> to vector<8x128xf32>
    %76 = arith.mulf %11, %75 : vector<8x128xf32>
    %77 = vector.extract_strided_slice %73 {offsets = [0, 1], sizes = [8, 1], strides = [1, 1]} : vector<8x9xf32> to vector<8x1xf32>
    %78 = vector.broadcast %77 : vector<8x1xf32> to vector<8x128xf32>
    %79 = arith.mulf %15, %78 : vector<8x128xf32>
    %80 = arith.addf %76, %79 : vector<8x128xf32>
    %81 = vector.extract_strided_slice %73 {offsets = [0, 2], sizes = [8, 1], strides = [1, 1]} : vector<8x9xf32> to vector<8x1xf32>
    %82 = vector.broadcast %81 : vector<8x1xf32> to vector<8x128xf32>
    %83 = arith.mulf %19, %82 : vector<8x128xf32>
    %84 = arith.addf %80, %83 : vector<8x128xf32>
    %85 = vector.extract_strided_slice %73 {offsets = [0, 3], sizes = [8, 1], strides = [1, 1]} : vector<8x9xf32> to vector<8x1xf32>
    %86 = vector.broadcast %85 : vector<8x1xf32> to vector<8x128xf32>
    %87 = arith.mulf %23, %86 : vector<8x128xf32>
    %88 = arith.addf %84, %87 : vector<8x128xf32>
    %89 = vector.extract_strided_slice %73 {offsets = [0, 4], sizes = [8, 1], strides = [1, 1]} : vector<8x9xf32> to vector<8x1xf32>
    %90 = vector.broadcast %89 : vector<8x1xf32> to vector<8x128xf32>
    %91 = arith.mulf %1, %90 : vector<8x128xf32>
    %92 = arith.addf %88, %91 : vector<8x128xf32>
    %93 = vector.extract_strided_slice %73 {offsets = [0, 5], sizes = [8, 1], strides = [1, 1]} : vector<8x9xf32> to vector<8x1xf32>
    %94 = vector.broadcast %93 : vector<8x1xf32> to vector<8x128xf32>
    %95 = arith.mulf %27, %94 : vector<8x128xf32>
    %96 = arith.addf %92, %95 : vector<8x128xf32>
    %97 = vector.extract_strided_slice %73 {offsets = [0, 6], sizes = [8, 1], strides = [1, 1]} : vector<8x9xf32> to vector<8x1xf32>
    %98 = vector.broadcast %97 : vector<8x1xf32> to vector<8x128xf32>
    %99 = arith.mulf %31, %98 : vector<8x128xf32>
    %100 = arith.addf %96, %99 : vector<8x128xf32>
    %101 = vector.extract_strided_slice %73 {offsets = [0, 7], sizes = [8, 1], strides = [1, 1]} : vector<8x9xf32> to vector<8x1xf32>
    %102 = vector.broadcast %101 : vector<8x1xf32> to vector<8x128xf32>
    %103 = arith.mulf %35, %102 : vector<8x128xf32>
    %104 = arith.addf %100, %103 : vector<8x128xf32>
    %105 = vector.extract_strided_slice %73 {offsets = [0, 8], sizes = [8, 1], strides = [1, 1]} : vector<8x9xf32> to vector<8x1xf32>
    %106 = vector.broadcast %105 : vector<8x1xf32> to vector<8x128xf32>
    %107 = arith.mulf %39, %106 : vector<8x128xf32>
    %108 = arith.addf %104, %107 : vector<8x128xf32>
    %109 = vector.extract_strided_slice %6 {offsets = [0, 0, 0], sizes = [1, 8, 8], strides = [1, 1, 1]} : vector<3x8x8xbf16> to vector<1x8x8xbf16>
    %110 = vector.shape_cast %109 : vector<1x8x8xbf16> to vector<8x8xbf16>
    %111 = arith.truncf %108 : vector<8x128xf32> to vector<8x128xbf16>
    %cst = arith.constant dense<0.000000e+00> : vector<8x128xf32>
    %112 = tpu.matmul %110, %111, %cst {dimension_numbers = #tpu.dot_dimension_numbers<[1], [0], [0], [1], [0, 0, 1, 1], [], []>} : vector<8x8xbf16>, vector<8x128xbf16>, vector<8x128xf32> -> vector<8x128xf32>
    %113 = vector.extract_strided_slice %7 {offsets = [0, 0, 0], sizes = [1, 8, 1], strides = [1, 1, 1]} : vector<3x8x1xf32> to vector<1x8x1xf32>
    %114 = vector.shape_cast %113 : vector<1x8x1xf32> to vector<8x1xf32>
    %115 = vector.broadcast %114 : vector<8x1xf32> to vector<8x128xf32>
    %116 = arith.addf %112, %115 : vector<8x128xf32>
    %117 = vector.extract_strided_slice %5 {offsets = [1, 0, 0], sizes = [1, 8, 9], strides = [1, 1, 1]} : vector<3x8x9xf32> to vector<1x8x9xf32>
    %118 = vector.shape_cast %117 : vector<1x8x9xf32> to vector<8x9xf32>
    %119 = vector.extract_strided_slice %118 {offsets = [0, 0], sizes = [8, 1], strides = [1, 1]} : vector<8x9xf32> to vector<8x1xf32>
    %120 = vector.broadcast %119 : vector<8x1xf32> to vector<8x128xf32>
    %121 = arith.mulf %43, %120 : vector<8x128xf32>
    %122 = vector.extract_strided_slice %118 {offsets = [0, 1], sizes = [8, 1], strides = [1, 1]} : vector<8x9xf32> to vector<8x1xf32>
    %123 = vector.broadcast %122 : vector<8x1xf32> to vector<8x128xf32>
    %124 = arith.mulf %47, %123 : vector<8x128xf32>
    %125 = arith.addf %121, %124 : vector<8x128xf32>
    %126 = vector.extract_strided_slice %118 {offsets = [0, 2], sizes = [8, 1], strides = [1, 1]} : vector<8x9xf32> to vector<8x1xf32>
    %127 = vector.broadcast %126 : vector<8x1xf32> to vector<8x128xf32>
    %128 = arith.mulf %51, %127 : vector<8x128xf32>
    %129 = arith.addf %125, %128 : vector<8x128xf32>
    %130 = vector.extract_strided_slice %118 {offsets = [0, 3], sizes = [8, 1], strides = [1, 1]} : vector<8x9xf32> to vector<8x1xf32>
    %131 = vector.broadcast %130 : vector<8x1xf32> to vector<8x128xf32>
    %132 = arith.mulf %55, %131 : vector<8x128xf32>
    %133 = arith.addf %129, %132 : vector<8x128xf32>
    %134 = vector.extract_strided_slice %118 {offsets = [0, 4], sizes = [8, 1], strides = [1, 1]} : vector<8x9xf32> to vector<8x1xf32>
    %135 = vector.broadcast %134 : vector<8x1xf32> to vector<8x128xf32>
    %136 = arith.mulf %3, %135 : vector<8x128xf32>
    %137 = arith.addf %133, %136 : vector<8x128xf32>
    %138 = vector.extract_strided_slice %118 {offsets = [0, 5], sizes = [8, 1], strides = [1, 1]} : vector<8x9xf32> to vector<8x1xf32>
    %139 = vector.broadcast %138 : vector<8x1xf32> to vector<8x128xf32>
    %140 = arith.mulf %59, %139 : vector<8x128xf32>
    %141 = arith.addf %137, %140 : vector<8x128xf32>
    %142 = vector.extract_strided_slice %118 {offsets = [0, 6], sizes = [8, 1], strides = [1, 1]} : vector<8x9xf32> to vector<8x1xf32>
    %143 = vector.broadcast %142 : vector<8x1xf32> to vector<8x128xf32>
    %144 = arith.mulf %63, %143 : vector<8x128xf32>
    %145 = arith.addf %141, %144 : vector<8x128xf32>
    %146 = vector.extract_strided_slice %118 {offsets = [0, 7], sizes = [8, 1], strides = [1, 1]} : vector<8x9xf32> to vector<8x1xf32>
    %147 = vector.broadcast %146 : vector<8x1xf32> to vector<8x128xf32>
    %148 = arith.mulf %67, %147 : vector<8x128xf32>
    %149 = arith.addf %145, %148 : vector<8x128xf32>
    %150 = vector.extract_strided_slice %118 {offsets = [0, 8], sizes = [8, 1], strides = [1, 1]} : vector<8x9xf32> to vector<8x1xf32>
    %151 = vector.broadcast %150 : vector<8x1xf32> to vector<8x128xf32>
    %152 = arith.mulf %71, %151 : vector<8x128xf32>
    %153 = arith.addf %149, %152 : vector<8x128xf32>
    %154 = vector.extract_strided_slice %6 {offsets = [1, 0, 0], sizes = [1, 8, 8], strides = [1, 1, 1]} : vector<3x8x8xbf16> to vector<1x8x8xbf16>
    %155 = vector.shape_cast %154 : vector<1x8x8xbf16> to vector<8x8xbf16>
    %156 = arith.truncf %153 : vector<8x128xf32> to vector<8x128xbf16>
    %cst_24 = arith.constant dense<0.000000e+00> : vector<8x128xf32>
    %157 = tpu.matmul %155, %156, %cst_24 {dimension_numbers = #tpu.dot_dimension_numbers<[1], [0], [0], [1], [0, 0, 1, 1], [], []>} : vector<8x8xbf16>, vector<8x128xbf16>, vector<8x128xf32> -> vector<8x128xf32>
    %158 = vector.extract_strided_slice %7 {offsets = [1, 0, 0], sizes = [1, 8, 1], strides = [1, 1, 1]} : vector<3x8x1xf32> to vector<1x8x1xf32>
    %159 = vector.shape_cast %158 : vector<1x8x1xf32> to vector<8x1xf32>
    %160 = vector.broadcast %159 : vector<8x1xf32> to vector<8x128xf32>
    %161 = arith.addf %157, %160 : vector<8x128xf32>
    %162 = vector.extract_strided_slice %5 {offsets = [2, 0, 0], sizes = [1, 8, 9], strides = [1, 1, 1]} : vector<3x8x9xf32> to vector<1x8x9xf32>
    %163 = vector.shape_cast %162 : vector<1x8x9xf32> to vector<8x9xf32>
    %164 = vector.extract_strided_slice %163 {offsets = [0, 0], sizes = [8, 1], strides = [1, 1]} : vector<8x9xf32> to vector<8x1xf32>
    %165 = vector.broadcast %164 : vector<8x1xf32> to vector<8x128xf32>
    %166 = arith.mulf %43, %165 : vector<8x128xf32>
    %167 = vector.extract_strided_slice %163 {offsets = [0, 1], sizes = [8, 1], strides = [1, 1]} : vector<8x9xf32> to vector<8x1xf32>
    %168 = vector.broadcast %167 : vector<8x1xf32> to vector<8x128xf32>
    %169 = arith.mulf %47, %168 : vector<8x128xf32>
    %170 = arith.addf %166, %169 : vector<8x128xf32>
    %171 = vector.extract_strided_slice %163 {offsets = [0, 2], sizes = [8, 1], strides = [1, 1]} : vector<8x9xf32> to vector<8x1xf32>
    %172 = vector.broadcast %171 : vector<8x1xf32> to vector<8x128xf32>
    %173 = arith.mulf %51, %172 : vector<8x128xf32>
    %174 = arith.addf %170, %173 : vector<8x128xf32>
    %175 = vector.extract_strided_slice %163 {offsets = [0, 3], sizes = [8, 1], strides = [1, 1]} : vector<8x9xf32> to vector<8x1xf32>
    %176 = vector.broadcast %175 : vector<8x1xf32> to vector<8x128xf32>
    %177 = arith.mulf %55, %176 : vector<8x128xf32>
    %178 = arith.addf %174, %177 : vector<8x128xf32>
    %179 = vector.extract_strided_slice %163 {offsets = [0, 4], sizes = [8, 1], strides = [1, 1]} : vector<8x9xf32> to vector<8x1xf32>
    %180 = vector.broadcast %179 : vector<8x1xf32> to vector<8x128xf32>
    %181 = arith.mulf %3, %180 : vector<8x128xf32>
    %182 = arith.addf %178, %181 : vector<8x128xf32>
    %183 = vector.extract_strided_slice %163 {offsets = [0, 5], sizes = [8, 1], strides = [1, 1]} : vector<8x9xf32> to vector<8x1xf32>
    %184 = vector.broadcast %183 : vector<8x1xf32> to vector<8x128xf32>
    %185 = arith.mulf %59, %184 : vector<8x128xf32>
    %186 = arith.addf %182, %185 : vector<8x128xf32>
    %187 = vector.extract_strided_slice %163 {offsets = [0, 6], sizes = [8, 1], strides = [1, 1]} : vector<8x9xf32> to vector<8x1xf32>
    %188 = vector.broadcast %187 : vector<8x1xf32> to vector<8x128xf32>
    %189 = arith.mulf %63, %188 : vector<8x128xf32>
    %190 = arith.addf %186, %189 : vector<8x128xf32>
    %191 = vector.extract_strided_slice %163 {offsets = [0, 7], sizes = [8, 1], strides = [1, 1]} : vector<8x9xf32> to vector<8x1xf32>
    %192 = vector.broadcast %191 : vector<8x1xf32> to vector<8x128xf32>
    %193 = arith.mulf %67, %192 : vector<8x128xf32>
    %194 = arith.addf %190, %193 : vector<8x128xf32>
    %195 = vector.extract_strided_slice %163 {offsets = [0, 8], sizes = [8, 1], strides = [1, 1]} : vector<8x9xf32> to vector<8x1xf32>
    %196 = vector.broadcast %195 : vector<8x1xf32> to vector<8x128xf32>
    %197 = arith.mulf %71, %196 : vector<8x128xf32>
    %198 = arith.addf %194, %197 : vector<8x128xf32>
    %199 = vector.extract_strided_slice %6 {offsets = [2, 0, 0], sizes = [1, 8, 8], strides = [1, 1, 1]} : vector<3x8x8xbf16> to vector<1x8x8xbf16>
    %200 = vector.shape_cast %199 : vector<1x8x8xbf16> to vector<8x8xbf16>
    %201 = arith.truncf %198 : vector<8x128xf32> to vector<8x128xbf16>
    %cst_25 = arith.constant dense<0.000000e+00> : vector<8x128xf32>
    %202 = tpu.matmul %200, %201, %cst_25 {dimension_numbers = #tpu.dot_dimension_numbers<[1], [0], [0], [1], [0, 0, 1, 1], [], []>} : vector<8x8xbf16>, vector<8x128xbf16>, vector<8x128xf32> -> vector<8x128xf32>
    %203 = vector.extract_strided_slice %7 {offsets = [2, 0, 0], sizes = [1, 8, 1], strides = [1, 1, 1]} : vector<3x8x1xf32> to vector<1x8x1xf32>
    %204 = vector.shape_cast %203 : vector<1x8x1xf32> to vector<8x1xf32>
    %205 = vector.broadcast %204 : vector<8x1xf32> to vector<8x128xf32>
    %206 = arith.addf %202, %205 : vector<8x128xf32>
    %207 = vector.shape_cast %116 : vector<8x128xf32> to vector<8x8x16xf32>
    %208 = arith.truncf %207 : vector<8x8x16xf32> to vector<8x8x16xbf16>
    %209 = vector.shape_cast %161 : vector<8x128xf32> to vector<8x8x16xf32>
    %210 = arith.truncf %209 : vector<8x8x16xf32> to vector<8x8x16xbf16>
    %211 = vector.shape_cast %206 : vector<8x128xf32> to vector<8x8x16xf32>
    %212 = arith.truncf %211 : vector<8x8x16xf32> to vector<8x8x16xbf16>
    "tpu.trace_start"() <{level = 10 : i32, message = "chw,khw->hck"}> : () -> ()
    %cst_26 = arith.constant dense<0.000000e+00> : vector<8x8x8xf32>
    %213 = tpu.matmul %208, %210, %cst_26 {dimension_numbers = #tpu.dot_dimension_numbers<[2], [2], [0], [0], [0, 1, 0, 0, 1, 0], [1], [1]>} : vector<8x8x16xbf16>, vector<8x8x16xbf16>, vector<8x8x8xf32> -> vector<8x8x8xf32>
    "tpu.trace_stop"() : () -> ()
    %cst_27 = arith.constant dense<0xFF800000> : vector<8x8xf32>
    %214 = vector.multi_reduction <maximumf>, %213, %cst_27 [2] : vector<8x8x8xf32> to vector<8x8xf32>
    %215 = vector.shape_cast %214 : vector<8x8xf32> to vector<8x8x1xf32>
    %216 = vector.broadcast %215 : vector<8x8x1xf32> to vector<8x8x8xf32>
    %217 = arith.subf %213, %216 : vector<8x8x8xf32>
    %218 = math.exp %217 : vector<8x8x8xf32>
    %cst_28 = arith.constant dense<0.000000e+00> : vector<8x8xf32>
    %219 = vector.multi_reduction <add>, %218, %cst_28 [2] : vector<8x8x8xf32> to vector<8x8xf32>
    %220 = vector.shape_cast %219 : vector<8x8xf32> to vector<8x8x1xf32>
    %221 = tpu.reciprocal %220 {approx = true} : vector<8x8x1xf32> -> vector<8x8x1xf32>
    %222 = vector.broadcast %221 : vector<8x8x1xf32> to vector<8x8x8xf32>
    %223 = arith.mulf %218, %222 : vector<8x8x8xf32>
    %224 = arith.truncf %223 : vector<8x8x8xf32> to vector<8x8x8xbf16>
    "tpu.trace_start"() <{level = 10 : i32, message = "hck,khw->chw"}> : () -> ()
    %cst_29 = arith.constant dense<0.000000e+00> : vector<8x16x8xf32>
    %225 = tpu.matmul %212, %224, %cst_29 {dimension_numbers = #tpu.dot_dimension_numbers<[0], [2], [2], [1], [0, 1, 0, 2, 1, 1], [1], [0]>} : vector<8x8x16xbf16>, vector<8x8x8xbf16>, vector<8x16x8xf32> -> vector<8x16x8xf32>
    %226 = tpu.transpose %225, [2, 0, 1] : vector<8x16x8xf32> -> vector<8x8x16xf32>
    "tpu.trace_stop"() : () -> ()
    %227 = vector.shape_cast %226 : vector<8x8x16xf32> to vector<8x128xf32>
    %c0_30 = arith.constant 0 : index
    %c0_31 = arith.constant 0 : index
    %c0_32 = arith.constant 0 : index
    %228 = vector.load %arg7[%c0_30, %c0_31, %c0_32] : memref<1x8x128xf32, #tpu.memory_space<vmem>>, vector<1x8x128xf32>
    %229 = vector.shape_cast %228 : vector<1x8x128xf32> to vector<8x128xf32>
    %230 = vector.shape_cast %227 : vector<8x128xf32> to vector<1x8x128xf32>
    tpu.vector_store %arg7[%c0_30, %c0_31, %c0_32], %230 {strides = array<i32>} : memref<1x8x128xf32, #tpu.memory_space<vmem>>, vector<1x8x128xf32>,
    return
  }
  func.func @transform_0(%arg0: i32) -> (i32, i32, i32) {
    %c0_i32 = arith.constant 0 : i32
    %c0_i32_0 = arith.constant 0 : i32
    %c0_i32_1 = arith.constant 0 : i32
    return %arg0, %c0_i32, %c0_i32_0 : i32, i32, i32
  }
  func.func @transform_1(%arg0: i32) -> (i32, i32, i32) {
    %c0_i32 = arith.constant 0 : i32
    %c0_i32_0 = arith.constant 0 : i32
    %c0_i32_1 = arith.constant 0 : i32
    return %arg0, %c0_i32, %c0_i32_0 : i32, i32, i32
  }
  func.func @transform_2(%arg0: i32) -> (i32, i32) {
    %c0_i32 = arith.constant 0 : i32
    %c0_i32_0 = arith.constant 0 : i32
    %c0_i32_1 = arith.constant 0 : i32
    return %c0_i32, %c0_i32_0 : i32, i32
  }
  func.func @transform_3(%arg0: i32) -> (i32, i32, i32) {
    %c0_i32 = arith.constant 0 : i32
    %c0_i32_0 = arith.constant 0 : i32
    %c0_i32_1 = arith.constant 0 : i32
    %c0_i32_2 = arith.constant 0 : i32
    return %c0_i32, %c0_i32_0, %c0_i32_1 : i32, i32, i32
  }
  func.func @transform_4(%arg0: i32) -> (i32, i32, i32) {
    %c0_i32 = arith.constant 0 : i32
    %c0_i32_0 = arith.constant 0 : i32
    %c0_i32_1 = arith.constant 0 : i32
    %c0_i32_2 = arith.constant 0 : i32
    return %c0_i32, %c0_i32_0, %c0_i32_1 : i32, i32, i32
  }
  func.func @transform_5(%arg0: i32) -> (i32, i32, i32) {
    %c0_i32 = arith.constant 0 : i32
    %c0_i32_0 = arith.constant 0 : i32
    %c0_i32_1 = arith.constant 0 : i32
    %c0_i32_2 = arith.constant 0 : i32
    return %c0_i32, %c0_i32_0, %c0_i32_1 : i32, i32, i32
  }
  func.func @transform_6(%arg0: i32) -> (i32, i32, i32) {
    %c0_i32 = arith.constant 0 : i32
    %c0_i32_0 = arith.constant 0 : i32
    %c0_i32_1 = arith.constant 0 : i32
    return %arg0, %c0_i32, %c0_i32_0 : i32, i32, i32
  }
}

</mosaic_0001>

<llo_original>
// kernel: cross_attention_forward.1
$region0: #{cross_attention_forward.1}
  #allocation0 [shape = 'u32[]', space=smem, size = 0x4, offset = 0x4, fixed_abs, tag = 'smem constant byte address 0x4 - core index']
  #allocation1 [shape = 'u32[144,128]{1,0:T(1,128)}', space=vmem, size = 0x12000, scoped, tag = 'internal scratch']
  %s0 = inlined_call_operand.vmem [shape: f32[2,8,128], index: 0, kind: input, shape index: {}]
  %s1 = inlined_call_operand.vmem [shape: f32[2,8,128], index: 1, kind: input, shape index: {}]
  %s2 = inlined_call_operand.vmem [shape: f32[9,128], index: 2, kind: input, shape index: {}]
  %s3 = inlined_call_operand.vmem [shape: f32[3,8,9], index: 3, kind: input, shape index: {}]
  %s4 = inlined_call_operand.vmem [shape: bf16[3,8,8], index: 4, kind: input, shape index: {}]
  %s5 = inlined_call_operand.vmem [shape: f32[3,8,1], index: 5, kind: input, shape index: {}]
  %s6 = inlined_call_operand.vmem [shape: f32[2,8,128], index: 6, kind: output, shape index: {}]
  %s7 = sld [smem:[#allocation0]]
  $region57: #{cross_attention_forward.1} parent=0
    _
  %s9 = ssub.s32 1, %s7
  %s10 = scalar_select 0, %s9, %s7
  loop: start=0, step=1, limit=4
  $region2: #{cross_attention_forward.1} parent=0 // loop_pre_header
    _
  $region3: #{cross_attention_forward.1} parent=0 // loop_header
    %s12 = sphi 0, %s16
    %p13 = scmp.ge.s32.totalorder %s12, 4
    %s22 = sphi 0, %s24
    %s25 = sphi 0, %s22
    %s26 = sphi 0, %s25
    %s42 = sphi 0, %s26
    %s48 = sphi 0, %s50
    %s51 = sphi 0, %s48
    %s52 = sphi 0, %s51
    %s68 = sphi 0, %s52
    %s72 = sphi 0, %s72
    %s74 = sphi 0, %s72
    %s75 = sphi 0, %s74
    %s89 = sphi 0, %s75
    %s93 = sphi 0, %s93
    %s95 = sphi 0, %s93
    %s96 = sphi 0, %s95
    %s110 = sphi 0, %s96
    %s114 = sphi 0, %s114
    %s116 = sphi 0, %s114
    %s117 = sphi 0, %s116
    %s131 = sphi 0, %s117
    %s135 = sphi 0, %s135
    %s137 = sphi 0, %s135
    %s138 = sphi 0, %s137
    %s152 = sphi 0, %s138
    %s158 = sphi 0, %s160
    %s161 = sphi 0, %s158
    %s162 = sphi 0, %s161
    %s178 = sphi 0, %s162
  $region4: #{cross_attention_forward.1} parent=0 // loop_header_branch
    %15 = sbr.rel (%p13) target = $region8
  $region5: #{cross_attention_forward.1} parent=0 // loop_body
    %s17 = ssub.s32 %s12, 1
    %s18 = ssub.s32 %s12, 2
    %s19 = sadd.s32 %s12, 1
    %s20 = ssub.s32 %s12, %s19
    %p21 = scmp.eq.s32.totalorder %s20, 0
    %s23 = sadd.s32 %s22, 1
    %s24 = scalar_select %p21, %s22, %s23
    %p27 = pneg %p21
    %p28 = scmp.eq.s32.totalorder %s12, 1
    %p29 = por %p27, %p28
    %p30 = scmp.ne.s32.totalorder %s22, %s25
    %p31 = scmp.eq.s32.totalorder %s12, 0
    %p32 = por %p30, %p31
    %p33 = scmp.ne.s32.totalorder %s22, %s25
    %p34 = scmp.eq.s32.totalorder %s17, 1
    %p35 = por %p33, %p34
    %p36 = scmp.ne.s32.totalorder %s25, %s26
    %p37 = scmp.eq.s32.totalorder %s17, 0
    %p38 = por %p36, %p37
    %p39 = scmp.ne.s32.totalorder %s25, %s26
    %p40 = scmp.eq.s32.totalorder %s18, 1
    %p41 = por %p39, %p40
    %p43 = scmp.ne.s32.totalorder %s26, %s42
    %p44 = scmp.eq.s32.totalorder %s18, 0
    %p45 = por %p43, %p44
    %s46 = ssub.s32 %s12, %s19
    %p47 = scmp.eq.s32.totalorder %s46, 0
    %s49 = sadd.s32 %s48, 1
    %s50 = scalar_select %p47, %s48, %s49
    %p53 = pneg %p47
    %p54 = scmp.eq.s32.totalorder %s12, 1
    %p55 = por %p53, %p54
    %p56 = scmp.ne.s32.totalorder %s48, %s51
    %p57 = scmp.eq.s32.totalorder %s12, 0
    %p58 = por %p56, %p57
    %p59 = scmp.ne.s32.totalorder %s48, %s51
    %p60 = scmp.eq.s32.totalorder %s17, 1
    %p61 = por %p59, %p60
    %p62 = scmp.ne.s32.totalorder %s51, %s52
    %p63 = scmp.eq.s32.totalorder %s17, 0
    %p64 = por %p62, %p63
    %p65 = scmp.ne.s32.totalorder %s51, %s52
    %p66 = scmp.eq.s32.totalorder %s18, 1
    %p67 = por %p65, %p66
    %p69 = scmp.ne.s32.totalorder %s52, %s68
    %p70 = scmp.eq.s32.totalorder %s18, 0
    %p71 = por %p69, %p70
    %s73 = sadd.s32 %s72, 1
    %p76 = scmp.eq.s32.totalorder %s12, 1
    %p77 = scmp.ne.s32.totalorder %s72, %s74
    %p78 = scmp.eq.s32.totalorder %s12, 0
    %p79 = por %p77, %p78
    %p80 = scmp.ne.s32.totalorder %s72, %s74
    %p81 = scmp.eq.s32.totalorder %s17, 1
    %p82 = por %p80, %p81
    %p83 = scmp.ne.s32.totalorder %s74, %s75
    %p84 = scmp.eq.s32.totalorder %s17, 0
    %p85 = por %p83, %p84
    %p86 = scmp.ne.s32.totalorder %s74, %s75
    %p87 = scmp.eq.s32.totalorder %s18, 1
    %p88 = por %p86, %p87
    %p90 = scmp.ne.s32.totalorder %s75, %s89
    %p91 = scmp.eq.s32.totalorder %s18, 0
    %p92 = por %p90, %p91
    %s94 = sadd.s32 %s93, 1
    %p97 = scmp.eq.s32.totalorder %s12, 1
    %p98 = scmp.ne.s32.totalorder %s93, %s95
    %p99 = scmp.eq.s32.totalorder %s12, 0
    %p100 = por %p98, %p99
    %p101 = scmp.ne.s32.totalorder %s93, %s95
    %p102 = scmp.eq.s32.totalorder %s17, 1
    %p103 = por %p101, %p102
    %p104 = scmp.ne.s32.totalorder %s95, %s96
    %p105 = scmp.eq.s32.totalorder %s17, 0
    %p106 = por %p104, %p105
    %p107 = scmp.ne.s32.totalorder %s95, %s96
    %p108 = scmp.eq.s32.totalorder %s18, 1
    %p109 = por %p107, %p108
    %p111 = scmp.ne.s32.totalorder %s96, %s110
    %p112 = scmp.eq.s32.totalorder %s18, 0
    %p113 = por %p111, %p112
    %s115 = sadd.s32 %s114, 1
    %p118 = scmp.eq.s32.totalorder %s12, 1
    %p119 = scmp.ne.s32.totalorder %s114, %s116
    %p120 = scmp.eq.s32.totalorder %s12, 0
    %p121 = por %p119, %p120
    %p122 = scmp.ne.s32.totalorder %s114, %s116
    %p123 = scmp.eq.s32.totalorder %s17, 1
    %p124 = por %p122, %p123
    %p125 = scmp.ne.s32.totalorder %s116, %s117
    %p126 = scmp.eq.s32.totalorder %s17, 0
    %p127 = por %p125, %p126
    %p128 = scmp.ne.s32.totalorder %s116, %s117
    %p129 = scmp.eq.s32.totalorder %s18, 1
    %p130 = por %p128, %p129
    %p132 = scmp.ne.s32.totalorder %s117, %s131
    %p133 = scmp.eq.s32.totalorder %s18, 0
    %p134 = por %p132, %p133
    %s136 = sadd.s32 %s135, 1
    %p139 = scmp.eq.s32.totalorder %s12, 1
    %p140 = scmp.ne.s32.totalorder %s135, %s137
    %p141 = scmp.eq.s32.totalorder %s12, 0
    %p142 = por %p140, %p141
    %p143 = scmp.ne.s32.totalorder %s135, %s137
    %p144 = scmp.eq.s32.totalorder %s17, 1
    %p145 = por %p143, %p144
    %p146 = scmp.ne.s32.totalorder %s137, %s138
    %p147 = scmp.eq.s32.totalorder %s17, 0
    %p148 = por %p146, %p147
    %p149 = scmp.ne.s32.totalorder %s137, %s138
    %p150 = scmp.eq.s32.totalorder %s18, 1
    %p151 = por %p149, %p150
    %p153 = scmp.ne.s32.totalorder %s138, %s152
    %p154 = scmp.eq.s32.totalorder %s18, 0
    %p155 = por %p153, %p154
    %s156 = ssub.s32 %s12, %s19
    %p157 = scmp.eq.s32.totalorder %s156, 0
    %s159 = sadd.s32 %s158, 1
    %s160 = scalar_select %p157, %s158, %s159
    %p163 = pneg %p157
    %p164 = scmp.eq.s32.totalorder %s12, 1
    %p165 = por %p163, %p164
    %p166 = scmp.ne.s32.totalorder %s158, %s161
    %p167 = scmp.eq.s32.totalorder %s12, 0
    %p168 = por %p166, %p167
    %p169 = scmp.ne.s32.totalorder %s158, %s161
    %p170 = scmp.eq.s32.totalorder %s17, 1
    %p171 = por %p169, %p170
    %p172 = scmp.ne.s32.totalorder %s161, %s162
    %p173 = scmp.eq.s32.totalorder %s17, 0
    %p174 = por %p172, %p173
    %p175 = scmp.ne.s32.totalorder %s161, %s162
    %p176 = scmp.eq.s32.totalorder %s18, 1
    %p177 = por %p175, %p176
    %p179 = scmp.ne.s32.totalorder %s162, %s178
    %p180 = scmp.eq.s32.totalorder %s18, 0
    %p181 = por %p179, %p180
    %p182 = scmp.le.s32.totalorder 1, %s12
    %p183 = scmp.lt.s32.totalorder %s12, 3
    %p184 = pnand %p182, %p183
    %p185 = pneg %p184
    // Predicated region
    $region9: #{cross_attention_forward.1} parent=5 // pred_check
      _
    $region10: #{cross_attention_forward.1} parent=5 // pred_check_branch
      %187 = sbr.rel (%p184) target = $region12
    $region11: #{cross_attention_forward.1} parent=5 // pred_region
      %s188 = ssub.s32 %s12, 1
      // Predicated region
      $region13: #{cross_attention_forward.1} parent=11 // pred_check
        %p189 = pneg %p85
      $region14: #{cross_attention_forward.1} parent=11 // pred_check_branch
        %191 = sbr.rel (%p189) target = $region16
      $region15: #{cross_attention_forward.1} parent=11 // pred_region
        _
      $region16: #{cross_attention_forward.1} parent=11 // pred_fallthru
        _
      // Predicated region
      $region17: #{cross_attention_forward.1} parent=11 // pred_check
        %p192 = pneg %p106
      $region18: #{cross_attention_forward.1} parent=11 // pred_check_branch
        %194 = sbr.rel (%p192) target = $region20
      $region19: #{cross_attention_forward.1} parent=11 // pred_region
        _
      $region20: #{cross_attention_forward.1} parent=11 // pred_fallthru
        _
      // Predicated region
      $region21: #{cross_attention_forward.1} parent=11 // pred_check
        %p195 = pneg %p127
      $region22: #{cross_attention_forward.1} parent=11 // pred_check_branch
        %197 = sbr.rel (%p195) target = $region24
      $region23: #{cross_attention_forward.1} parent=11 // pred_region
        _
      $region24: #{cross_attention_forward.1} parent=11 // pred_fallthru
        _
      // Predicated region
      $region25: #{cross_attention_forward.1} parent=11 // pred_check
        %p198 = pneg %p148
      $region26: #{cross_attention_forward.1} parent=11 // pred_check_branch
        %200 = sbr.rel (%p198) target = $region28
      $region27: #{cross_attention_forward.1} parent=11 // pred_region
        _
      $region28: #{cross_attention_forward.1} parent=11 // pred_fallthru
        _
    $region12: #{cross_attention_forward.1} parent=5 // pred_fallthru
      _
    %p201 = scmp.lt.s32.totalorder %s12, 2
    // Predicated region
    $region29: #{cross_attention_forward.1} parent=5 // pred_check
      %p202 = pneg %p201
    $region30: #{cross_attention_forward.1} parent=5 // pred_check_branch
      %204 = sbr.rel (%p202) target = $region32
    $region31: #{cross_attention_forward.1} parent=5 // pred_region
      // Predicated region
      $region33: #{cross_attention_forward.1} parent=31 // pred_check
        %p205 = pneg %p32
      $region34: #{cross_attention_forward.1} parent=31 // pred_check_branch
        %207 = sbr.rel (%p205) target = $region36
      $region35: #{cross_attention_forward.1} parent=31 // pred_region
        %p208 = scmp.lt.s32.totalorder %s12, 1
        %s209 = scalar_select %p208, %s12, 1
        %s210 = smul.addr %s209, 8
        %s211 = scalar_lea.vmem %s0, %s210
      $region36: #{cross_attention_forward.1} parent=31 // pred_fallthru
        _
      // Predicated region
      $region37: #{cross_attention_forward.1} parent=31 // pred_check
        %p212 = pneg %p58
      $region38: #{cross_attention_forward.1} parent=31 // pred_check_branch
        %214 = sbr.rel (%p212) target = $region40
      $region39: #{cross_attention_forward.1} parent=31 // pred_region
        %p215 = scmp.lt.s32.totalorder %s12, 1
        %s216 = scalar_select %p215, %s12, 1
        %s217 = smul.addr %s216, 8
        %s218 = scalar_lea.vmem %s1, %s217
      $region40: #{cross_attention_forward.1} parent=31 // pred_fallthru
        _
    $region32: #{cross_attention_forward.1} parent=5 // pred_fallthru
      _
    %p219 = scmp.le.s32.totalorder 1, %s12
    %p220 = scmp.lt.s32.totalorder %s12, 3
    %p221 = pnand %p219, %p220
    %p222 = pneg %p221
    // Predicated region
    $region41: #{cross_attention_forward.1} parent=5 // pred_check
      _
    $region42: #{cross_attention_forward.1} parent=5 // pred_check_branch
      %224 = sbr.rel (%p221) target = $region44
    $region43: #{cross_attention_forward.1} parent=5 // pred_region
      %s225 = ssub.s32 %s12, 1
      %p226 = scmp.lt.s32.totalorder %s17, 1
      %s227 = scalar_select %p226, %s17, 1
      %s228 = smul.addr %s227, 8
      %s229 = scalar_lea.vmem %s0, %s228
      %p230 = pneg %p38
      %p231 = pneg %p35
      %p232 = scmp.lt.s32.totalorder %s17, 1
      %s233 = scalar_select %p232, %s17, 1
      %s234 = smul.addr %s233, 8
      %s235 = scalar_lea.vmem %s1, %s234
      %p236 = pneg %p64
      %p237 = pneg %p61
      %p238 = pneg %p85
      %p239 = pneg %p82
      %p240 = pneg %p106
      %p241 = pneg %p103
      %p242 = pneg %p127
      %p243 = pneg %p124
      %p244 = pneg %p148
      %p245 = pneg %p145
      %p246 = pneg %p174
      %p247 = pneg %p171
      %p248 = scmp.lt.s32.totalorder %s17, 1
      %s249 = scalar_select %p248, %s17, 1
      %s250 = smul.addr %s249, 8
      %s251 = scalar_lea.vmem %s6, %s250
      %p252 = scmp.lt.s32.totalorder %s17, 1
      %s253 = scalar_select %p252, %s17, 1
      %s254 = smul.addr %s253, 8
      %s255 = scalar_lea.vmem %s0, %s254
      %p256 = scmp.lt.s32.totalorder %s17, 1
      %s257 = scalar_select %p256, %s17, 1
      %s258 = smul.addr %s257, 8
      %s259 = scalar_lea.vmem %s1, %s258
      %p260 = scmp.lt.s32.totalorder %s17, 1
      %s261 = scalar_select %p260, %s17, 1
      %s262 = smul.addr %s261, 8
      %s263 = scalar_lea.vmem %s6, %s262
      %v265 = vld [vmem:[%s255] sm:$0xff]
      %v266 = vld [vmem:[%s259] sm:$0xff]
      %v267 = vld [vmem:[%s2] sm:$0xff]
      %v268 = vld [vmem:[%s2 + $0x8] sm:$0x1]
      %v269 = vld [vmem:[%s3] sm:$0xff]
      %v270 = vld [vmem:[%s3 + $0x8] sm:$0xff]
      %v271 = vld [vmem:[%s3 + $0x10] sm:$0xff]
      %v272 = vld [vmem:[%s4] sm:$0xf]
      %v273 = vld [vmem:[%s4 + $0x4] sm:$0xf]
      %v274 = vld [vmem:[%s4 + $0x8] sm:$0xf]
      %v275 = vld [vmem:[%s5] sm:$0xff]
      %v276 = vld [vmem:[%s5 + $0x8] sm:$0xff]
      %v277 = vld [vmem:[%s5 + $0x10] sm:$0xff]
      %278 = vrot.lane.b32.xlu0 %v265, 17
      %v279 = vpop.permute.xlu0 %278
      %v280 = vlaneseq
      %v281 = vshrl.u32 %v280, 7
      %v282 = vsub.s32 0, %v281
      %v283 = vrot.slane %v267, %v282
      %v284 = vmul.f32 %v279, %v283
      %285 = vrot.lane.b32.xlu0 %v265, 16
      %v286 = vpop.permute.xlu0 %285
      %v287 = vlaneseq
      %v288 = vshrl.u32 %v287, 7
      %v289 = vsub.s32 1, %v288
      %v290 = vrot.slane %v267, %v289
      %v291 = vmul.f32 %v286, %v290
      %292 = vrot.lane.b32.xlu0 %v265, 15
      %v293 = vpop.permute.xlu0 %292
      %v294 = vlaneseq
      %v295 = vshrl.u32 %v294, 7
      %v296 = vsub.s32 2, %v295
      %v297 = vrot.slane %v267, %v296
      %v298 = vmul.f32 %v293, %v297
      %299 = vrot.lane.b32.xlu0 %v265, 1
      %v300 = vpop.permute.xlu0 %299
      %v301 = vlaneseq
      %v302 = vshrl.u32 %v301, 7
      %v303 = vsub.s32 3, %v302
      %v304 = vrot.slane %v267, %v303
      %v305 = vmul.f32 %v300, %v304
      %306 = vrot.lane.b32.xlu0 %v265, 127
      %v307 = vpop.permute.xlu0 %306
      %v308 = vlaneseq
      %v309 = vshrl.u32 %v308, 7
      %v310 = vsub.s32 5, %v309
      %v311 = vrot.slane %v267, %v310
      %v312 = vmul.f32 %v307, %v311
      %313 = vrot.lane.b32.xlu0 %v265, 113
      %v314 = vpop.permute.xlu0 %313
      %v315 = vlaneseq
      %v316 = vshrl.u32 %v315, 7
      %v317 = vsub.s32 6, %v316
      %v318 = vrot.slane %v267, %v317
      %v319 = vmul.f32 %v314, %v318
      %320 = vrot.lane.b32.xlu0 %v265, 112
      %v321 = vpop.permute.xlu0 %320
      %v322 = vlaneseq
      %v323 = vshrl.u32 %v322, 7
      %v324 = vsub.s32 7, %v323
      %v325 = vrot.slane %v267, %v324
      %v326 = vmul.f32 %v321, %v325
      %327 = vrot.lane.b32.xlu0 %v265, 111
      %v328 = vpop.permute.xlu0 %327
      %v329 = vlaneseq
      %v330 = vshrl.u32 %v329, 7
      %v331 = vsub.s32 0, %v330
      %v332 = vrot.slane %v268, %v331
      %v333 = vmul.f32 %v328, %v332
      %334 = vrot.lane.b32.xlu0 %v266, 17
      %v335 = vpop.permute.xlu0 %334
      %v336 = vmul.f32 %v335, %v283
      %337 = vrot.lane.b32.xlu0 %v266, 16
      %v338 = vpop.permute.xlu0 %337
      %v339 = vmul.f32 %v338, %v290
      %340 = vrot.lane.b32.xlu0 %v266, 15
      %v341 = vpop.permute.xlu0 %340
      %v342 = vmul.f32 %v341, %v297
      %343 = vrot.lane.b32.xlu0 %v266, 1
      %v344 = vpop.permute.xlu0 %343
      %v345 = vmul.f32 %v344, %v304
      %346 = vrot.lane.b32.xlu0 %v266, 127
      %v347 = vpop.permute.xlu0 %346
      %v348 = vmul.f32 %v347, %v311
      %349 = vrot.lane.b32.xlu0 %v266, 113
      %v350 = vpop.permute.xlu0 %349
      %v351 = vmul.f32 %v350, %v318
      %352 = vrot.lane.b32.xlu0 %v266, 112
      %v353 = vpop.permute.xlu0 %352
      %v354 = vmul.f32 %v353, %v325
      %355 = vrot.lane.b32.xlu0 %v266, 111
      %v356 = vpop.permute.xlu0 %355
      %v357 = vmul.f32 %v356, %v332
      %359 = vset.pattern.permute.xlu0 0
      %360 = vperm.xlu0 %359, %v269
      %v361 = vpop.permute.xlu0 %360
      %v363 = vmul.f32 %v284, %v361
      %364 = vset.pattern.permute.xlu0 1
      %365 = vperm.xlu0 %364, %v269
      %v366 = vpop.permute.xlu0 %365
      %v368 = vmul.f32 %v291, %v366
      %v369 = vadd.f32 %v363, %v368
      %370 = vset.pattern.permute.xlu0 2
      %371 = vperm.xlu0 %370, %v269
      %v372 = vpop.permute.xlu0 %371
      %v374 = vmul.f32 %v298, %v372
      %v375 = vadd.f32 %v369, %v374
      %376 = vset.pattern.permute.xlu0 3
      %377 = vperm.xlu0 %376, %v269
      %v378 = vpop.permute.xlu0 %377
      %v380 = vmul.f32 %v305, %v378
      %v381 = vadd.f32 %v375, %v380
      %382 = vset.pattern.permute.xlu0 4
      %383 = vperm.xlu0 %382, %v269
      %v384 = vpop.permute.xlu0 %383
      %v386 = vmul.f32 %v265, %v384
      %v387 = vadd.f32 %v381, %v386
      %388 = vset.pattern.permute.xlu0 5
      %389 = vperm.xlu0 %388, %v269
      %v390 = vpop.permute.xlu0 %389
      %v392 = vmul.f32 %v312, %v390
      %v393 = vadd.f32 %v387, %v392
      %394 = vset.pattern.permute.xlu0 6
      %395 = vperm.xlu0 %394, %v269
      %v396 = vpop.permute.xlu0 %395
      %v398 = vmul.f32 %v319, %v396
      %v399 = vadd.f32 %v393, %v398
      %400 = vset.pattern.permute.xlu0 7
      %401 = vperm.xlu0 %400, %v269
      %v402 = vpop.permute.xlu0 %401
      %v404 = vmul.f32 %v326, %v402
      %v405 = vadd.f32 %v399, %v404
      %406 = vset.pattern.permute.xlu0 8
      %407 = vperm.xlu0 %406, %v269
      %v408 = vpop.permute.xlu0 %407
      %v410 = vmul.f32 %v333, %v408
      %v411 = vadd.f32 %v405, %v410
      %v412 = vpack.c.bf16 %v411, %v411
      %414 = vset.pattern.permute.xlu0 0
      %415 = vperm.xlu0 %414, %v275
      %v416 = vpop.permute.xlu0 %415
      %vm418 = vcmask 64512
      %v420 = vsel %vm418, %v272, 0
      %vm422 = vcmask 1043456
      %v424 = vsel %vm422, %v412, 0
      %426 = vmatprep.subr.bf16.mxu0 0
      %427 = vmatpush1.bf16.msra.mxu0 0
      %428 = vmatprep.subr.bf16.mxu0 0
      %429 = vmatpush1.bf16.msra.mxu0 0
      %430 = vmatprep.subr.bf16.mxu0 0
      %431 = vmatpush1.bf16.msra.mxu0 0
      %432 = vmatprep.subr.bf16.mxu0 0
      %433 = vmatpush1.bf16.msra.mxu0 0
      %434 = vmatprep.subr.bf16.mxu0 0
      %435 = vmatpush1.bf16.msra.mxu0 0
      %436 = vmatprep.subr.bf16.mxu0 0
      %437 = vmatpush1.bf16.msra.mxu0 0
      %438 = vmatprep.subr.bf16.mxu0 0
      %439 = vmatpush1.bf16.msra.mxu0 0
      %440 = vmatprep.subr.bf16.mxu0 0
      %441 = vmatpush1.bf16.msra.mxu0 %v424
      %442 = vmatprep.subr.bf16.mxu0 0
      %443 = vmatpush2.bf16.msra.mxu0 0
      %444 = vmatprep.subr.bf16.mxu0 0
      %445 = vmatpush2.bf16.msra.mxu0 0
      %446 = vmatprep.subr.bf16.mxu0 0
      %447 = vmatpush2.bf16.msra.mxu0 0
      %448 = vmatprep.subr.bf16.mxu0 0
      %449 = vmatpush2.bf16.msra.mxu0 0
      %450 = vmatprep.subr.bf16.mxu0 0
      %451 = vmatpush2.bf16.msra.mxu0 0
      %452 = vmatprep.subr.bf16.mxu0 0
      %453 = vmatpush2.bf16.msra.mxu0 0
      %454 = vmatprep.subr.bf16.mxu0 0
      %455 = vmatpush2.bf16.msra.mxu0 0
      %456 = vmatprep.subr.bf16.mxu0 0
      %457 = vmatpush2.bf16.msra.mxu0 0
      %458 = vmatprep.mubr.bf16.mxu0 0
      %459 = vmatmul.mubr.bf16.gmra.mxu0 %v420
      %v460 = vpop.f32.mrf.mxu0
      %v461 = vadd.f32 %v416, %v460
      %v462 = vpop.f32.mrf.mxu0
      %v463 = vpop.f32.mrf.mxu0
      %v464 = vpop.f32.mrf.mxu0
      %465 = vdwg.mxu0
      %467 = vset.pattern.permute.xlu0 0
      %468 = vperm.xlu0 %467, %v270
      %v469 = vpop.permute.xlu0 %468
      %v471 = vmul.f32 %v336, %v469
      %472 = vset.pattern.permute.xlu0 1
      %473 = vperm.xlu0 %472, %v270
      %v474 = vpop.permute.xlu0 %473
      %v476 = vmul.f32 %v339, %v474
      %v477 = vadd.f32 %v471, %v476
      %478 = vset.pattern.permute.xlu0 2
      %479 = vperm.xlu0 %478, %v270
      %v480 = vpop.permute.xlu0 %479
      %v482 = vmul.f32 %v342, %v480
      %v483 = vadd.f32 %v477, %v482
      %484 = vset.pattern.permute.xlu0 3
      %485 = vperm.xlu0 %484, %v270
      %v486 = vpop.permute.xlu0 %485
      %v488 = vmul.f32 %v345, %v486
      %v489 = vadd.f32 %v483, %v488
      %490 = vset.pattern.permute.xlu0 4
      %491 = vperm.xlu0 %490, %v270
      %v492 = vpop.permute.xlu0 %491
      %v494 = vmul.f32 %v266, %v492
      %v495 = vadd.f32 %v489, %v494
      %496 = vset.pattern.permute.xlu0 5
      %497 = vperm.xlu0 %496, %v270
      %v498 = vpop.permute.xlu0 %497
      %v500 = vmul.f32 %v348, %v498
      %v501 = vadd.f32 %v495, %v500
      %502 = vset.pattern.permute.xlu0 6
      %503 = vperm.xlu0 %502, %v270
      %v504 = vpop.permute.xlu0 %503
      %v506 = vmul.f32 %v351, %v504
      %v507 = vadd.f32 %v501, %v506
      %508 = vset.pattern.permute.xlu0 7
      %509 = vperm.xlu0 %508, %v270
      %v510 = vpop.permute.xlu0 %509
      %v512 = vmul.f32 %v354, %v510
      %v513 = vadd.f32 %v507, %v512
      %514 = vset.pattern.permute.xlu0 8
      %515 = vperm.xlu0 %514, %v270
      %v516 = vpop.permute.xlu0 %515
      %v518 = vmul.f32 %v357, %v516
      %v519 = vadd.f32 %v513, %v518
      %v520 = vpack.c.bf16 %v519, %v519
      %522 = vset.pattern.permute.xlu0 0
      %523 = vperm.xlu0 %522, %v276
      %v524 = vpop.permute.xlu0 %523
      %v527 = vsel %vm418, %v273, 0
      %v530 = vsel %vm422, %v520, 0
      %532 = vmatprep.subr.bf16.mxu0 0
      %533 = vmatpush1.bf16.msra.mxu0 0
      %534 = vmatprep.subr.bf16.mxu0 0
      %535 = vmatpush1.bf16.msra.mxu0 0
      %536 = vmatprep.subr.bf16.mxu0 0
      %537 = vmatpush1.bf16.msra.mxu0 0
      %538 = vmatprep.subr.bf16.mxu0 0
      %539 = vmatpush1.bf16.msra.mxu0 0
      %540 = vmatprep.subr.bf16.mxu0 0
      %541 = vmatpush1.bf16.msra.mxu0 0
      %542 = vmatprep.subr.bf16.mxu0 0
      %543 = vmatpush1.bf16.msra.mxu0 0
      %544 = vmatprep.subr.bf16.mxu0 0
      %545 = vmatpush1.bf16.msra.mxu0 0
      %546 = vmatprep.subr.bf16.mxu0 0
      %547 = vmatpush1.bf16.msra.mxu0 %v530
      %548 = vmatprep.subr.bf16.mxu0 0
      %549 = vmatpush2.bf16.msra.mxu0 0
      %550 = vmatprep.subr.bf16.mxu0 0
      %551 = vmatpush2.bf16.msra.mxu0 0
      %552 = vmatprep.subr.bf16.mxu0 0
      %553 = vmatpush2.bf16.msra.mxu0 0
      %554 = vmatprep.subr.bf16.mxu0 0
      %555 = vmatpush2.bf16.msra.mxu0 0
      %556 = vmatprep.subr.bf16.mxu0 0
      %557 = vmatpush2.bf16.msra.mxu0 0
      %558 = vmatprep.subr.bf16.mxu0 0
      %559 = vmatpush2.bf16.msra.mxu0 0
      %560 = vmatprep.subr.bf16.mxu0 0
      %561 = vmatpush2.bf16.msra.mxu0 0
      %562 = vmatprep.subr.bf16.mxu0 0
      %563 = vmatpush2.bf16.msra.mxu0 0
      %564 = vmatprep.mubr.bf16.mxu0 0
      %565 = vmatmul.mubr.bf16.gmra.mxu0 %v527
      %v566 = vpop.f32.mrf.mxu0
      %v567 = vadd.f32 %v524, %v566
      %v568 = vpop.f32.mrf.mxu0
      %v569 = vpop.f32.mrf.mxu0
      %v570 = vpop.f32.mrf.mxu0
      %571 = vdwg.mxu0
      %573 = vset.pattern.permute.xlu0 0
      %574 = vperm.xlu0 %573, %v271
      %v575 = vpop.permute.xlu0 %574
      %v577 = vmul.f32 %v336, %v575
      %578 = vset.pattern.permute.xlu0 1
      %579 = vperm.xlu0 %578, %v271
      %v580 = vpop.permute.xlu0 %579
      %v582 = vmul.f32 %v339, %v580
      %v583 = vadd.f32 %v577, %v582
      %584 = vset.pattern.permute.xlu0 2
      %585 = vperm.xlu0 %584, %v271
      %v586 = vpop.permute.xlu0 %585
      %v588 = vmul.f32 %v342, %v586
      %v589 = vadd.f32 %v583, %v588
      %590 = vset.pattern.permute.xlu0 3
      %591 = vperm.xlu0 %590, %v271
      %v592 = vpop.permute.xlu0 %591
      %v594 = vmul.f32 %v345, %v592
      %v595 = vadd.f32 %v589, %v594
      %596 = vset.pattern.permute.xlu0 4
      %597 = vperm.xlu0 %596, %v271
      %v598 = vpop.permute.xlu0 %597
      %v600 = vmul.f32 %v266, %v598
      %v601 = vadd.f32 %v595, %v600
      %602 = vset.pattern.permute.xlu0 5
      %603 = vperm.xlu0 %602, %v271
      %v604 = vpop.permute.xlu0 %603
      %v606 = vmul.f32 %v348, %v604
      %v607 = vadd.f32 %v601, %v606
      %608 = vset.pattern.permute.xlu0 6
      %609 = vperm.xlu0 %608, %v271
      %v610 = vpop.permute.xlu0 %609
      %v612 = vmul.f32 %v351, %v610
      %v613 = vadd.f32 %v607, %v612
      %614 = vset.pattern.permute.xlu0 7
      %615 = vperm.xlu0 %614, %v271
      %v616 = vpop.permute.xlu0 %615
      %v618 = vmul.f32 %v354, %v616
      %v619 = vadd.f32 %v613, %v618
      %620 = vset.pattern.permute.xlu0 8
      %621 = vperm.xlu0 %620, %v271
      %v622 = vpop.permute.xlu0 %621
      %v624 = vmul.f32 %v357, %v622
      %v625 = vadd.f32 %v619, %v624
      %v626 = vpack.c.bf16 %v625, %v625
      %628 = vset.pattern.permute.xlu0 0
      %629 = vperm.xlu0 %628, %v277
      %v630 = vpop.permute.xlu0 %629
      %v633 = vsel %vm418, %v274, 0
      %v636 = vsel %vm422, %v626, 0
      %638 = vmatprep.subr.bf16.mxu0 0
      %639 = vmatpush1.bf16.msra.mxu0 0
      %640 = vmatprep.subr.bf16.mxu0 0
      %641 = vmatpush1.bf16.msra.mxu0 0
      %642 = vmatprep.subr.bf16.mxu0 0
      %643 = vmatpush1.bf16.msra.mxu0 0
      %644 = vmatprep.subr.bf16.mxu0 0
      %645 = vmatpush1.bf16.msra.mxu0 0
      %646 = vmatprep.subr.bf16.mxu0 0
      %647 = vmatpush1.bf16.msra.mxu0 0
      %648 = vmatprep.subr.bf16.mxu0 0
      %649 = vmatpush1.bf16.msra.mxu0 0
      %650 = vmatprep.subr.bf16.mxu0 0
      %651 = vmatpush1.bf16.msra.mxu0 0
      %652 = vmatprep.subr.bf16.mxu0 0
      %653 = vmatpush1.bf16.msra.mxu0 %v636
      %654 = vmatprep.subr.bf16.mxu0 0
      %655 = vmatpush2.bf16.msra.mxu0 0
      %656 = vmatprep.subr.bf16.mxu0 0
      %657 = vmatpush2.bf16.msra.mxu0 0
      %658 = vmatprep.subr.bf16.mxu0 0
      %659 = vmatpush2.bf16.msra.mxu0 0
      %660 = vmatprep.subr.bf16.mxu0 0
      %661 = vmatpush2.bf16.msra.mxu0 0
      %662 = vmatprep.subr.bf16.mxu0 0
      %663 = vmatpush2.bf16.msra.mxu0 0
      %664 = vmatprep.subr.bf16.mxu0 0
      %665 = vmatpush2.bf16.msra.mxu0 0
      %666 = vmatprep.subr.bf16.mxu0 0
      %667 = vmatpush2.bf16.msra.mxu0 0
      %668 = vmatprep.subr.bf16.mxu0 0
      %669 = vmatpush2.bf16.msra.mxu0 0
      %670 = vmatprep.mubr.bf16.mxu0 0
      %671 = vmatmul.mubr.bf16.gmra.mxu0 %v633
      %v672 = vpop.f32.mrf.mxu0
      %v673 = vadd.f32 %v630, %v672
      %v674 = vpop.f32.mrf.mxu0
      %v675 = vpop.f32.mrf.mxu0
      %v676 = vpop.f32.mrf.mxu0
      %677 = vdwg.mxu0
      %679 = vrot.lane.b32.xlu0 %v461, 112
      %v680 = vpop.permute.xlu0 %679
      %682 = vrot.lane.b32.xlu0 %v461, 96
      %v683 = vpop.permute.xlu0 %682
      %685 = vrot.lane.b32.xlu0 %v461, 80
      %v686 = vpop.permute.xlu0 %685
      %688 = vrot.lane.b32.xlu0 %v461, 64
      %v689 = vpop.permute.xlu0 %688
      %691 = vrot.lane.b32.xlu0 %v461, 48
      %v692 = vpop.permute.xlu0 %691
      %694 = vrot.lane.b32.xlu0 %v461, 32
      %v695 = vpop.permute.xlu0 %694
      %697 = vrot.lane.b32.xlu0 %v461, 16
      %v698 = vpop.permute.xlu0 %697
      %v700 = vcombine.low %v461, %v683
      %v701 = vcombine.high %v461, %v683
      %v703 = vunpack.c.l.s4 1983009808
      %v704 = vunpack.c.0.s8 %v703
      %v705 = vlaneseq
      %v706 = vshrl.u32 %v705, 7
      %v707 = vsub.s32 %v704, %v706
      %v708 = vrot.slane %v700, %v707
      %v710 = vunpack.c.l.s4 1983009808
      %v711 = vunpack.c.0.s8 %v710
      %v712 = vlaneseq
      %v713 = vshrl.u32 %v712, 7
      %v714 = vsub.s32 %v711, %v713
      %v715 = vrot.slane %v701, %v714
      %v716 = vcombine.low %v680, %v686
      %v717 = vcombine.high %v680, %v686
      %v719 = vunpack.c.l.s4 1983009808
      %v720 = vunpack.c.0.s8 %v719
      %v721 = vlaneseq
      %v722 = vshrl.u32 %v721, 7
      %v723 = vsub.s32 %v720, %v722
      %v724 = vrot.slane %v716, %v723
      %v726 = vunpack.c.l.s4 1983009808
      %v727 = vunpack.c.0.s8 %v726
      %v728 = vlaneseq
      %v729 = vshrl.u32 %v728, 7
      %v730 = vsub.s32 %v727, %v729
      %v731 = vrot.slane %v717, %v730
      %v732 = vcombine.low %v689, %v695
      %v733 = vcombine.high %v689, %v695
      %v735 = vunpack.c.l.s4 1983009808
      %v736 = vunpack.c.0.s8 %v735
      %v737 = vlaneseq
      %v738 = vshrl.u32 %v737, 7
      %v739 = vsub.s32 %v736, %v738
      %v740 = vrot.slane %v732, %v739
      %v742 = vunpack.c.l.s4 1983009808
      %v743 = vunpack.c.0.s8 %v742
      %v744 = vlaneseq
      %v745 = vshrl.u32 %v744, 7
      %v746 = vsub.s32 %v743, %v745
      %v747 = vrot.slane %v733, %v746
      %v748 = vcombine.low %v692, %v698
      %v749 = vcombine.high %v692, %v698
      %v751 = vunpack.c.l.s4 1983009808
      %v752 = vunpack.c.0.s8 %v751
      %v753 = vlaneseq
      %v754 = vshrl.u32 %v753, 7
      %v755 = vsub.s32 %v752, %v754
      %v756 = vrot.slane %v748, %v755
      %v758 = vunpack.c.l.s4 1983009808
      %v759 = vunpack.c.0.s8 %v758
      %v760 = vlaneseq
      %v761 = vshrl.u32 %v760, 7
      %v762 = vsub.s32 %v759, %v761
      %v763 = vrot.slane %v749, %v762
      %v764 = vcombine.low %v708, %v724
      %v765 = vcombine.high %v708, %v724
      %v767 = vunpack.c.l.s4 1934713408
      %v768 = vunpack.c.0.s8 %v767
      %v769 = vlaneseq
      %v770 = vshrl.u32 %v769, 7
      %v771 = vsub.s32 %v768, %v770
      %v772 = vrot.slane %v764, %v771
      %v774 = vunpack.c.l.s4 1934713408
      %v775 = vunpack.c.0.s8 %v774
      %v776 = vlaneseq
      %v777 = vshrl.u32 %v776, 7
      %v778 = vsub.s32 %v775, %v777
      %v779 = vrot.slane %v765, %v778
      %v780 = vcombine.low %v715, %v731
      %v781 = vcombine.high %v715, %v731
      %v783 = vunpack.c.l.s4 1934713408
      %v784 = vunpack.c.0.s8 %v783
      %v785 = vlaneseq
      %v786 = vshrl.u32 %v785, 7
      %v787 = vsub.s32 %v784, %v786
      %v788 = vrot.slane %v780, %v787
      %v790 = vunpack.c.l.s4 1934713408
      %v791 = vunpack.c.0.s8 %v790
      %v792 = vlaneseq
      %v793 = vshrl.u32 %v792, 7
      %v794 = vsub.s32 %v791, %v793
      %v795 = vrot.slane %v781, %v794
      %v796 = vcombine.low %v740, %v756
      %v797 = vcombine.high %v740, %v756
      %v799 = vunpack.c.l.s4 1934713408
      %v800 = vunpack.c.0.s8 %v799
      %v801 = vlaneseq
      %v802 = vshrl.u32 %v801, 7
      %v803 = vsub.s32 %v800, %v802
      %v804 = vrot.slane %v796, %v803
      %v806 = vunpack.c.l.s4 1934713408
      %v807 = vunpack.c.0.s8 %v806
      %v808 = vlaneseq
      %v809 = vshrl.u32 %v808, 7
      %v810 = vsub.s32 %v807, %v809
      %v811 = vrot.slane %v797, %v810
      %v812 = vcombine.low %v747, %v763
      %v813 = vcombine.high %v747, %v763
      %v815 = vunpack.c.l.s4 1934713408
      %v816 = vunpack.c.0.s8 %v815
      %v817 = vlaneseq
      %v818 = vshrl.u32 %v817, 7
      %v819 = vsub.s32 %v816, %v818
      %v820 = vrot.slane %v812, %v819
      %v822 = vunpack.c.l.s4 1934713408
      %v823 = vunpack.c.0.s8 %v822
      %v824 = vlaneseq
      %v825 = vshrl.u32 %v824, 7
      %v826 = vsub.s32 %v823, %v825
      %v827 = vrot.slane %v813, %v826
      %v828 = vcombine.low %v772, %v804
      %v829 = vcombine.high %v772, %v804
      %v830 = vcombine.low %v779, %v811
      %v831 = vcombine.high %v779, %v811
      %v832 = vcombine.low %v788, %v820
      %v833 = vcombine.high %v788, %v820
      %v834 = vcombine.low %v795, %v827
      %v835 = vcombine.high %v795, %v827
      %v836 = vpack.c.bf16 %v828, %v828
      %v837 = vpack.c.bf16 %v829, %v829
      %v838 = vpack.c.bf16 %v830, %v830
      %v839 = vpack.c.bf16 %v831, %v831
      %v840 = vpack.c.bf16 %v832, %v832
      %v841 = vpack.c.bf16 %v833, %v833
      %v842 = vpack.c.bf16 %v834, %v834
      %v843 = vpack.c.bf16 %v835, %v835
      %845 = vrot.lane.b32.xlu0 %v567, 112
      %v846 = vpop.permute.xlu0 %845
      %848 = vrot.lane.b32.xlu0 %v567, 96
      %v849 = vpop.permute.xlu0 %848
      %851 = vrot.lane.b32.xlu0 %v567, 80
      %v852 = vpop.permute.xlu0 %851
      %854 = vrot.lane.b32.xlu0 %v567, 64
      %v855 = vpop.permute.xlu0 %854
      %857 = vrot.lane.b32.xlu0 %v567, 48
      %v858 = vpop.permute.xlu0 %857
      %860 = vrot.lane.b32.xlu0 %v567, 32
      %v861 = vpop.permute.xlu0 %860
      %863 = vrot.lane.b32.xlu0 %v567, 16
      %v864 = vpop.permute.xlu0 %863
      %v866 = vcombine.low %v567, %v849
      %v867 = vcombine.high %v567, %v849
      %v869 = vunpack.c.l.s4 1983009808
      %v870 = vunpack.c.0.s8 %v869
      %v871 = vlaneseq
      %v872 = vshrl.u32 %v871, 7
      %v873 = vsub.s32 %v870, %v872
      %v874 = vrot.slane %v866, %v873
      %v876 = vunpack.c.l.s4 1983009808
      %v877 = vunpack.c.0.s8 %v876
      %v878 = vlaneseq
      %v879 = vshrl.u32 %v878, 7
      %v880 = vsub.s32 %v877, %v879
      %v881 = vrot.slane %v867, %v880
      %v882 = vcombine.low %v846, %v852
      %v883 = vcombine.high %v846, %v852
      %v885 = vunpack.c.l.s4 1983009808
      %v886 = vunpack.c.0.s8 %v885
      %v887 = vlaneseq
      %v888 = vshrl.u32 %v887, 7
      %v889 = vsub.s32 %v886, %v888
      %v890 = vrot.slane %v882, %v889
      %v892 = vunpack.c.l.s4 1983009808
      %v893 = vunpack.c.0.s8 %v892
      %v894 = vlaneseq
      %v895 = vshrl.u32 %v894, 7
      %v896 = vsub.s32 %v893, %v895
      %v897 = vrot.slane %v883, %v896
      %v898 = vcombine.low %v855, %v861
      %v899 = vcombine.high %v855, %v861
      %v901 = vunpack.c.l.s4 1983009808
      %v902 = vunpack.c.0.s8 %v901
      %v903 = vlaneseq
      %v904 = vshrl.u32 %v903, 7
      %v905 = vsub.s32 %v902, %v904
      %v906 = vrot.slane %v898, %v905
      %v908 = vunpack.c.l.s4 1983009808
      %v909 = vunpack.c.0.s8 %v908
      %v910 = vlaneseq
      %v911 = vshrl.u32 %v910, 7
      %v912 = vsub.s32 %v909, %v911
      %v913 = vrot.slane %v899, %v912
      %v914 = vcombine.low %v858, %v864
      %v915 = vcombine.high %v858, %v864
      %v917 = vunpack.c.l.s4 1983009808
      %v918 = vunpack.c.0.s8 %v917
      %v919 = vlaneseq
      %v920 = vshrl.u32 %v919, 7
      %v921 = vsub.s32 %v918, %v920
      %v922 = vrot.slane %v914, %v921
      %v924 = vunpack.c.l.s4 1983009808
      %v925 = vunpack.c.0.s8 %v924
      %v926 = vlaneseq
      %v927 = vshrl.u32 %v926, 7
      %v928 = vsub.s32 %v925, %v927
      %v929 = vrot.slane %v915, %v928
      %v930 = vcombine.low %v874, %v890
      %v931 = vcombine.high %v874, %v890
      %v933 = vunpack.c.l.s4 1934713408
      %v934 = vunpack.c.0.s8 %v933
      %v935 = vlaneseq
      %v936 = vshrl.u32 %v935, 7
      %v937 = vsub.s32 %v934, %v936
      %v938 = vrot.slane %v930, %v937
      %v940 = vunpack.c.l.s4 1934713408
      %v941 = vunpack.c.0.s8 %v940
      %v942 = vlaneseq
      %v943 = vshrl.u32 %v942, 7
      %v944 = vsub.s32 %v941, %v943
      %v945 = vrot.slane %v931, %v944
      %v946 = vcombine.low %v881, %v897
      %v947 = vcombine.high %v881, %v897
      %v949 = vunpack.c.l.s4 1934713408
      %v950 = vunpack.c.0.s8 %v949
      %v951 = vlaneseq
      %v952 = vshrl.u32 %v951, 7
      %v953 = vsub.s32 %v950, %v952
      %v954 = vrot.slane %v946, %v953
      %v956 = vunpack.c.l.s4 1934713408
      %v957 = vunpack.c.0.s8 %v956
      %v958 = vlaneseq
      %v959 = vshrl.u32 %v958, 7
      %v960 = vsub.s32 %v957, %v959
      %v961 = vrot.slane %v947, %v960
      %v962 = vcombine.low %v906, %v922
      %v963 = vcombine.high %v906, %v922
      %v965 = vunpack.c.l.s4 1934713408
      %v966 = vunpack.c.0.s8 %v965
      %v967 = vlaneseq
      %v968 = vshrl.u32 %v967, 7
      %v969 = vsub.s32 %v966, %v968
      %v970 = vrot.slane %v962, %v969
      %v972 = vunpack.c.l.s4 1934713408
      %v973 = vunpack.c.0.s8 %v972
      %v974 = vlaneseq
      %v975 = vshrl.u32 %v974, 7
      %v976 = vsub.s32 %v973, %v975
      %v977 = vrot.slane %v963, %v976
      %v978 = vcombine.low %v913, %v929
      %v979 = vcombine.high %v913, %v929
      %v981 = vunpack.c.l.s4 1934713408
      %v982 = vunpack.c.0.s8 %v981
      %v983 = vlaneseq
      %v984 = vshrl.u32 %v983, 7
      %v985 = vsub.s32 %v982, %v984
      %v986 = vrot.slane %v978, %v985
      %v988 = vunpack.c.l.s4 1934713408
      %v989 = vunpack.c.0.s8 %v988
      %v990 = vlaneseq
      %v991 = vshrl.u32 %v990, 7
      %v992 = vsub.s32 %v989, %v991
      %v993 = vrot.slane %v979, %v992
      %v994 = vcombine.low %v938, %v970
      %v995 = vcombine.high %v938, %v970
      %v996 = vcombine.low %v945, %v977
      %v997 = vcombine.high %v945, %v977
      %v998 = vcombine.low %v954, %v986
      %v999 = vcombine.high %v954, %v986
      %v1000 = vcombine.low %v961, %v993
      %v1001 = vcombine.high %v961, %v993
      %v1002 = vpack.c.bf16 %v994, %v994
      %v1003 = vpack.c.bf16 %v995, %v995
      %v1004 = vpack.c.bf16 %v996, %v996
      %v1005 = vpack.c.bf16 %v997, %v997
      %v1006 = vpack.c.bf16 %v998, %v998
      %v1007 = vpack.c.bf16 %v999, %v999
      %v1008 = vpack.c.bf16 %v1000, %v1000
      %v1009 = vpack.c.bf16 %v1001, %v1001
      %1011 = vrot.lane.b32.xlu0 %v673, 112
      %v1012 = vpop.permute.xlu0 %1011
      %1014 = vrot.lane.b32.xlu0 %v673, 96
      %v1015 = vpop.permute.xlu0 %1014
      %1017 = vrot.lane.b32.xlu0 %v673, 80
      %v1018 = vpop.permute.xlu0 %1017
      %1020 = vrot.lane.b32.xlu0 %v673, 64
      %v1021 = vpop.permute.xlu0 %1020
      %1023 = vrot.lane.b32.xlu0 %v673, 48
      %v1024 = vpop.permute.xlu0 %1023
      %1026 = vrot.lane.b32.xlu0 %v673, 32
      %v1027 = vpop.permute.xlu0 %1026
      %1029 = vrot.lane.b32.xlu0 %v673, 16
      %v1030 = vpop.permute.xlu0 %1029
      %v1032 = vcombine.low %v673, %v1015
      %v1033 = vcombine.high %v673, %v1015
      %v1035 = vunpack.c.l.s4 1983009808
      %v1036 = vunpack.c.0.s8 %v1035
      %v1037 = vlaneseq
      %v1038 = vshrl.u32 %v1037, 7
      %v1039 = vsub.s32 %v1036, %v1038
      %v1040 = vrot.slane %v1032, %v1039
      %v1042 = vunpack.c.l.s4 1983009808
      %v1043 = vunpack.c.0.s8 %v1042
      %v1044 = vlaneseq
      %v1045 = vshrl.u32 %v1044, 7
      %v1046 = vsub.s32 %v1043, %v1045
      %v1047 = vrot.slane %v1033, %v1046
      %v1048 = vcombine.low %v1012, %v1018
      %v1049 = vcombine.high %v1012, %v1018
      %v1051 = vunpack.c.l.s4 1983009808
      %v1052 = vunpack.c.0.s8 %v1051
      %v1053 = vlaneseq
      %v1054 = vshrl.u32 %v1053, 7
      %v1055 = vsub.s32 %v1052, %v1054
      %v1056 = vrot.slane %v1048, %v1055
      %v1058 = vunpack.c.l.s4 1983009808
      %v1059 = vunpack.c.0.s8 %v1058
      %v1060 = vlaneseq
      %v1061 = vshrl.u32 %v1060, 7
      %v1062 = vsub.s32 %v1059, %v1061
      %v1063 = vrot.slane %v1049, %v1062
      %v1064 = vcombine.low %v1021, %v1027
      %v1065 = vcombine.high %v1021, %v1027
      %v1067 = vunpack.c.l.s4 1983009808
      %v1068 = vunpack.c.0.s8 %v1067
      %v1069 = vlaneseq
      %v1070 = vshrl.u32 %v1069, 7
      %v1071 = vsub.s32 %v1068, %v1070
      %v1072 = vrot.slane %v1064, %v1071
      %v1074 = vunpack.c.l.s4 1983009808
      %v1075 = vunpack.c.0.s8 %v1074
      %v1076 = vlaneseq
      %v1077 = vshrl.u32 %v1076, 7
      %v1078 = vsub.s32 %v1075, %v1077
      %v1079 = vrot.slane %v1065, %v1078
      %v1080 = vcombine.low %v1024, %v1030
      %v1081 = vcombine.high %v1024, %v1030
      %v1083 = vunpack.c.l.s4 1983009808
      %v1084 = vunpack.c.0.s8 %v1083
      %v1085 = vlaneseq
      %v1086 = vshrl.u32 %v1085, 7
      %v1087 = vsub.s32 %v1084, %v1086
      %v1088 = vrot.slane %v1080, %v1087
      %v1090 = vunpack.c.l.s4 1983009808
      %v1091 = vunpack.c.0.s8 %v1090
      %v1092 = vlaneseq
      %v1093 = vshrl.u32 %v1092, 7
      %v1094 = vsub.s32 %v1091, %v1093
      %v1095 = vrot.slane %v1081, %v1094
      %v1096 = vcombine.low %v1040, %v1056
      %v1097 = vcombine.high %v1040, %v1056
      %v1099 = vunpack.c.l.s4 1934713408
      %v1100 = vunpack.c.0.s8 %v1099
      %v1101 = vlaneseq
      %v1102 = vshrl.u32 %v1101, 7
      %v1103 = vsub.s32 %v1100, %v1102
      %v1104 = vrot.slane %v1096, %v1103
      %v1106 = vunpack.c.l.s4 1934713408
      %v1107 = vunpack.c.0.s8 %v1106
      %v1108 = vlaneseq
      %v1109 = vshrl.u32 %v1108, 7
      %v1110 = vsub.s32 %v1107, %v1109
      %v1111 = vrot.slane %v1097, %v1110
      %v1112 = vcombine.low %v1047, %v1063
      %v1113 = vcombine.high %v1047, %v1063
      %v1115 = vunpack.c.l.s4 1934713408
      %v1116 = vunpack.c.0.s8 %v1115
      %v1117 = vlaneseq
      %v1118 = vshrl.u32 %v1117, 7
      %v1119 = vsub.s32 %v1116, %v1118
      %v1120 = vrot.slane %v1112, %v1119
      %v1122 = vunpack.c.l.s4 1934713408
      %v1123 = vunpack.c.0.s8 %v1122
      %v1124 = vlaneseq
      %v1125 = vshrl.u32 %v1124, 7
      %v1126 = vsub.s32 %v1123, %v1125
      %v1127 = vrot.slane %v1113, %v1126
      %v1128 = vcombine.low %v1072, %v1088
      %v1129 = vcombine.high %v1072, %v1088
      %v1131 = vunpack.c.l.s4 1934713408
      %v1132 = vunpack.c.0.s8 %v1131
      %v1133 = vlaneseq
      %v1134 = vshrl.u32 %v1133, 7
      %v1135 = vsub.s32 %v1132, %v1134
      %v1136 = vrot.slane %v1128, %v1135
      %v1138 = vunpack.c.l.s4 1934713408
      %v1139 = vunpack.c.0.s8 %v1138
      %v1140 = vlaneseq
      %v1141 = vshrl.u32 %v1140, 7
      %v1142 = vsub.s32 %v1139, %v1141
      %v1143 = vrot.slane %v1129, %v1142
      %v1144 = vcombine.low %v1079, %v1095
      %v1145 = vcombine.high %v1079, %v1095
      %v1147 = vunpack.c.l.s4 1934713408
      %v1148 = vunpack.c.0.s8 %v1147
      %v1149 = vlaneseq
      %v1150 = vshrl.u32 %v1149, 7
      %v1151 = vsub.s32 %v1148, %v1150
      %v1152 = vrot.slane %v1144, %v1151
      %v1154 = vunpack.c.l.s4 1934713408
      %v1155 = vunpack.c.0.s8 %v1154
      %v1156 = vlaneseq
      %v1157 = vshrl.u32 %v1156, 7
      %v1158 = vsub.s32 %v1155, %v1157
      %v1159 = vrot.slane %v1145, %v1158
      %v1160 = vcombine.low %v1104, %v1136
      %v1161 = vcombine.high %v1104, %v1136
      %v1162 = vcombine.low %v1111, %v1143
      %v1163 = vcombine.high %v1111, %v1143
      %v1164 = vcombine.low %v1120, %v1152
      %v1165 = vcombine.high %v1120, %v1152
      %v1166 = vcombine.low %v1127, %v1159
      %v1167 = vcombine.high %v1127, %v1159
      %v1168 = vpack.c.bf16 %v1160, %v1160
      %v1169 = vpack.c.bf16 %v1161, %v1161
      %v1170 = vpack.c.bf16 %v1162, %v1162
      %v1171 = vpack.c.bf16 %v1163, %v1163
      %v1172 = vpack.c.bf16 %v1164, %v1164
      %v1173 = vpack.c.bf16 %v1165, %v1165
      %v1174 = vpack.c.bf16 %v1166, %v1166
      %v1175 = vpack.c.bf16 %v1167, %v1167
      %v1176 = vcombine.low %v836, %v840
      %v1178 = vunpack.c.l.s4 1983009808
      %v1179 = vunpack.c.0.s8 %v1178
      %v1180 = vlaneseq
      %v1181 = vshrl.u32 %v1180, 7
      %v1182 = vsub.s32 %v1179, %v1181
      %v1183 = vrot.slane %v1176, %v1182
      %v1184 = vcombine.low %v838, %v842
      %v1186 = vunpack.c.l.s4 1983009808
      %v1187 = vunpack.c.0.s8 %v1186
      %v1188 = vlaneseq
      %v1189 = vshrl.u32 %v1188, 7
      %v1190 = vsub.s32 %v1187, %v1189
      %v1191 = vrot.slane %v1184, %v1190
      %v1192 = vcombine.low %v1183, %v1191
      %v1193 = vcombine.high %v1183, %v1191
      %v1195 = vunpack.c.l.s4 1934713408
      %v1196 = vunpack.c.0.s8 %v1195
      %v1197 = vlaneseq
      %v1198 = vshrl.u32 %v1197, 7
      %v1199 = vsub.s32 %v1196, %v1198
      %v1200 = vrot.slane %v1192, %v1199
      %v1202 = vunpack.c.l.s4 1934713408
      %v1203 = vunpack.c.0.s8 %v1202
      %v1204 = vlaneseq
      %v1205 = vshrl.u32 %v1204, 7
      %v1206 = vsub.s32 %v1203, %v1205
      %v1207 = vrot.slane %v1193, %v1206
      %v1208 = vcombine.high %v1200, 0
      %v1209 = vcombine.high %v1207, 0
      %v1210 = vcombine.low %v837, %v841
      %v1212 = vunpack.c.l.s4 1983009808
      %v1213 = vunpack.c.0.s8 %v1212
      %v1214 = vlaneseq
      %v1215 = vshrl.u32 %v1214, 7
      %v1216 = vsub.s32 %v1213, %v1215
      %v1217 = vrot.slane %v1210, %v1216
      %v1218 = vcombine.low %v839, %v843
      %v1220 = vunpack.c.l.s4 1983009808
      %v1221 = vunpack.c.0.s8 %v1220
      %v1222 = vlaneseq
      %v1223 = vshrl.u32 %v1222, 7
      %v1224 = vsub.s32 %v1221, %v1223
      %v1225 = vrot.slane %v1218, %v1224
      %v1226 = vcombine.low %v1217, %v1225
      %v1227 = vcombine.high %v1217, %v1225
      %v1229 = vunpack.c.l.s4 1934713408
      %v1230 = vunpack.c.0.s8 %v1229
      %v1231 = vlaneseq
      %v1232 = vshrl.u32 %v1231, 7
      %v1233 = vsub.s32 %v1230, %v1232
      %v1234 = vrot.slane %v1226, %v1233
      %v1236 = vunpack.c.l.s4 1934713408
      %v1237 = vunpack.c.0.s8 %v1236
      %v1238 = vlaneseq
      %v1239 = vshrl.u32 %v1238, 7
      %v1240 = vsub.s32 %v1237, %v1239
      %v1241 = vrot.slane %v1227, %v1240
      %v1242 = vcombine.high %v1234, 0
      %v1243 = vcombine.high %v1241, 0
      %v1246 = vpack.i.b16 %v1234, %v1200
      %v1247 = vshrl.u32 %v1200, 16
      %v1248 = vshrl.u32 %v1234, 16
      %v1249 = vpack.i.b16 %v1248, %v1247
      %v1252 = vpack.i.b16 %v1242, %v1208
      %v1253 = vshrl.u32 %v1208, 16
      %v1254 = vshrl.u32 %v1242, 16
      %v1255 = vpack.i.b16 %v1254, %v1253
      %v1258 = vpack.i.b16 %v1241, %v1207
      %v1259 = vshrl.u32 %v1207, 16
      %v1260 = vshrl.u32 %v1241, 16
      %v1261 = vpack.i.b16 %v1260, %v1259
      %v1264 = vpack.i.b16 %v1243, %v1209
      %v1265 = vshrl.u32 %v1209, 16
      %v1266 = vshrl.u32 %v1243, 16
      %v1267 = vpack.i.b16 %v1266, %v1265
      %1268 = vxpose.xlu0.c.b16.start [1/8] %v1002, 128
      %1269 = vxpose.xlu0.c.b16.cont [2/8] 0, 128
      %1270 = vxpose.xlu0.c.b16.cont [3/8] 0, 128
      %1271 = vxpose.xlu0.c.b16.cont [4/8] 0, 128
      %1272 = vxpose.xlu0.c.b16.cont [5/8] 0, 128
      %1273 = vxpose.xlu0.c.b16.cont [6/8] 0, 128
      %1274 = vxpose.xlu0.c.b16.cont [7/8] 0, 128
      %1275 = vxpose.xlu0.c.b16.end [8/8] 0, 128
      %v1276 = vpop.trf.xlu0
      %v1277 = vpop.trf.xlu0
      %v1278 = vpop.trf.xlu0
      %v1279 = vpop.trf.xlu0
      %v1280 = vpop.trf.xlu0
      %v1281 = vpop.trf.xlu0
      %v1282 = vpop.trf.xlu0
      %v1283 = vpop.trf.xlu0
      %1284 = vxpose.xlu0.c.b16.start [1/8] %v1003, 128
      %1285 = vxpose.xlu0.c.b16.cont [2/8] 0, 128
      %1286 = vxpose.xlu0.c.b16.cont [3/8] 0, 128
      %1287 = vxpose.xlu0.c.b16.cont [4/8] 0, 128
      %1288 = vxpose.xlu0.c.b16.cont [5/8] 0, 128
      %1289 = vxpose.xlu0.c.b16.cont [6/8] 0, 128
      %1290 = vxpose.xlu0.c.b16.cont [7/8] 0, 128
      %1291 = vxpose.xlu0.c.b16.end [8/8] 0, 128
      %v1292 = vpop.trf.xlu0
      %v1293 = vpop.trf.xlu0
      %v1294 = vpop.trf.xlu0
      %v1295 = vpop.trf.xlu0
      %v1296 = vpop.trf.xlu0
      %v1297 = vpop.trf.xlu0
      %v1298 = vpop.trf.xlu0
      %v1299 = vpop.trf.xlu0
      %1300 = vxpose.xlu0.c.b16.start [1/8] %v1004, 128
      %1301 = vxpose.xlu0.c.b16.cont [2/8] 0, 128
      %1302 = vxpose.xlu0.c.b16.cont [3/8] 0, 128
      %1303 = vxpose.xlu0.c.b16.cont [4/8] 0, 128
      %1304 = vxpose.xlu0.c.b16.cont [5/8] 0, 128
      %1305 = vxpose.xlu0.c.b16.cont [6/8] 0, 128
      %1306 = vxpose.xlu0.c.b16.cont [7/8] 0, 128
      %1307 = vxpose.xlu0.c.b16.end [8/8] 0, 128
      %v1308 = vpop.trf.xlu0
      %v1309 = vpop.trf.xlu0
      %v1310 = vpop.trf.xlu0
      %v1311 = vpop.trf.xlu0
      %v1312 = vpop.trf.xlu0
      %v1313 = vpop.trf.xlu0
      %v1314 = vpop.trf.xlu0
      %v1315 = vpop.trf.xlu0
      %1316 = vxpose.xlu0.c.b16.start [1/8] %v1005, 128
      %1317 = vxpose.xlu0.c.b16.cont [2/8] 0, 128
      %1318 = vxpose.xlu0.c.b16.cont [3/8] 0, 128
      %1319 = vxpose.xlu0.c.b16.cont [4/8] 0, 128
      %1320 = vxpose.xlu0.c.b16.cont [5/8] 0, 128
      %1321 = vxpose.xlu0.c.b16.cont [6/8] 0, 128
      %1322 = vxpose.xlu0.c.b16.cont [7/8] 0, 128
      %1323 = vxpose.xlu0.c.b16.end [8/8] 0, 128
      %v1324 = vpop.trf.xlu0
      %v1325 = vpop.trf.xlu0
      %v1326 = vpop.trf.xlu0
      %v1327 = vpop.trf.xlu0
      %v1328 = vpop.trf.xlu0
      %v1329 = vpop.trf.xlu0
      %v1330 = vpop.trf.xlu0
      %v1331 = vpop.trf.xlu0
      %1332 = vxpose.xlu0.c.b16.start [1/8] %v1006, 128
      %1333 = vxpose.xlu0.c.b16.cont [2/8] 0, 128
      %1334 = vxpose.xlu0.c.b16.cont [3/8] 0, 128
      %1335 = vxpose.xlu0.c.b16.cont [4/8] 0, 128
      %1336 = vxpose.xlu0.c.b16.cont [5/8] 0, 128
      %1337 = vxpose.xlu0.c.b16.cont [6/8] 0, 128
      %1338 = vxpose.xlu0.c.b16.cont [7/8] 0, 128
      %1339 = vxpose.xlu0.c.b16.end [8/8] 0, 128
      %v1340 = vpop.trf.xlu0
      %v1341 = vpop.trf.xlu0
      %v1342 = vpop.trf.xlu0
      %v1343 = vpop.trf.xlu0
      %v1344 = vpop.trf.xlu0
      %v1345 = vpop.trf.xlu0
      %v1346 = vpop.trf.xlu0
      %v1347 = vpop.trf.xlu0
      %1348 = vxpose.xlu0.c.b16.start [1/8] %v1007, 128
      %1349 = vxpose.xlu0.c.b16.cont [2/8] 0, 128
      %1350 = vxpose.xlu0.c.b16.cont [3/8] 0, 128
      %1351 = vxpose.xlu0.c.b16.cont [4/8] 0, 128
      %1352 = vxpose.xlu0.c.b16.cont [5/8] 0, 128
      %1353 = vxpose.xlu0.c.b16.cont [6/8] 0, 128
      %1354 = vxpose.xlu0.c.b16.cont [7/8] 0, 128
      %1355 = vxpose.xlu0.c.b16.end [8/8] 0, 128
      %v1356 = vpop.trf.xlu0
      %v1357 = vpop.trf.xlu0
      %v1358 = vpop.trf.xlu0
      %v1359 = vpop.trf.xlu0
      %v1360 = vpop.trf.xlu0
      %v1361 = vpop.trf.xlu0
      %v1362 = vpop.trf.xlu0
      %v1363 = vpop.trf.xlu0
      %1364 = vxpose.xlu0.c.b16.start [1/8] %v1008, 128
      %1365 = vxpose.xlu0.c.b16.cont [2/8] 0, 128
      %1366 = vxpose.xlu0.c.b16.cont [3/8] 0, 128
      %1367 = vxpose.xlu0.c.b16.cont [4/8] 0, 128
      %1368 = vxpose.xlu0.c.b16.cont [5/8] 0, 128
      %1369 = vxpose.xlu0.c.b16.cont [6/8] 0, 128
      %1370 = vxpose.xlu0.c.b16.cont [7/8] 0, 128
      %1371 = vxpose.xlu0.c.b16.end [8/8] 0, 128
      %v1372 = vpop.trf.xlu0
      %v1373 = vpop.trf.xlu0
      %v1374 = vpop.trf.xlu0
      %v1375 = vpop.trf.xlu0
      %v1376 = vpop.trf.xlu0
      %v1377 = vpop.trf.xlu0
      %v1378 = vpop.trf.xlu0
      %v1379 = vpop.trf.xlu0
      %1380 = vxpose.xlu0.c.b16.start [1/8] %v1009, 128
      %1381 = vxpose.xlu0.c.b16.cont [2/8] 0, 128
      %1382 = vxpose.xlu0.c.b16.cont [3/8] 0, 128
      %1383 = vxpose.xlu0.c.b16.cont [4/8] 0, 128
      %1384 = vxpose.xlu0.c.b16.cont [5/8] 0, 128
      %1385 = vxpose.xlu0.c.b16.cont [6/8] 0, 128
      %1386 = vxpose.xlu0.c.b16.cont [7/8] 0, 128
      %1387 = vxpose.xlu0.c.b16.end [8/8] 0, 128
      %v1388 = vpop.trf.xlu0
      %v1389 = vpop.trf.xlu0
      %v1390 = vpop.trf.xlu0
      %v1391 = vpop.trf.xlu0
      %v1392 = vpop.trf.xlu0
      %v1393 = vpop.trf.xlu0
      %v1394 = vpop.trf.xlu0
      %v1395 = vpop.trf.xlu0
      %v1398 = vpack.i.b16 %v1292, %v1276
      %v1400 = vshrl.u32 %v1276, 16
      %v1401 = vshrl.u32 %v1292, 16
      %v1402 = vpack.i.b16 %v1401, %v1400
      %v1406 = vpack.i.b16 %v1324, %v1308
      %v1408 = vshrl.u32 %v1308, 16
      %v1409 = vshrl.u32 %v1324, 16
      %v1410 = vpack.i.b16 %v1409, %v1408
      %v1414 = vpack.i.b16 %v1356, %v1340
      %v1416 = vshrl.u32 %v1340, 16
      %v1417 = vshrl.u32 %v1356, 16
      %v1418 = vpack.i.b16 %v1417, %v1416
      %v1422 = vpack.i.b16 %v1388, %v1372
      %v1424 = vshrl.u32 %v1372, 16
      %v1425 = vshrl.u32 %v1388, 16
      %v1426 = vpack.i.b16 %v1425, %v1424
      %v1428 = vcombine.low %v1398, %v1414
      %v1429 = vcombine.high %v1398, %v1414
      %v1431 = vunpack.c.l.s4 1983009808
      %v1432 = vunpack.c.0.s8 %v1431
      %v1433 = vlaneseq
      %v1434 = vshrl.u32 %v1433, 7
      %v1435 = vsub.s32 %v1432, %v1434
      %v1436 = vrot.slane %v1428, %v1435
      %v1438 = vunpack.c.l.s4 1983009808
      %v1439 = vunpack.c.0.s8 %v1438
      %v1440 = vlaneseq
      %v1441 = vshrl.u32 %v1440, 7
      %v1442 = vsub.s32 %v1439, %v1441
      %v1443 = vrot.slane %v1429, %v1442
      %v1444 = vcombine.low %v1406, %v1422
      %v1445 = vcombine.high %v1406, %v1422
      %v1447 = vunpack.c.l.s4 1983009808
      %v1448 = vunpack.c.0.s8 %v1447
      %v1449 = vlaneseq
      %v1450 = vshrl.u32 %v1449, 7
      %v1451 = vsub.s32 %v1448, %v1450
      %v1452 = vrot.slane %v1444, %v1451
      %v1454 = vunpack.c.l.s4 1983009808
      %v1455 = vunpack.c.0.s8 %v1454
      %v1456 = vlaneseq
      %v1457 = vshrl.u32 %v1456, 7
      %v1458 = vsub.s32 %v1455, %v1457
      %v1459 = vrot.slane %v1445, %v1458
      %v1460 = vcombine.low %v1436, %v1452
      %v1461 = vcombine.high %v1436, %v1452
      %v1463 = vunpack.c.l.s4 1934713408
      %v1464 = vunpack.c.0.s8 %v1463
      %v1465 = vlaneseq
      %v1466 = vshrl.u32 %v1465, 7
      %v1467 = vsub.s32 %v1464, %v1466
      %v1468 = vrot.slane %v1460, %v1467
      %v1470 = vunpack.c.l.s4 1934713408
      %v1471 = vunpack.c.0.s8 %v1470
      %v1472 = vlaneseq
      %v1473 = vshrl.u32 %v1472, 7
      %v1474 = vsub.s32 %v1471, %v1473
      %v1475 = vrot.slane %v1461, %v1474
      %v1476 = vcombine.low %v1443, %v1459
      %v1477 = vcombine.high %v1443, %v1459
      %v1479 = vunpack.c.l.s4 1934713408
      %v1480 = vunpack.c.0.s8 %v1479
      %v1481 = vlaneseq
      %v1482 = vshrl.u32 %v1481, 7
      %v1483 = vsub.s32 %v1480, %v1482
      %v1484 = vrot.slane %v1476, %v1483
      %v1486 = vunpack.c.l.s4 1934713408
      %v1487 = vunpack.c.0.s8 %v1486
      %v1488 = vlaneseq
      %v1489 = vshrl.u32 %v1488, 7
      %v1490 = vsub.s32 %v1487, %v1489
      %v1491 = vrot.slane %v1477, %v1490
      %v1492 = vcombine.high %v1468, 0
      %v1493 = vcombine.high %v1475, 0
      %v1494 = vcombine.high %v1484, 0
      %v1495 = vcombine.high %v1491, 0
      %v1496 = vcombine.low %v1402, %v1418
      %v1497 = vcombine.high %v1402, %v1418
      %v1499 = vunpack.c.l.s4 1983009808
      %v1500 = vunpack.c.0.s8 %v1499
      %v1501 = vlaneseq
      %v1502 = vshrl.u32 %v1501, 7
      %v1503 = vsub.s32 %v1500, %v1502
      %v1504 = vrot.slane %v1496, %v1503
      %v1506 = vunpack.c.l.s4 1983009808
      %v1507 = vunpack.c.0.s8 %v1506
      %v1508 = vlaneseq
      %v1509 = vshrl.u32 %v1508, 7
      %v1510 = vsub.s32 %v1507, %v1509
      %v1511 = vrot.slane %v1497, %v1510
      %v1512 = vcombine.low %v1410, %v1426
      %v1513 = vcombine.high %v1410, %v1426
      %v1515 = vunpack.c.l.s4 1983009808
      %v1516 = vunpack.c.0.s8 %v1515
      %v1517 = vlaneseq
      %v1518 = vshrl.u32 %v1517, 7
      %v1519 = vsub.s32 %v1516, %v1518
      %v1520 = vrot.slane %v1512, %v1519
      %v1522 = vunpack.c.l.s4 1983009808
      %v1523 = vunpack.c.0.s8 %v1522
      %v1524 = vlaneseq
      %v1525 = vshrl.u32 %v1524, 7
      %v1526 = vsub.s32 %v1523, %v1525
      %v1527 = vrot.slane %v1513, %v1526
      %v1528 = vcombine.low %v1504, %v1520
      %v1529 = vcombine.high %v1504, %v1520
      %v1531 = vunpack.c.l.s4 1934713408
      %v1532 = vunpack.c.0.s8 %v1531
      %v1533 = vlaneseq
      %v1534 = vshrl.u32 %v1533, 7
      %v1535 = vsub.s32 %v1532, %v1534
      %v1536 = vrot.slane %v1528, %v1535
      %v1538 = vunpack.c.l.s4 1934713408
      %v1539 = vunpack.c.0.s8 %v1538
      %v1540 = vlaneseq
      %v1541 = vshrl.u32 %v1540, 7
      %v1542 = vsub.s32 %v1539, %v1541
      %v1543 = vrot.slane %v1529, %v1542
      %v1544 = vcombine.low %v1511, %v1527
      %v1545 = vcombine.high %v1511, %v1527
      %v1547 = vunpack.c.l.s4 1934713408
      %v1548 = vunpack.c.0.s8 %v1547
      %v1549 = vlaneseq
      %v1550 = vshrl.u32 %v1549, 7
      %v1551 = vsub.s32 %v1548, %v1550
      %v1552 = vrot.slane %v1544, %v1551
      %v1554 = vunpack.c.l.s4 1934713408
      %v1555 = vunpack.c.0.s8 %v1554
      %v1556 = vlaneseq
      %v1557 = vshrl.u32 %v1556, 7
      %v1558 = vsub.s32 %v1555, %v1557
      %v1559 = vrot.slane %v1545, %v1558
      %v1560 = vcombine.high %v1536, 0
      %v1561 = vcombine.high %v1543, 0
      %v1562 = vcombine.high %v1552, 0
      %v1563 = vcombine.high %v1559, 0
      %1564 = vxpose.xlu0.c.b16.start [1/8] %v1468, 128
      %1565 = vxpose.xlu0.c.b16.cont [2/8] 0, 128
      %1566 = vxpose.xlu0.c.b16.cont [3/8] 0, 128
      %1567 = vxpose.xlu0.c.b16.cont [4/8] 0, 128
      %1568 = vxpose.xlu0.c.b16.cont [5/8] 0, 128
      %1569 = vxpose.xlu0.c.b16.cont [6/8] 0, 128
      %1570 = vxpose.xlu0.c.b16.cont [7/8] 0, 128
      %1571 = vxpose.xlu0.c.b16.end [8/8] 0, 128
      %v1572 = vpop.trf.xlu0
      %v1573 = vpop.trf.xlu0
      %v1574 = vpop.trf.xlu0
      %v1575 = vpop.trf.xlu0
      %v1576 = vpop.trf.xlu0
      %v1577 = vpop.trf.xlu0
      %v1578 = vpop.trf.xlu0
      %v1579 = vpop.trf.xlu0
      %1580 = vxpose.xlu0.c.b16.start [1/8] %v1536, 128
      %1581 = vxpose.xlu0.c.b16.cont [2/8] 0, 128
      %1582 = vxpose.xlu0.c.b16.cont [3/8] 0, 128
      %1583 = vxpose.xlu0.c.b16.cont [4/8] 0, 128
      %1584 = vxpose.xlu0.c.b16.cont [5/8] 0, 128
      %1585 = vxpose.xlu0.c.b16.cont [6/8] 0, 128
      %1586 = vxpose.xlu0.c.b16.cont [7/8] 0, 128
      %1587 = vxpose.xlu0.c.b16.end [8/8] 0, 128
      %v1588 = vpop.trf.xlu0
      %v1589 = vpop.trf.xlu0
      %v1590 = vpop.trf.xlu0
      %v1591 = vpop.trf.xlu0
      %v1592 = vpop.trf.xlu0
      %v1593 = vpop.trf.xlu0
      %v1594 = vpop.trf.xlu0
      %v1595 = vpop.trf.xlu0
      %1596 = vxpose.xlu0.c.b16.start [1/8] %v1492, 128
      %1597 = vxpose.xlu0.c.b16.cont [2/8] 0, 128
      %1598 = vxpose.xlu0.c.b16.cont [3/8] 0, 128
      %1599 = vxpose.xlu0.c.b16.cont [4/8] 0, 128
      %1600 = vxpose.xlu0.c.b16.cont [5/8] 0, 128
      %1601 = vxpose.xlu0.c.b16.cont [6/8] 0, 128
      %1602 = vxpose.xlu0.c.b16.cont [7/8] 0, 128
      %1603 = vxpose.xlu0.c.b16.end [8/8] 0, 128
      %v1604 = vpop.trf.xlu0
      %v1605 = vpop.trf.xlu0
      %v1606 = vpop.trf.xlu0
      %v1607 = vpop.trf.xlu0
      %v1608 = vpop.trf.xlu0
      %v1609 = vpop.trf.xlu0
      %v1610 = vpop.trf.xlu0
      %v1611 = vpop.trf.xlu0
      %1612 = vxpose.xlu0.c.b16.start [1/8] %v1560, 128
      %1613 = vxpose.xlu0.c.b16.cont [2/8] 0, 128
      %1614 = vxpose.xlu0.c.b16.cont [3/8] 0, 128
      %1615 = vxpose.xlu0.c.b16.cont [4/8] 0, 128
      %1616 = vxpose.xlu0.c.b16.cont [5/8] 0, 128
      %1617 = vxpose.xlu0.c.b16.cont [6/8] 0, 128
      %1618 = vxpose.xlu0.c.b16.cont [7/8] 0, 128
      %1619 = vxpose.xlu0.c.b16.end [8/8] 0, 128
      %v1620 = vpop.trf.xlu0
      %v1621 = vpop.trf.xlu0
      %v1622 = vpop.trf.xlu0
      %v1623 = vpop.trf.xlu0
      %v1624 = vpop.trf.xlu0
      %v1625 = vpop.trf.xlu0
      %v1626 = vpop.trf.xlu0
      %v1627 = vpop.trf.xlu0
      %1628 = vxpose.xlu0.c.b16.start [1/8] %v1475, 128
      %1629 = vxpose.xlu0.c.b16.cont [2/8] 0, 128
      %1630 = vxpose.xlu0.c.b16.cont [3/8] 0, 128
      %1631 = vxpose.xlu0.c.b16.cont [4/8] 0, 128
      %1632 = vxpose.xlu0.c.b16.cont [5/8] 0, 128
      %1633 = vxpose.xlu0.c.b16.cont [6/8] 0, 128
      %1634 = vxpose.xlu0.c.b16.cont [7/8] 0, 128
      %1635 = vxpose.xlu0.c.b16.end [8/8] 0, 128
      %v1636 = vpop.trf.xlu0
      %v1637 = vpop.trf.xlu0
      %v1638 = vpop.trf.xlu0
      %v1639 = vpop.trf.xlu0
      %v1640 = vpop.trf.xlu0
      %v1641 = vpop.trf.xlu0
      %v1642 = vpop.trf.xlu0
      %v1643 = vpop.trf.xlu0
      %1644 = vxpose.xlu0.c.b16.start [1/8] %v1543, 128
      %1645 = vxpose.xlu0.c.b16.cont [2/8] 0, 128
      %1646 = vxpose.xlu0.c.b16.cont [3/8] 0, 128
      %1647 = vxpose.xlu0.c.b16.cont [4/8] 0, 128
      %1648 = vxpose.xlu0.c.b16.cont [5/8] 0, 128
      %1649 = vxpose.xlu0.c.b16.cont [6/8] 0, 128
      %1650 = vxpose.xlu0.c.b16.cont [7/8] 0, 128
      %1651 = vxpose.xlu0.c.b16.end [8/8] 0, 128
      %v1652 = vpop.trf.xlu0
      %v1653 = vpop.trf.xlu0
      %v1654 = vpop.trf.xlu0
      %v1655 = vpop.trf.xlu0
      %v1656 = vpop.trf.xlu0
      %v1657 = vpop.trf.xlu0
      %v1658 = vpop.trf.xlu0
      %v1659 = vpop.trf.xlu0
      %1660 = vxpose.xlu0.c.b16.start [1/8] %v1493, 128
      %1661 = vxpose.xlu0.c.b16.cont [2/8] 0, 128
      %1662 = vxpose.xlu0.c.b16.cont [3/8] 0, 128
      %1663 = vxpose.xlu0.c.b16.cont [4/8] 0, 128
      %1664 = vxpose.xlu0.c.b16.cont [5/8] 0, 128
      %1665 = vxpose.xlu0.c.b16.cont [6/8] 0, 128
      %1666 = vxpose.xlu0.c.b16.cont [7/8] 0, 128
      %1667 = vxpose.xlu0.c.b16.end [8/8] 0, 128
      %v1668 = vpop.trf.xlu0
      %v1669 = vpop.trf.xlu0
      %v1670 = vpop.trf.xlu0
      %v1671 = vpop.trf.xlu0
      %v1672 = vpop.trf.xlu0
      %v1673 = vpop.trf.xlu0
      %v1674 = vpop.trf.xlu0
      %v1675 = vpop.trf.xlu0
      %1676 = vxpose.xlu0.c.b16.start [1/8] %v1561, 128
      %1677 = vxpose.xlu0.c.b16.cont [2/8] 0, 128
      %1678 = vxpose.xlu0.c.b16.cont [3/8] 0, 128
      %1679 = vxpose.xlu0.c.b16.cont [4/8] 0, 128
      %1680 = vxpose.xlu0.c.b16.cont [5/8] 0, 128
      %1681 = vxpose.xlu0.c.b16.cont [6/8] 0, 128
      %1682 = vxpose.xlu0.c.b16.cont [7/8] 0, 128
      %1683 = vxpose.xlu0.c.b16.end [8/8] 0, 128
      %v1684 = vpop.trf.xlu0
      %v1685 = vpop.trf.xlu0
      %v1686 = vpop.trf.xlu0
      %v1687 = vpop.trf.xlu0
      %v1688 = vpop.trf.xlu0
      %v1689 = vpop.trf.xlu0
      %v1690 = vpop.trf.xlu0
      %v1691 = vpop.trf.xlu0
      %1692 = vxpose.xlu0.c.b16.start [1/8] %v1484, 128
      %1693 = vxpose.xlu0.c.b16.cont [2/8] 0, 128
      %1694 = vxpose.xlu0.c.b16.cont [3/8] 0, 128
      %1695 = vxpose.xlu0.c.b16.cont [4/8] 0, 128
      %1696 = vxpose.xlu0.c.b16.cont [5/8] 0, 128
      %1697 = vxpose.xlu0.c.b16.cont [6/8] 0, 128
      %1698 = vxpose.xlu0.c.b16.cont [7/8] 0, 128
      %1699 = vxpose.xlu0.c.b16.end [8/8] 0, 128
      %v1700 = vpop.trf.xlu0
      %v1701 = vpop.trf.xlu0
      %v1702 = vpop.trf.xlu0
      %v1703 = vpop.trf.xlu0
      %v1704 = vpop.trf.xlu0
      %v1705 = vpop.trf.xlu0
      %v1706 = vpop.trf.xlu0
      %v1707 = vpop.trf.xlu0
      %1708 = vxpose.xlu0.c.b16.start [1/8] %v1552, 128
      %1709 = vxpose.xlu0.c.b16.cont [2/8] 0, 128
      %1710 = vxpose.xlu0.c.b16.cont [3/8] 0, 128
      %1711 = vxpose.xlu0.c.b16.cont [4/8] 0, 128
      %1712 = vxpose.xlu0.c.b16.cont [5/8] 0, 128
      %1713 = vxpose.xlu0.c.b16.cont [6/8] 0, 128
      %1714 = vxpose.xlu0.c.b16.cont [7/8] 0, 128
      %1715 = vxpose.xlu0.c.b16.end [8/8] 0, 128
      %v1716 = vpop.trf.xlu0
      %v1717 = vpop.trf.xlu0
      %v1718 = vpop.trf.xlu0
      %v1719 = vpop.trf.xlu0
      %v1720 = vpop.trf.xlu0
      %v1721 = vpop.trf.xlu0
      %v1722 = vpop.trf.xlu0
      %v1723 = vpop.trf.xlu0
      %1724 = vxpose.xlu0.c.b16.start [1/8] %v1494, 128
      %1725 = vxpose.xlu0.c.b16.cont [2/8] 0, 128
      %1726 = vxpose.xlu0.c.b16.cont [3/8] 0, 128
      %1727 = vxpose.xlu0.c.b16.cont [4/8] 0, 128
      %1728 = vxpose.xlu0.c.b16.cont [5/8] 0, 128
      %1729 = vxpose.xlu0.c.b16.cont [6/8] 0, 128
      %1730 = vxpose.xlu0.c.b16.cont [7/8] 0, 128
      %1731 = vxpose.xlu0.c.b16.end [8/8] 0, 128
      %v1732 = vpop.trf.xlu0
      %v1733 = vpop.trf.xlu0
      %v1734 = vpop.trf.xlu0
      %v1735 = vpop.trf.xlu0
      %v1736 = vpop.trf.xlu0
      %v1737 = vpop.trf.xlu0
      %v1738 = vpop.trf.xlu0
      %v1739 = vpop.trf.xlu0
      %1740 = vxpose.xlu0.c.b16.start [1/8] %v1562, 128
      %1741 = vxpose.xlu0.c.b16.cont [2/8] 0, 128
      %1742 = vxpose.xlu0.c.b16.cont [3/8] 0, 128
      %1743 = vxpose.xlu0.c.b16.cont [4/8] 0, 128
      %1744 = vxpose.xlu0.c.b16.cont [5/8] 0, 128
      %1745 = vxpose.xlu0.c.b16.cont [6/8] 0, 128
      %1746 = vxpose.xlu0.c.b16.cont [7/8] 0, 128
      %1747 = vxpose.xlu0.c.b16.end [8/8] 0, 128
      %v1748 = vpop.trf.xlu0
      %v1749 = vpop.trf.xlu0
      %v1750 = vpop.trf.xlu0
      %v1751 = vpop.trf.xlu0
      %v1752 = vpop.trf.xlu0
      %v1753 = vpop.trf.xlu0
      %v1754 = vpop.trf.xlu0
      %v1755 = vpop.trf.xlu0
      %1756 = vxpose.xlu0.c.b16.start [1/8] %v1491, 128
      %1757 = vxpose.xlu0.c.b16.cont [2/8] 0, 128
      %1758 = vxpose.xlu0.c.b16.cont [3/8] 0, 128
      %1759 = vxpose.xlu0.c.b16.cont [4/8] 0, 128
      %1760 = vxpose.xlu0.c.b16.cont [5/8] 0, 128
      %1761 = vxpose.xlu0.c.b16.cont [6/8] 0, 128
      %1762 = vxpose.xlu0.c.b16.cont [7/8] 0, 128
      %1763 = vxpose.xlu0.c.b16.end [8/8] 0, 128
      %v1764 = vpop.trf.xlu0
      %v1765 = vpop.trf.xlu0
      %v1766 = vpop.trf.xlu0
      %v1767 = vpop.trf.xlu0
      %v1768 = vpop.trf.xlu0
      %v1769 = vpop.trf.xlu0
      %v1770 = vpop.trf.xlu0
      %v1771 = vpop.trf.xlu0
      %1772 = vxpose.xlu0.c.b16.start [1/8] %v1559, 128
      %1773 = vxpose.xlu0.c.b16.cont [2/8] 0, 128
      %1774 = vxpose.xlu0.c.b16.cont [3/8] 0, 128
      %1775 = vxpose.xlu0.c.b16.cont [4/8] 0, 128
      %1776 = vxpose.xlu0.c.b16.cont [5/8] 0, 128
      %1777 = vxpose.xlu0.c.b16.cont [6/8] 0, 128
      %1778 = vxpose.xlu0.c.b16.cont [7/8] 0, 128
      %1779 = vxpose.xlu0.c.b16.end [8/8] 0, 128
      %v1780 = vpop.trf.xlu0
      %v1781 = vpop.trf.xlu0
      %v1782 = vpop.trf.xlu0
      %v1783 = vpop.trf.xlu0
      %v1784 = vpop.trf.xlu0
      %v1785 = vpop.trf.xlu0
      %v1786 = vpop.trf.xlu0
      %v1787 = vpop.trf.xlu0
      %1788 = vxpose.xlu0.c.b16.start [1/8] %v1495, 128
      %1789 = vxpose.xlu0.c.b16.cont [2/8] 0, 128
      %1790 = vxpose.xlu0.c.b16.cont [3/8] 0, 128
      %1791 = vxpose.xlu0.c.b16.cont [4/8] 0, 128
      %1792 = vxpose.xlu0.c.b16.cont [5/8] 0, 128
      %1793 = vxpose.xlu0.c.b16.cont [6/8] 0, 128
      %1794 = vxpose.xlu0.c.b16.cont [7/8] 0, 128
      %1795 = vxpose.xlu0.c.b16.end [8/8] 0, 128
      %v1796 = vpop.trf.xlu0
      %v1797 = vpop.trf.xlu0
      %v1798 = vpop.trf.xlu0
      %v1799 = vpop.trf.xlu0
      %v1800 = vpop.trf.xlu0
      %v1801 = vpop.trf.xlu0
      %v1802 = vpop.trf.xlu0
      %v1803 = vpop.trf.xlu0
      %1804 = vxpose.xlu0.c.b16.start [1/8] %v1563, 128
      %1805 = vxpose.xlu0.c.b16.cont [2/8] 0, 128
      %1806 = vxpose.xlu0.c.b16.cont [3/8] 0, 128
      %1807 = vxpose.xlu0.c.b16.cont [4/8] 0, 128
      %1808 = vxpose.xlu0.c.b16.cont [5/8] 0, 128
      %1809 = vxpose.xlu0.c.b16.cont [6/8] 0, 128
      %1810 = vxpose.xlu0.c.b16.cont [7/8] 0, 128
      %1811 = vxpose.xlu0.c.b16.end [8/8] 0, 128
      %v1812 = vpop.trf.xlu0
      %v1813 = vpop.trf.xlu0
      %v1814 = vpop.trf.xlu0
      %v1815 = vpop.trf.xlu0
      %v1816 = vpop.trf.xlu0
      %v1817 = vpop.trf.xlu0
      %v1818 = vpop.trf.xlu0
      %v1819 = vpop.trf.xlu0
      %v1820 = vcombine.low %v1572, %v1636
      %v1822 = vunpack.c.l.s4 1983009808
      %v1823 = vunpack.c.0.s8 %v1822
      %v1824 = vlaneseq
      %v1825 = vshrl.u32 %v1824, 7
      %v1826 = vsub.s32 %v1823, %v1825
      %v1827 = vrot.slane %v1820, %v1826
      %v1828 = vcombine.low %v1604, %v1668
      %v1830 = vunpack.c.l.s4 1983009808
      %v1831 = vunpack.c.0.s8 %v1830
      %v1832 = vlaneseq
      %v1833 = vshrl.u32 %v1832, 7
      %v1834 = vsub.s32 %v1831, %v1833
      %v1835 = vrot.slane %v1828, %v1834
      %v1836 = vcombine.low %v1700, %v1764
      %v1838 = vunpack.c.l.s4 1983009808
      %v1839 = vunpack.c.0.s8 %v1838
      %v1840 = vlaneseq
      %v1841 = vshrl.u32 %v1840, 7
      %v1842 = vsub.s32 %v1839, %v1841
      %v1843 = vrot.slane %v1836, %v1842
      %v1844 = vcombine.low %v1732, %v1796
      %v1846 = vunpack.c.l.s4 1983009808
      %v1847 = vunpack.c.0.s8 %v1846
      %v1848 = vlaneseq
      %v1849 = vshrl.u32 %v1848, 7
      %v1850 = vsub.s32 %v1847, %v1849
      %v1851 = vrot.slane %v1844, %v1850
      %v1852 = vcombine.low %v1827, %v1835
      %v1853 = vcombine.high %v1827, %v1835
      %v1855 = vunpack.c.l.s4 1934713408
      %v1856 = vunpack.c.0.s8 %v1855
      %v1857 = vlaneseq
      %v1858 = vshrl.u32 %v1857, 7
      %v1859 = vsub.s32 %v1856, %v1858
      %v1860 = vrot.slane %v1852, %v1859
      %v1862 = vunpack.c.l.s4 1934713408
      %v1863 = vunpack.c.0.s8 %v1862
      %v1864 = vlaneseq
      %v1865 = vshrl.u32 %v1864, 7
      %v1866 = vsub.s32 %v1863, %v1865
      %v1867 = vrot.slane %v1853, %v1866
      %v1868 = vcombine.low %v1843, %v1851
      %v1869 = vcombine.high %v1843, %v1851
      %v1871 = vunpack.c.l.s4 1934713408
      %v1872 = vunpack.c.0.s8 %v1871
      %v1873 = vlaneseq
      %v1874 = vshrl.u32 %v1873, 7
      %v1875 = vsub.s32 %v1872, %v1874
      %v1876 = vrot.slane %v1868, %v1875
      %v1878 = vunpack.c.l.s4 1934713408
      %v1879 = vunpack.c.0.s8 %v1878
      %v1880 = vlaneseq
      %v1881 = vshrl.u32 %v1880, 7
      %v1882 = vsub.s32 %v1879, %v1881
      %v1883 = vrot.slane %v1869, %v1882
      %v1884 = vcombine.low %v1860, %v1876
      %v1885 = vcombine.high %v1860, %v1876
      %v1886 = vcombine.low %v1867, %v1883
      %v1887 = vcombine.high %v1867, %v1883
      %v1888 = vcombine.low %v1588, %v1652
      %v1890 = vunpack.c.l.s4 1983009808
      %v1891 = vunpack.c.0.s8 %v1890
      %v1892 = vlaneseq
      %v1893 = vshrl.u32 %v1892, 7
      %v1894 = vsub.s32 %v1891, %v1893
      %v1895 = vrot.slane %v1888, %v1894
      %v1896 = vcombine.low %v1620, %v1684
      %v1898 = vunpack.c.l.s4 1983009808
      %v1899 = vunpack.c.0.s8 %v1898
      %v1900 = vlaneseq
      %v1901 = vshrl.u32 %v1900, 7
      %v1902 = vsub.s32 %v1899, %v1901
      %v1903 = vrot.slane %v1896, %v1902
      %v1904 = vcombine.low %v1716, %v1780
      %v1906 = vunpack.c.l.s4 1983009808
      %v1907 = vunpack.c.0.s8 %v1906
      %v1908 = vlaneseq
      %v1909 = vshrl.u32 %v1908, 7
      %v1910 = vsub.s32 %v1907, %v1909
      %v1911 = vrot.slane %v1904, %v1910
      %v1912 = vcombine.low %v1748, %v1812
      %v1914 = vunpack.c.l.s4 1983009808
      %v1915 = vunpack.c.0.s8 %v1914
      %v1916 = vlaneseq
      %v1917 = vshrl.u32 %v1916, 7
      %v1918 = vsub.s32 %v1915, %v1917
      %v1919 = vrot.slane %v1912, %v1918
      %v1920 = vcombine.low %v1895, %v1903
      %v1921 = vcombine.high %v1895, %v1903
      %v1923 = vunpack.c.l.s4 1934713408
      %v1924 = vunpack.c.0.s8 %v1923
      %v1925 = vlaneseq
      %v1926 = vshrl.u32 %v1925, 7
      %v1927 = vsub.s32 %v1924, %v1926
      %v1928 = vrot.slane %v1920, %v1927
      %v1930 = vunpack.c.l.s4 1934713408
      %v1931 = vunpack.c.0.s8 %v1930
      %v1932 = vlaneseq
      %v1933 = vshrl.u32 %v1932, 7
      %v1934 = vsub.s32 %v1931, %v1933
      %v1935 = vrot.slane %v1921, %v1934
      %v1936 = vcombine.low %v1911, %v1919
      %v1937 = vcombine.high %v1911, %v1919
      %v1939 = vunpack.c.l.s4 1934713408
      %v1940 = vunpack.c.0.s8 %v1939
      %v1941 = vlaneseq
      %v1942 = vshrl.u32 %v1941, 7
      %v1943 = vsub.s32 %v1940, %v1942
      %v1944 = vrot.slane %v1936, %v1943
      %v1946 = vunpack.c.l.s4 1934713408
      %v1947 = vunpack.c.0.s8 %v1946
      %v1948 = vlaneseq
      %v1949 = vshrl.u32 %v1948, 7
      %v1950 = vsub.s32 %v1947, %v1949
      %v1951 = vrot.slane %v1937, %v1950
      %v1952 = vcombine.low %v1928, %v1944
      %v1953 = vcombine.high %v1928, %v1944
      %v1954 = vcombine.low %v1935, %v1951
      %v1955 = vcombine.high %v1935, %v1951
      %v1958 = vpack.i.b16 %v1952, %v1884
      %v1960 = vshrl.u32 %v1884, 16
      %v1961 = vshrl.u32 %v1952, 16
      %v1962 = vpack.i.b16 %v1961, %v1960
      %v1966 = vpack.i.b16 %v1953, %v1885
      %v1968 = vshrl.u32 %v1885, 16
      %v1969 = vshrl.u32 %v1953, 16
      %v1970 = vpack.i.b16 %v1969, %v1968
      %v1974 = vpack.i.b16 %v1954, %v1886
      %v1976 = vshrl.u32 %v1886, 16
      %v1977 = vshrl.u32 %v1954, 16
      %v1978 = vpack.i.b16 %v1977, %v1976
      %v1982 = vpack.i.b16 %v1955, %v1887
      %v1984 = vshrl.u32 %v1887, 16
      %v1985 = vshrl.u32 %v1955, 16
      %v1986 = vpack.i.b16 %v1985, %v1984
      %vm1988 = vcmask 130048
      %v1990 = vsel %vm1988, %v1246, 0
      %1992 = vmatprep.subr.bf16.mxu0 0
      %1993 = vmatpush1.bf16.msra.mxu0 0
      %1994 = vmatprep.subr.bf16.mxu0 0
      %1995 = vmatpush1.bf16.msra.mxu0 0
      %1996 = vmatprep.subr.bf16.mxu0 0
      %1997 = vmatpush1.bf16.msra.mxu0 0
      %1998 = vmatprep.subr.bf16.mxu0 0
      %1999 = vmatpush1.bf16.msra.mxu0 0
      %2000 = vmatprep.subr.bf16.mxu0 0
      %2001 = vmatpush1.bf16.msra.mxu0 0
      %2002 = vmatprep.subr.bf16.mxu0 0
      %2003 = vmatpush1.bf16.msra.mxu0 0
      %2004 = vmatprep.subr.bf16.mxu0 0
      %2005 = vmatpush1.bf16.msra.mxu0 0
      %2006 = vmatprep.subr.bf16.mxu0 0
      %2007 = vmatpush1.bf16.msra.mxu0 %v1958
      %2008 = vmatprep.subr.bf16.mxu0 0
      %2009 = vmatpush2.bf16.msra.mxu0 0
      %2010 = vmatprep.subr.bf16.mxu0 0
      %2011 = vmatpush2.bf16.msra.mxu0 0
      %2012 = vmatprep.subr.bf16.mxu0 0
      %2013 = vmatpush2.bf16.msra.mxu0 0
      %2014 = vmatprep.subr.bf16.mxu0 0
      %2015 = vmatpush2.bf16.msra.mxu0 0
      %2016 = vmatprep.subr.bf16.mxu0 0
      %2017 = vmatpush2.bf16.msra.mxu0 0
      %2018 = vmatprep.subr.bf16.mxu0 0
      %2019 = vmatpush2.bf16.msra.mxu0 0
      %2020 = vmatprep.subr.bf16.mxu0 0
      %2021 = vmatpush2.bf16.msra.mxu0 0
      %2022 = vmatprep.subr.bf16.mxu0 0
      %2023 = vmatpush2.bf16.msra.mxu0 0
      %2024 = vmatprep.mubr.bf16.mxu0 0
      %2025 = vmatmul.mubr.bf16.gmra.mxu0 %v1990
      %v2026 = vpop.f32.mrf.mxu0
      %v2027 = vadd.f32 0.0, %v2026
      %v2028 = vpop.f32.mrf.mxu0
      %v2029 = vpop.f32.mrf.mxu0
      %v2030 = vpop.f32.mrf.mxu0
      %2031 = vdwg.mxu0
      %v2033 = vsel %vm1988, %v1249, 0
      %2035 = vmatprep.subr.bf16.mxu0 0
      %2036 = vmatpush1.bf16.msra.mxu0 0
      %2037 = vmatprep.subr.bf16.mxu0 0
      %2038 = vmatpush1.bf16.msra.mxu0 0
      %2039 = vmatprep.subr.bf16.mxu0 0
      %2040 = vmatpush1.bf16.msra.mxu0 0
      %2041 = vmatprep.subr.bf16.mxu0 0
      %2042 = vmatpush1.bf16.msra.mxu0 0
      %2043 = vmatprep.subr.bf16.mxu0 0
      %2044 = vmatpush1.bf16.msra.mxu0 0
      %2045 = vmatprep.subr.bf16.mxu0 0
      %2046 = vmatpush1.bf16.msra.mxu0 0
      %2047 = vmatprep.subr.bf16.mxu0 0
      %2048 = vmatpush1.bf16.msra.mxu0 0
      %2049 = vmatprep.subr.bf16.mxu0 0
      %2050 = vmatpush1.bf16.msra.mxu0 %v1962
      %2051 = vmatprep.subr.bf16.mxu0 0
      %2052 = vmatpush2.bf16.msra.mxu0 0
      %2053 = vmatprep.subr.bf16.mxu0 0
      %2054 = vmatpush2.bf16.msra.mxu0 0
      %2055 = vmatprep.subr.bf16.mxu0 0
      %2056 = vmatpush2.bf16.msra.mxu0 0
      %2057 = vmatprep.subr.bf16.mxu0 0
      %2058 = vmatpush2.bf16.msra.mxu0 0
      %2059 = vmatprep.subr.bf16.mxu0 0
      %2060 = vmatpush2.bf16.msra.mxu0 0
      %2061 = vmatprep.subr.bf16.mxu0 0
      %2062 = vmatpush2.bf16.msra.mxu0 0
      %2063 = vmatprep.subr.bf16.mxu0 0
      %2064 = vmatpush2.bf16.msra.mxu0 0
      %2065 = vmatprep.subr.bf16.mxu0 0
      %2066 = vmatpush2.bf16.msra.mxu0 0
      %2067 = vmatprep.mubr.bf16.mxu0 0
      %2068 = vmatmul.mubr.bf16.gmra.mxu0 %v2033
      %v2069 = vpop.f32.mrf.mxu0
      %v2070 = vadd.f32 0.0, %v2069
      %v2071 = vpop.f32.mrf.mxu0
      %v2072 = vpop.f32.mrf.mxu0
      %v2073 = vpop.f32.mrf.mxu0
      %2074 = vdwg.mxu0
      %v2076 = vsel %vm1988, %v1252, 0
      %2078 = vmatprep.subr.bf16.mxu0 0
      %2079 = vmatpush1.bf16.msra.mxu0 0
      %2080 = vmatprep.subr.bf16.mxu0 0
      %2081 = vmatpush1.bf16.msra.mxu0 0
      %2082 = vmatprep.subr.bf16.mxu0 0
      %2083 = vmatpush1.bf16.msra.mxu0 0
      %2084 = vmatprep.subr.bf16.mxu0 0
      %2085 = vmatpush1.bf16.msra.mxu0 0
      %2086 = vmatprep.subr.bf16.mxu0 0
      %2087 = vmatpush1.bf16.msra.mxu0 0
      %2088 = vmatprep.subr.bf16.mxu0 0
      %2089 = vmatpush1.bf16.msra.mxu0 0
      %2090 = vmatprep.subr.bf16.mxu0 0
      %2091 = vmatpush1.bf16.msra.mxu0 0
      %2092 = vmatprep.subr.bf16.mxu0 0
      %2093 = vmatpush1.bf16.msra.mxu0 %v1966
      %2094 = vmatprep.subr.bf16.mxu0 0
      %2095 = vmatpush2.bf16.msra.mxu0 0
      %2096 = vmatprep.subr.bf16.mxu0 0
      %2097 = vmatpush2.bf16.msra.mxu0 0
      %2098 = vmatprep.subr.bf16.mxu0 0
      %2099 = vmatpush2.bf16.msra.mxu0 0
      %2100 = vmatprep.subr.bf16.mxu0 0
      %2101 = vmatpush2.bf16.msra.mxu0 0
      %2102 = vmatprep.subr.bf16.mxu0 0
      %2103 = vmatpush2.bf16.msra.mxu0 0
      %2104 = vmatprep.subr.bf16.mxu0 0
      %2105 = vmatpush2.bf16.msra.mxu0 0
      %2106 = vmatprep.subr.bf16.mxu0 0
      %2107 = vmatpush2.bf16.msra.mxu0 0
      %2108 = vmatprep.subr.bf16.mxu0 0
      %2109 = vmatpush2.bf16.msra.mxu0 0
      %2110 = vmatprep.mubr.bf16.mxu0 0
      %2111 = vmatmul.mubr.bf16.gmra.mxu0 %v2076
      %v2112 = vpop.f32.mrf.mxu0
      %v2113 = vadd.f32 0.0, %v2112
      %v2114 = vpop.f32.mrf.mxu0
      %v2115 = vpop.f32.mrf.mxu0
      %v2116 = vpop.f32.mrf.mxu0
      %2117 = vdwg.mxu0
      %v2119 = vsel %vm1988, %v1255, 0
      %2121 = vmatprep.subr.bf16.mxu0 0
      %2122 = vmatpush1.bf16.msra.mxu0 0
      %2123 = vmatprep.subr.bf16.mxu0 0
      %2124 = vmatpush1.bf16.msra.mxu0 0
      %2125 = vmatprep.subr.bf16.mxu0 0
      %2126 = vmatpush1.bf16.msra.mxu0 0
      %2127 = vmatprep.subr.bf16.mxu0 0
      %2128 = vmatpush1.bf16.msra.mxu0 0
      %2129 = vmatprep.subr.bf16.mxu0 0
      %2130 = vmatpush1.bf16.msra.mxu0 0
      %2131 = vmatprep.subr.bf16.mxu0 0
      %2132 = vmatpush1.bf16.msra.mxu0 0
      %2133 = vmatprep.subr.bf16.mxu0 0
      %2134 = vmatpush1.bf16.msra.mxu0 0
      %2135 = vmatprep.subr.bf16.mxu0 0
      %2136 = vmatpush1.bf16.msra.mxu0 %v1970
      %2137 = vmatprep.subr.bf16.mxu0 0
      %2138 = vmatpush2.bf16.msra.mxu0 0
      %2139 = vmatprep.subr.bf16.mxu0 0
      %2140 = vmatpush2.bf16.msra.mxu0 0
      %2141 = vmatprep.subr.bf16.mxu0 0
      %2142 = vmatpush2.bf16.msra.mxu0 0
      %2143 = vmatprep.subr.bf16.mxu0 0
      %2144 = vmatpush2.bf16.msra.mxu0 0
      %2145 = vmatprep.subr.bf16.mxu0 0
      %2146 = vmatpush2.bf16.msra.mxu0 0
      %2147 = vmatprep.subr.bf16.mxu0 0
      %2148 = vmatpush2.bf16.msra.mxu0 0
      %2149 = vmatprep.subr.bf16.mxu0 0
      %2150 = vmatpush2.bf16.msra.mxu0 0
      %2151 = vmatprep.subr.bf16.mxu0 0
      %2152 = vmatpush2.bf16.msra.mxu0 0
      %2153 = vmatprep.mubr.bf16.mxu0 0
      %2154 = vmatmul.mubr.bf16.gmra.mxu0 %v2119
      %v2155 = vpop.f32.mrf.mxu0
      %v2156 = vadd.f32 0.0, %v2155
      %v2157 = vpop.f32.mrf.mxu0
      %v2158 = vpop.f32.mrf.mxu0
      %v2159 = vpop.f32.mrf.mxu0
      %2160 = vdwg.mxu0
      %v2162 = vsel %vm1988, %v1258, 0
      %2164 = vmatprep.subr.bf16.mxu0 0
      %2165 = vmatpush1.bf16.msra.mxu0 0
      %2166 = vmatprep.subr.bf16.mxu0 0
      %2167 = vmatpush1.bf16.msra.mxu0 0
      %2168 = vmatprep.subr.bf16.mxu0 0
      %2169 = vmatpush1.bf16.msra.mxu0 0
      %2170 = vmatprep.subr.bf16.mxu0 0
      %2171 = vmatpush1.bf16.msra.mxu0 0
      %2172 = vmatprep.subr.bf16.mxu0 0
      %2173 = vmatpush1.bf16.msra.mxu0 0
      %2174 = vmatprep.subr.bf16.mxu0 0
      %2175 = vmatpush1.bf16.msra.mxu0 0
      %2176 = vmatprep.subr.bf16.mxu0 0
      %2177 = vmatpush1.bf16.msra.mxu0 0
      %2178 = vmatprep.subr.bf16.mxu0 0
      %2179 = vmatpush1.bf16.msra.mxu0 %v1974
      %2180 = vmatprep.subr.bf16.mxu0 0
      %2181 = vmatpush2.bf16.msra.mxu0 0
      %2182 = vmatprep.subr.bf16.mxu0 0
      %2183 = vmatpush2.bf16.msra.mxu0 0
      %2184 = vmatprep.subr.bf16.mxu0 0
      %2185 = vmatpush2.bf16.msra.mxu0 0
      %2186 = vmatprep.subr.bf16.mxu0 0
      %2187 = vmatpush2.bf16.msra.mxu0 0
      %2188 = vmatprep.subr.bf16.mxu0 0
      %2189 = vmatpush2.bf16.msra.mxu0 0
      %2190 = vmatprep.subr.bf16.mxu0 0
      %2191 = vmatpush2.bf16.msra.mxu0 0
      %2192 = vmatprep.subr.bf16.mxu0 0
      %2193 = vmatpush2.bf16.msra.mxu0 0
      %2194 = vmatprep.subr.bf16.mxu0 0
      %2195 = vmatpush2.bf16.msra.mxu0 0
      %2196 = vmatprep.mubr.bf16.mxu0 0
      %2197 = vmatmul.mubr.bf16.gmra.mxu0 %v2162
      %v2198 = vpop.f32.mrf.mxu0
      %v2199 = vadd.f32 0.0, %v2198
      %v2200 = vpop.f32.mrf.mxu0
      %v2201 = vpop.f32.mrf.mxu0
      %v2202 = vpop.f32.mrf.mxu0
      %2203 = vdwg.mxu0
      %v2205 = vsel %vm1988, %v1261, 0
      %2207 = vmatprep.subr.bf16.mxu0 0
      %2208 = vmatpush1.bf16.msra.mxu0 0
      %2209 = vmatprep.subr.bf16.mxu0 0
      %2210 = vmatpush1.bf16.msra.mxu0 0
      %2211 = vmatprep.subr.bf16.mxu0 0
      %2212 = vmatpush1.bf16.msra.mxu0 0
      %2213 = vmatprep.subr.bf16.mxu0 0
      %2214 = vmatpush1.bf16.msra.mxu0 0
      %2215 = vmatprep.subr.bf16.mxu0 0
      %2216 = vmatpush1.bf16.msra.mxu0 0
      %2217 = vmatprep.subr.bf16.mxu0 0
      %2218 = vmatpush1.bf16.msra.mxu0 0
      %2219 = vmatprep.subr.bf16.mxu0 0
      %2220 = vmatpush1.bf16.msra.mxu0 0
      %2221 = vmatprep.subr.bf16.mxu0 0
      %2222 = vmatpush1.bf16.msra.mxu0 %v1978
      %2223 = vmatprep.subr.bf16.mxu0 0
      %2224 = vmatpush2.bf16.msra.mxu0 0
      %2225 = vmatprep.subr.bf16.mxu0 0
      %2226 = vmatpush2.bf16.msra.mxu0 0
      %2227 = vmatprep.subr.bf16.mxu0 0
      %2228 = vmatpush2.bf16.msra.mxu0 0
      %2229 = vmatprep.subr.bf16.mxu0 0
      %2230 = vmatpush2.bf16.msra.mxu0 0
      %2231 = vmatprep.subr.bf16.mxu0 0
      %2232 = vmatpush2.bf16.msra.mxu0 0
      %2233 = vmatprep.subr.bf16.mxu0 0
      %2234 = vmatpush2.bf16.msra.mxu0 0
      %2235 = vmatprep.subr.bf16.mxu0 0
      %2236 = vmatpush2.bf16.msra.mxu0 0
      %2237 = vmatprep.subr.bf16.mxu0 0
      %2238 = vmatpush2.bf16.msra.mxu0 0
      %2239 = vmatprep.mubr.bf16.mxu0 0
      %2240 = vmatmul.mubr.bf16.gmra.mxu0 %v2205
      %v2241 = vpop.f32.mrf.mxu0
      %v2242 = vadd.f32 0.0, %v2241
      %v2243 = vpop.f32.mrf.mxu0
      %v2244 = vpop.f32.mrf.mxu0
      %v2245 = vpop.f32.mrf.mxu0
      %2246 = vdwg.mxu0
      %v2248 = vsel %vm1988, %v1264, 0
      %2250 = vmatprep.subr.bf16.mxu0 0
      %2251 = vmatpush1.bf16.msra.mxu0 0
      %2252 = vmatprep.subr.bf16.mxu0 0
      %2253 = vmatpush1.bf16.msra.mxu0 0
      %2254 = vmatprep.subr.bf16.mxu0 0
      %2255 = vmatpush1.bf16.msra.mxu0 0
      %2256 = vmatprep.subr.bf16.mxu0 0
      %2257 = vmatpush1.bf16.msra.mxu0 0
      %2258 = vmatprep.subr.bf16.mxu0 0
      %2259 = vmatpush1.bf16.msra.mxu0 0
      %2260 = vmatprep.subr.bf16.mxu0 0
      %2261 = vmatpush1.bf16.msra.mxu0 0
      %2262 = vmatprep.subr.bf16.mxu0 0
      %2263 = vmatpush1.bf16.msra.mxu0 0
      %2264 = vmatprep.subr.bf16.mxu0 0
      %2265 = vmatpush1.bf16.msra.mxu0 %v1982
      %2266 = vmatprep.subr.bf16.mxu0 0
      %2267 = vmatpush2.bf16.msra.mxu0 0
      %2268 = vmatprep.subr.bf16.mxu0 0
      %2269 = vmatpush2.bf16.msra.mxu0 0
      %2270 = vmatprep.subr.bf16.mxu0 0
      %2271 = vmatpush2.bf16.msra.mxu0 0
      %2272 = vmatprep.subr.bf16.mxu0 0
      %2273 = vmatpush2.bf16.msra.mxu0 0
      %2274 = vmatprep.subr.bf16.mxu0 0
      %2275 = vmatpush2.bf16.msra.mxu0 0
      %2276 = vmatprep.subr.bf16.mxu0 0
      %2277 = vmatpush2.bf16.msra.mxu0 0
      %2278 = vmatprep.subr.bf16.mxu0 0
      %2279 = vmatpush2.bf16.msra.mxu0 0
      %2280 = vmatprep.subr.bf16.mxu0 0
      %2281 = vmatpush2.bf16.msra.mxu0 0
      %2282 = vmatprep.mubr.bf16.mxu0 0
      %2283 = vmatmul.mubr.bf16.gmra.mxu0 %v2248
      %v2284 = vpop.f32.mrf.mxu0
      %v2285 = vadd.f32 0.0, %v2284
      %v2286 = vpop.f32.mrf.mxu0
      %v2287 = vpop.f32.mrf.mxu0
      %v2288 = vpop.f32.mrf.mxu0
      %2289 = vdwg.mxu0
      %v2291 = vsel %vm1988, %v1267, 0
      %2293 = vmatprep.subr.bf16.mxu0 0
      %2294 = vmatpush1.bf16.msra.mxu0 0
      %2295 = vmatprep.subr.bf16.mxu0 0
      %2296 = vmatpush1.bf16.msra.mxu0 0
      %2297 = vmatprep.subr.bf16.mxu0 0
      %2298 = vmatpush1.bf16.msra.mxu0 0
      %2299 = vmatprep.subr.bf16.mxu0 0
      %2300 = vmatpush1.bf16.msra.mxu0 0
      %2301 = vmatprep.subr.bf16.mxu0 0
      %2302 = vmatpush1.bf16.msra.mxu0 0
      %2303 = vmatprep.subr.bf16.mxu0 0
      %2304 = vmatpush1.bf16.msra.mxu0 0
      %2305 = vmatprep.subr.bf16.mxu0 0
      %2306 = vmatpush1.bf16.msra.mxu0 0
      %2307 = vmatprep.subr.bf16.mxu0 0
      %2308 = vmatpush1.bf16.msra.mxu0 %v1986
      %2309 = vmatprep.subr.bf16.mxu0 0
      %2310 = vmatpush2.bf16.msra.mxu0 0
      %2311 = vmatprep.subr.bf16.mxu0 0
      %2312 = vmatpush2.bf16.msra.mxu0 0
      %2313 = vmatprep.subr.bf16.mxu0 0
      %2314 = vmatpush2.bf16.msra.mxu0 0
      %2315 = vmatprep.subr.bf16.mxu0 0
      %2316 = vmatpush2.bf16.msra.mxu0 0
      %2317 = vmatprep.subr.bf16.mxu0 0
      %2318 = vmatpush2.bf16.msra.mxu0 0
      %2319 = vmatprep.subr.bf16.mxu0 0
      %2320 = vmatpush2.bf16.msra.mxu0 0
      %2321 = vmatprep.subr.bf16.mxu0 0
      %2322 = vmatpush2.bf16.msra.mxu0 0
      %2323 = vmatprep.subr.bf16.mxu0 0
      %2324 = vmatpush2.bf16.msra.mxu0 0
      %2325 = vmatprep.mubr.bf16.mxu0 0
      %2326 = vmatmul.mubr.bf16.gmra.mxu0 %v2291
      %v2327 = vpop.f32.mrf.mxu0
      %v2328 = vadd.f32 0.0, %v2327
      %v2329 = vpop.f32.mrf.mxu0
      %v2330 = vpop.f32.mrf.mxu0
      %v2331 = vpop.f32.mrf.mxu0
      %2332 = vdwg.mxu0
      %v2333 = vsel %vm418, %v2027, -inf
      %2334 = vmax.xlane.f32.xlu0 %v2333
      %v2335 = vpop.xlane.xlu0 %2334
      %v2336 = vsel %vm418, %v2070, -inf
      %2337 = vmax.xlane.f32.xlu0 %v2336
      %v2338 = vpop.xlane.xlu0 %2337
      %v2339 = vsel %vm418, %v2113, -inf
      %2340 = vmax.xlane.f32.xlu0 %v2339
      %v2341 = vpop.xlane.xlu0 %2340
      %v2342 = vsel %vm418, %v2156, -inf
      %2343 = vmax.xlane.f32.xlu0 %v2342
      %v2344 = vpop.xlane.xlu0 %2343
      %v2345 = vsel %vm418, %v2199, -inf
      %2346 = vmax.xlane.f32.xlu0 %v2345
      %v2347 = vpop.xlane.xlu0 %2346
      %v2348 = vsel %vm418, %v2242, -inf
      %2349 = vmax.xlane.f32.xlu0 %v2348
      %v2350 = vpop.xlane.xlu0 %2349
      %v2351 = vsel %vm418, %v2285, -inf
      %2352 = vmax.xlane.f32.xlu0 %v2351
      %v2353 = vpop.xlane.xlu0 %2352
      %v2354 = vsel %vm418, %v2328, -inf
      %2355 = vmax.xlane.f32.xlu0 %v2354
      %v2356 = vpop.xlane.xlu0 %2355
      %v2357 = vsub.f32 %v2027, %v2335
      %v2358 = vsub.f32 %v2070, %v2338
      %v2359 = vsub.f32 %v2113, %v2341
      %v2360 = vsub.f32 %v2156, %v2344
      %v2361 = vsub.f32 %v2199, %v2347
      %v2362 = vsub.f32 %v2242, %v2350
      %v2363 = vsub.f32 %v2285, %v2353
      %v2364 = vsub.f32 %v2328, %v2356
      %v2365 = vmul.f32 %v2357, 1.442695
      %v2366 = vpow.pop %v2365
      %v2367 = vmul.f32 %v2358, 1.442695
      %v2368 = vpow.pop %v2367
      %v2369 = vmul.f32 %v2359, 1.442695
      %v2370 = vpow.pop %v2369
      %v2371 = vmul.f32 %v2360, 1.442695
      %v2372 = vpow.pop %v2371
      %v2373 = vmul.f32 %v2361, 1.442695
      %v2374 = vpow.pop %v2373
      %v2375 = vmul.f32 %v2362, 1.442695
      %v2376 = vpow.pop %v2375
      %v2377 = vmul.f32 %v2363, 1.442695
      %v2378 = vpow.pop %v2377
      %v2379 = vmul.f32 %v2364, 1.442695
      %v2380 = vpow.pop %v2379
      %v2381 = vsel %vm418, %v2366, 0.0
      %2382 = vadd.xlane.f32.xlu0 %v2381
      %v2383 = vpop.xlane.xlu0 %2382
      %v2384 = vsel %vm418, %v2368, 0.0
      %2385 = vadd.xlane.f32.xlu0 %v2384
      %v2386 = vpop.xlane.xlu0 %2385
      %v2387 = vsel %vm418, %v2370, 0.0
      %2388 = vadd.xlane.f32.xlu0 %v2387
      %v2389 = vpop.xlane.xlu0 %2388
      %v2390 = vsel %vm418, %v2372, 0.0
      %2391 = vadd.xlane.f32.xlu0 %v2390
      %v2392 = vpop.xlane.xlu0 %2391
      %v2393 = vsel %vm418, %v2374, 0.0
      %2394 = vadd.xlane.f32.xlu0 %v2393
      %v2395 = vpop.xlane.xlu0 %2394
      %v2396 = vsel %vm418, %v2376, 0.0
      %2397 = vadd.xlane.f32.xlu0 %v2396
      %v2398 = vpop.xlane.xlu0 %2397
      %v2399 = vsel %vm418, %v2378, 0.0
      %2400 = vadd.xlane.f32.xlu0 %v2399
      %v2401 = vpop.xlane.xlu0 %2400
      %v2402 = vsel %vm418, %v2380, 0.0
      %2403 = vadd.xlane.f32.xlu0 %v2402
      %v2404 = vpop.xlane.xlu0 %2403
      %v2405 = vrcp.pop %v2383
      %v2406 = vrcp.pop %v2386
      %v2407 = vrcp.pop %v2389
      %v2408 = vrcp.pop %v2392
      %v2409 = vrcp.pop %v2395
      %v2410 = vrcp.pop %v2398
      %v2411 = vrcp.pop %v2401
      %v2412 = vrcp.pop %v2404
      %v2413 = vmul.f32 %v2366, %v2405
      %v2414 = vmul.f32 %v2368, %v2406
      %v2415 = vmul.f32 %v2370, %v2407
      %v2416 = vmul.f32 %v2372, %v2408
      %v2417 = vmul.f32 %v2374, %v2409
      %v2418 = vmul.f32 %v2376, %v2410
      %v2419 = vmul.f32 %v2378, %v2411
      %v2420 = vmul.f32 %v2380, %v2412
      %v2421 = vpack.c.bf16 %v2413, %v2413
      %v2422 = vpack.c.bf16 %v2414, %v2414
      %v2423 = vpack.c.bf16 %v2415, %v2415
      %v2424 = vpack.c.bf16 %v2416, %v2416
      %v2425 = vpack.c.bf16 %v2417, %v2417
      %v2426 = vpack.c.bf16 %v2418, %v2418
      %v2427 = vpack.c.bf16 %v2419, %v2419
      %v2428 = vpack.c.bf16 %v2420, %v2420
      %2429 = vxpose.xlu0.c.b16.start [1/8] %v1168, 128
      %2430 = vxpose.xlu0.c.b16.cont [2/8] 0, 128
      %2431 = vxpose.xlu0.c.b16.cont [3/8] 0, 128
      %2432 = vxpose.xlu0.c.b16.cont [4/8] 0, 128
      %2433 = vxpose.xlu0.c.b16.cont [5/8] 0, 128
      %2434 = vxpose.xlu0.c.b16.cont [6/8] 0, 128
      %2435 = vxpose.xlu0.c.b16.cont [7/8] 0, 128
      %2436 = vxpose.xlu0.c.b16.end [8/8] 0, 128
      %v2437 = vpop.trf.xlu0
      %v2438 = vpop.trf.xlu0
      %v2439 = vpop.trf.xlu0
      %v2440 = vpop.trf.xlu0
      %v2441 = vpop.trf.xlu0
      %v2442 = vpop.trf.xlu0
      %v2443 = vpop.trf.xlu0
      %v2444 = vpop.trf.xlu0
      %2445 = vxpose.xlu0.c.b16.start [1/8] %v1169, 128
      %2446 = vxpose.xlu0.c.b16.cont [2/8] 0, 128
      %2447 = vxpose.xlu0.c.b16.cont [3/8] 0, 128
      %2448 = vxpose.xlu0.c.b16.cont [4/8] 0, 128
      %2449 = vxpose.xlu0.c.b16.cont [5/8] 0, 128
      %2450 = vxpose.xlu0.c.b16.cont [6/8] 0, 128
      %2451 = vxpose.xlu0.c.b16.cont [7/8] 0, 128
      %2452 = vxpose.xlu0.c.b16.end [8/8] 0, 128
      %v2453 = vpop.trf.xlu0
      %v2454 = vpop.trf.xlu0
      %v2455 = vpop.trf.xlu0
      %v2456 = vpop.trf.xlu0
      %v2457 = vpop.trf.xlu0
      %v2458 = vpop.trf.xlu0
      %v2459 = vpop.trf.xlu0
      %v2460 = vpop.trf.xlu0
      %2461 = vxpose.xlu0.c.b16.start [1/8] %v1170, 128
      %2462 = vxpose.xlu0.c.b16.cont [2/8] 0, 128
      %2463 = vxpose.xlu0.c.b16.cont [3/8] 0, 128
      %2464 = vxpose.xlu0.c.b16.cont [4/8] 0, 128
      %2465 = vxpose.xlu0.c.b16.cont [5/8] 0, 128
      %2466 = vxpose.xlu0.c.b16.cont [6/8] 0, 128
      %2467 = vxpose.xlu0.c.b16.cont [7/8] 0, 128
      %2468 = vxpose.xlu0.c.b16.end [8/8] 0, 128
      %v2469 = vpop.trf.xlu0
      %v2470 = vpop.trf.xlu0
      %v2471 = vpop.trf.xlu0
      %v2472 = vpop.trf.xlu0
      %v2473 = vpop.trf.xlu0
      %v2474 = vpop.trf.xlu0
      %v2475 = vpop.trf.xlu0
      %v2476 = vpop.trf.xlu0
      %2477 = vxpose.xlu0.c.b16.start [1/8] %v1171, 128
      %2478 = vxpose.xlu0.c.b16.cont [2/8] 0, 128
      %2479 = vxpose.xlu0.c.b16.cont [3/8] 0, 128
      %2480 = vxpose.xlu0.c.b16.cont [4/8] 0, 128
      %2481 = vxpose.xlu0.c.b16.cont [5/8] 0, 128
      %2482 = vxpose.xlu0.c.b16.cont [6/8] 0, 128
      %2483 = vxpose.xlu0.c.b16.cont [7/8] 0, 128
      %2484 = vxpose.xlu0.c.b16.end [8/8] 0, 128
      %v2485 = vpop.trf.xlu0
      %v2486 = vpop.trf.xlu0
      %v2487 = vpop.trf.xlu0
      %v2488 = vpop.trf.xlu0
      %v2489 = vpop.trf.xlu0
      %v2490 = vpop.trf.xlu0
      %v2491 = vpop.trf.xlu0
      %v2492 = vpop.trf.xlu0
      %2493 = vxpose.xlu0.c.b16.start [1/8] %v1172, 128
      %2494 = vxpose.xlu0.c.b16.cont [2/8] 0, 128
      %2495 = vxpose.xlu0.c.b16.cont [3/8] 0, 128
      %2496 = vxpose.xlu0.c.b16.cont [4/8] 0, 128
      %2497 = vxpose.xlu0.c.b16.cont [5/8] 0, 128
      %2498 = vxpose.xlu0.c.b16.cont [6/8] 0, 128
      %2499 = vxpose.xlu0.c.b16.cont [7/8] 0, 128
      %2500 = vxpose.xlu0.c.b16.end [8/8] 0, 128
      %v2501 = vpop.trf.xlu0
      %v2502 = vpop.trf.xlu0
      %v2503 = vpop.trf.xlu0
      %v2504 = vpop.trf.xlu0
      %v2505 = vpop.trf.xlu0
      %v2506 = vpop.trf.xlu0
      %v2507 = vpop.trf.xlu0
      %v2508 = vpop.trf.xlu0
      %2509 = vxpose.xlu0.c.b16.start [1/8] %v1173, 128
      %2510 = vxpose.xlu0.c.b16.cont [2/8] 0, 128
      %2511 = vxpose.xlu0.c.b16.cont [3/8] 0, 128
      %2512 = vxpose.xlu0.c.b16.cont [4/8] 0, 128
      %2513 = vxpose.xlu0.c.b16.cont [5/8] 0, 128
      %2514 = vxpose.xlu0.c.b16.cont [6/8] 0, 128
      %2515 = vxpose.xlu0.c.b16.cont [7/8] 0, 128
      %2516 = vxpose.xlu0.c.b16.end [8/8] 0, 128
      %v2517 = vpop.trf.xlu0
      %v2518 = vpop.trf.xlu0
      %v2519 = vpop.trf.xlu0
      %v2520 = vpop.trf.xlu0
      %v2521 = vpop.trf.xlu0
      %v2522 = vpop.trf.xlu0
      %v2523 = vpop.trf.xlu0
      %v2524 = vpop.trf.xlu0
      %2525 = vxpose.xlu0.c.b16.start [1/8] %v1174, 128
      %2526 = vxpose.xlu0.c.b16.cont [2/8] 0, 128
      %2527 = vxpose.xlu0.c.b16.cont [3/8] 0, 128
      %2528 = vxpose.xlu0.c.b16.cont [4/8] 0, 128
      %2529 = vxpose.xlu0.c.b16.cont [5/8] 0, 128
      %2530 = vxpose.xlu0.c.b16.cont [6/8] 0, 128
      %2531 = vxpose.xlu0.c.b16.cont [7/8] 0, 128
      %2532 = vxpose.xlu0.c.b16.end [8/8] 0, 128
      %v2533 = vpop.trf.xlu0
      %v2534 = vpop.trf.xlu0
      %v2535 = vpop.trf.xlu0
      %v2536 = vpop.trf.xlu0
      %v2537 = vpop.trf.xlu0
      %v2538 = vpop.trf.xlu0
      %v2539 = vpop.trf.xlu0
      %v2540 = vpop.trf.xlu0
      %2541 = vxpose.xlu0.c.b16.start [1/8] %v1175, 128
      %2542 = vxpose.xlu0.c.b16.cont [2/8] 0, 128
      %2543 = vxpose.xlu0.c.b16.cont [3/8] 0, 128
      %2544 = vxpose.xlu0.c.b16.cont [4/8] 0, 128
      %2545 = vxpose.xlu0.c.b16.cont [5/8] 0, 128
      %2546 = vxpose.xlu0.c.b16.cont [6/8] 0, 128
      %2547 = vxpose.xlu0.c.b16.cont [7/8] 0, 128
      %2548 = vxpose.xlu0.c.b16.end [8/8] 0, 128
      %v2549 = vpop.trf.xlu0
      %v2550 = vpop.trf.xlu0
      %v2551 = vpop.trf.xlu0
      %v2552 = vpop.trf.xlu0
      %v2553 = vpop.trf.xlu0
      %v2554 = vpop.trf.xlu0
      %v2555 = vpop.trf.xlu0
      %v2556 = vpop.trf.xlu0
      %v2559 = vpack.i.b16 %v2453, %v2437
      %v2561 = vshrl.u32 %v2437, 16
      %v2562 = vshrl.u32 %v2453, 16
      %v2563 = vpack.i.b16 %v2562, %v2561
      %v2567 = vpack.i.b16 %v2485, %v2469
      %v2569 = vshrl.u32 %v2469, 16
      %v2570 = vshrl.u32 %v2485, 16
      %v2571 = vpack.i.b16 %v2570, %v2569
      %v2575 = vpack.i.b16 %v2517, %v2501
      %v2577 = vshrl.u32 %v2501, 16
      %v2578 = vshrl.u32 %v2517, 16
      %v2579 = vpack.i.b16 %v2578, %v2577
      %v2583 = vpack.i.b16 %v2549, %v2533
      %v2585 = vshrl.u32 %v2533, 16
      %v2586 = vshrl.u32 %v2549, 16
      %v2587 = vpack.i.b16 %v2586, %v2585
      %v2589 = vcombine.low %v2559, %v2575
      %v2590 = vcombine.high %v2559, %v2575
      %v2592 = vunpack.c.l.s4 1983009808
      %v2593 = vunpack.c.0.s8 %v2592
      %v2594 = vlaneseq
      %v2595 = vshrl.u32 %v2594, 7
      %v2596 = vsub.s32 %v2593, %v2595
      %v2597 = vrot.slane %v2589, %v2596
      %v2599 = vunpack.c.l.s4 1983009808
      %v2600 = vunpack.c.0.s8 %v2599
      %v2601 = vlaneseq
      %v2602 = vshrl.u32 %v2601, 7
      %v2603 = vsub.s32 %v2600, %v2602
      %v2604 = vrot.slane %v2590, %v2603
      %v2605 = vcombine.low %v2567, %v2583
      %v2606 = vcombine.high %v2567, %v2583
      %v2608 = vunpack.c.l.s4 1983009808
      %v2609 = vunpack.c.0.s8 %v2608
      %v2610 = vlaneseq
      %v2611 = vshrl.u32 %v2610, 7
      %v2612 = vsub.s32 %v2609, %v2611
      %v2613 = vrot.slane %v2605, %v2612
      %v2615 = vunpack.c.l.s4 1983009808
      %v2616 = vunpack.c.0.s8 %v2615
      %v2617 = vlaneseq
      %v2618 = vshrl.u32 %v2617, 7
      %v2619 = vsub.s32 %v2616, %v2618
      %v2620 = vrot.slane %v2606, %v2619
      %v2621 = vcombine.low %v2597, %v2613
      %v2622 = vcombine.high %v2597, %v2613
      %v2624 = vunpack.c.l.s4 1934713408
      %v2625 = vunpack.c.0.s8 %v2624
      %v2626 = vlaneseq
      %v2627 = vshrl.u32 %v2626, 7
      %v2628 = vsub.s32 %v2625, %v2627
      %v2629 = vrot.slane %v2621, %v2628
      %v2631 = vunpack.c.l.s4 1934713408
      %v2632 = vunpack.c.0.s8 %v2631
      %v2633 = vlaneseq
      %v2634 = vshrl.u32 %v2633, 7
      %v2635 = vsub.s32 %v2632, %v2634
      %v2636 = vrot.slane %v2622, %v2635
      %v2637 = vcombine.low %v2604, %v2620
      %v2638 = vcombine.high %v2604, %v2620
      %v2640 = vunpack.c.l.s4 1934713408
      %v2641 = vunpack.c.0.s8 %v2640
      %v2642 = vlaneseq
      %v2643 = vshrl.u32 %v2642, 7
      %v2644 = vsub.s32 %v2641, %v2643
      %v2645 = vrot.slane %v2637, %v2644
      %v2647 = vunpack.c.l.s4 1934713408
      %v2648 = vunpack.c.0.s8 %v2647
      %v2649 = vlaneseq
      %v2650 = vshrl.u32 %v2649, 7
      %v2651 = vsub.s32 %v2648, %v2650
      %v2652 = vrot.slane %v2638, %v2651
      %v2653 = vcombine.high %v2629, 0
      %v2654 = vcombine.high %v2636, 0
      %v2655 = vcombine.high %v2645, 0
      %v2656 = vcombine.high %v2652, 0
      %v2657 = vcombine.low %v2563, %v2579
      %v2658 = vcombine.high %v2563, %v2579
      %v2660 = vunpack.c.l.s4 1983009808
      %v2661 = vunpack.c.0.s8 %v2660
      %v2662 = vlaneseq
      %v2663 = vshrl.u32 %v2662, 7
      %v2664 = vsub.s32 %v2661, %v2663
      %v2665 = vrot.slane %v2657, %v2664
      %v2667 = vunpack.c.l.s4 1983009808
      %v2668 = vunpack.c.0.s8 %v2667
      %v2669 = vlaneseq
      %v2670 = vshrl.u32 %v2669, 7
      %v2671 = vsub.s32 %v2668, %v2670
      %v2672 = vrot.slane %v2658, %v2671
      %v2673 = vcombine.low %v2571, %v2587
      %v2674 = vcombine.high %v2571, %v2587
      %v2676 = vunpack.c.l.s4 1983009808
      %v2677 = vunpack.c.0.s8 %v2676
      %v2678 = vlaneseq
      %v2679 = vshrl.u32 %v2678, 7
      %v2680 = vsub.s32 %v2677, %v2679
      %v2681 = vrot.slane %v2673, %v2680
      %v2683 = vunpack.c.l.s4 1983009808
      %v2684 = vunpack.c.0.s8 %v2683
      %v2685 = vlaneseq
      %v2686 = vshrl.u32 %v2685, 7
      %v2687 = vsub.s32 %v2684, %v2686
      %v2688 = vrot.slane %v2674, %v2687
      %v2689 = vcombine.low %v2665, %v2681
      %v2690 = vcombine.high %v2665, %v2681
      %v2692 = vunpack.c.l.s4 1934713408
      %v2693 = vunpack.c.0.s8 %v2692
      %v2694 = vlaneseq
      %v2695 = vshrl.u32 %v2694, 7
      %v2696 = vsub.s32 %v2693, %v2695
      %v2697 = vrot.slane %v2689, %v2696
      %v2699 = vunpack.c.l.s4 1934713408
      %v2700 = vunpack.c.0.s8 %v2699
      %v2701 = vlaneseq
      %v2702 = vshrl.u32 %v2701, 7
      %v2703 = vsub.s32 %v2700, %v2702
      %v2704 = vrot.slane %v2690, %v2703
      %v2705 = vcombine.low %v2672, %v2688
      %v2706 = vcombine.high %v2672, %v2688
      %v2708 = vunpack.c.l.s4 1934713408
      %v2709 = vunpack.c.0.s8 %v2708
      %v2710 = vlaneseq
      %v2711 = vshrl.u32 %v2710, 7
      %v2712 = vsub.s32 %v2709, %v2711
      %v2713 = vrot.slane %v2705, %v2712
      %v2715 = vunpack.c.l.s4 1934713408
      %v2716 = vunpack.c.0.s8 %v2715
      %v2717 = vlaneseq
      %v2718 = vshrl.u32 %v2717, 7
      %v2719 = vsub.s32 %v2716, %v2718
      %v2720 = vrot.slane %v2706, %v2719
      %v2721 = vcombine.high %v2697, 0
      %v2722 = vcombine.high %v2704, 0
      %v2723 = vcombine.high %v2713, 0
      %v2724 = vcombine.high %v2720, 0
      %2725 = vxpose.xlu0.c.b16.start [1/8] %v2629, 128
      %2726 = vxpose.xlu0.c.b16.cont [2/8] 0, 128
      %2727 = vxpose.xlu0.c.b16.cont [3/8] 0, 128
      %2728 = vxpose.xlu0.c.b16.cont [4/8] 0, 128
      %2729 = vxpose.xlu0.c.b16.cont [5/8] 0, 128
      %2730 = vxpose.xlu0.c.b16.cont [6/8] 0, 128
      %2731 = vxpose.xlu0.c.b16.cont [7/8] 0, 128
      %2732 = vxpose.xlu0.c.b16.end [8/8] 0, 128
      %v2733 = vpop.trf.xlu0
      %v2734 = vpop.trf.xlu0
      %v2735 = vpop.trf.xlu0
      %v2736 = vpop.trf.xlu0
      %v2737 = vpop.trf.xlu0
      %v2738 = vpop.trf.xlu0
      %v2739 = vpop.trf.xlu0
      %v2740 = vpop.trf.xlu0
      %2741 = vxpose.xlu0.c.b16.start [1/8] %v2697, 128
      %2742 = vxpose.xlu0.c.b16.cont [2/8] 0, 128
      %2743 = vxpose.xlu0.c.b16.cont [3/8] 0, 128
      %2744 = vxpose.xlu0.c.b16.cont [4/8] 0, 128
      %2745 = vxpose.xlu0.c.b16.cont [5/8] 0, 128
      %2746 = vxpose.xlu0.c.b16.cont [6/8] 0, 128
      %2747 = vxpose.xlu0.c.b16.cont [7/8] 0, 128
      %2748 = vxpose.xlu0.c.b16.end [8/8] 0, 128
      %v2749 = vpop.trf.xlu0
      %v2750 = vpop.trf.xlu0
      %v2751 = vpop.trf.xlu0
      %v2752 = vpop.trf.xlu0
      %v2753 = vpop.trf.xlu0
      %v2754 = vpop.trf.xlu0
      %v2755 = vpop.trf.xlu0
      %v2756 = vpop.trf.xlu0
      %2757 = vxpose.xlu0.c.b16.start [1/8] %v2653, 128
      %2758 = vxpose.xlu0.c.b16.cont [2/8] 0, 128
      %2759 = vxpose.xlu0.c.b16.cont [3/8] 0, 128
      %2760 = vxpose.xlu0.c.b16.cont [4/8] 0, 128
      %2761 = vxpose.xlu0.c.b16.cont [5/8] 0, 128
      %2762 = vxpose.xlu0.c.b16.cont [6/8] 0, 128
      %2763 = vxpose.xlu0.c.b16.cont [7/8] 0, 128
      %2764 = vxpose.xlu0.c.b16.end [8/8] 0, 128
      %v2765 = vpop.trf.xlu0
      %v2766 = vpop.trf.xlu0
      %v2767 = vpop.trf.xlu0
      %v2768 = vpop.trf.xlu0
      %v2769 = vpop.trf.xlu0
      %v2770 = vpop.trf.xlu0
      %v2771 = vpop.trf.xlu0
      %v2772 = vpop.trf.xlu0
      %2773 = vxpose.xlu0.c.b16.start [1/8] %v2721, 128
      %2774 = vxpose.xlu0.c.b16.cont [2/8] 0, 128
      %2775 = vxpose.xlu0.c.b16.cont [3/8] 0, 128
      %2776 = vxpose.xlu0.c.b16.cont [4/8] 0, 128
      %2777 = vxpose.xlu0.c.b16.cont [5/8] 0, 128
      %2778 = vxpose.xlu0.c.b16.cont [6/8] 0, 128
      %2779 = vxpose.xlu0.c.b16.cont [7/8] 0, 128
      %2780 = vxpose.xlu0.c.b16.end [8/8] 0, 128
      %v2781 = vpop.trf.xlu0
      %v2782 = vpop.trf.xlu0
      %v2783 = vpop.trf.xlu0
      %v2784 = vpop.trf.xlu0
      %v2785 = vpop.trf.xlu0
      %v2786 = vpop.trf.xlu0
      %v2787 = vpop.trf.xlu0
      %v2788 = vpop.trf.xlu0
      %2789 = vxpose.xlu0.c.b16.start [1/8] %v2636, 128
      %2790 = vxpose.xlu0.c.b16.cont [2/8] 0, 128
      %2791 = vxpose.xlu0.c.b16.cont [3/8] 0, 128
      %2792 = vxpose.xlu0.c.b16.cont [4/8] 0, 128
      %2793 = vxpose.xlu0.c.b16.cont [5/8] 0, 128
      %2794 = vxpose.xlu0.c.b16.cont [6/8] 0, 128
      %2795 = vxpose.xlu0.c.b16.cont [7/8] 0, 128
      %2796 = vxpose.xlu0.c.b16.end [8/8] 0, 128
      %v2797 = vpop.trf.xlu0
      %v2798 = vpop.trf.xlu0
      %v2799 = vpop.trf.xlu0
      %v2800 = vpop.trf.xlu0
      %v2801 = vpop.trf.xlu0
      %v2802 = vpop.trf.xlu0
      %v2803 = vpop.trf.xlu0
      %v2804 = vpop.trf.xlu0
      %2805 = vxpose.xlu0.c.b16.start [1/8] %v2704, 128
      %2806 = vxpose.xlu0.c.b16.cont [2/8] 0, 128
      %2807 = vxpose.xlu0.c.b16.cont [3/8] 0, 128
      %2808 = vxpose.xlu0.c.b16.cont [4/8] 0, 128
      %2809 = vxpose.xlu0.c.b16.cont [5/8] 0, 128
      %2810 = vxpose.xlu0.c.b16.cont [6/8] 0, 128
      %2811 = vxpose.xlu0.c.b16.cont [7/8] 0, 128
      %2812 = vxpose.xlu0.c.b16.end [8/8] 0, 128
      %v2813 = vpop.trf.xlu0
      %v2814 = vpop.trf.xlu0
      %v2815 = vpop.trf.xlu0
      %v2816 = vpop.trf.xlu0
      %v2817 = vpop.trf.xlu0
      %v2818 = vpop.trf.xlu0
      %v2819 = vpop.trf.xlu0
      %v2820 = vpop.trf.xlu0
      %2821 = vxpose.xlu0.c.b16.start [1/8] %v2654, 128
      %2822 = vxpose.xlu0.c.b16.cont [2/8] 0, 128
      %2823 = vxpose.xlu0.c.b16.cont [3/8] 0, 128
      %2824 = vxpose.xlu0.c.b16.cont [4/8] 0, 128
      %2825 = vxpose.xlu0.c.b16.cont [5/8] 0, 128
      %2826 = vxpose.xlu0.c.b16.cont [6/8] 0, 128
      %2827 = vxpose.xlu0.c.b16.cont [7/8] 0, 128
      %2828 = vxpose.xlu0.c.b16.end [8/8] 0, 128
      %v2829 = vpop.trf.xlu0
      %v2830 = vpop.trf.xlu0
      %v2831 = vpop.trf.xlu0
      %v2832 = vpop.trf.xlu0
      %v2833 = vpop.trf.xlu0
      %v2834 = vpop.trf.xlu0
      %v2835 = vpop.trf.xlu0
      %v2836 = vpop.trf.xlu0
      %2837 = vxpose.xlu0.c.b16.start [1/8] %v2722, 128
      %2838 = vxpose.xlu0.c.b16.cont [2/8] 0, 128
      %2839 = vxpose.xlu0.c.b16.cont [3/8] 0, 128
      %2840 = vxpose.xlu0.c.b16.cont [4/8] 0, 128
      %2841 = vxpose.xlu0.c.b16.cont [5/8] 0, 128
      %2842 = vxpose.xlu0.c.b16.cont [6/8] 0, 128
      %2843 = vxpose.xlu0.c.b16.cont [7/8] 0, 128
      %2844 = vxpose.xlu0.c.b16.end [8/8] 0, 128
      %v2845 = vpop.trf.xlu0
      %v2846 = vpop.trf.xlu0
      %v2847 = vpop.trf.xlu0
      %v2848 = vpop.trf.xlu0
      %v2849 = vpop.trf.xlu0
      %v2850 = vpop.trf.xlu0
      %v2851 = vpop.trf.xlu0
      %v2852 = vpop.trf.xlu0
      %2853 = vxpose.xlu0.c.b16.start [1/8] %v2645, 128
      %2854 = vxpose.xlu0.c.b16.cont [2/8] 0, 128
      %2855 = vxpose.xlu0.c.b16.cont [3/8] 0, 128
      %2856 = vxpose.xlu0.c.b16.cont [4/8] 0, 128
      %2857 = vxpose.xlu0.c.b16.cont [5/8] 0, 128
      %2858 = vxpose.xlu0.c.b16.cont [6/8] 0, 128
      %2859 = vxpose.xlu0.c.b16.cont [7/8] 0, 128
      %2860 = vxpose.xlu0.c.b16.end [8/8] 0, 128
      %v2861 = vpop.trf.xlu0
      %v2862 = vpop.trf.xlu0
      %v2863 = vpop.trf.xlu0
      %v2864 = vpop.trf.xlu0
      %v2865 = vpop.trf.xlu0
      %v2866 = vpop.trf.xlu0
      %v2867 = vpop.trf.xlu0
      %v2868 = vpop.trf.xlu0
      %2869 = vxpose.xlu0.c.b16.start [1/8] %v2713, 128
      %2870 = vxpose.xlu0.c.b16.cont [2/8] 0, 128
      %2871 = vxpose.xlu0.c.b16.cont [3/8] 0, 128
      %2872 = vxpose.xlu0.c.b16.cont [4/8] 0, 128
      %2873 = vxpose.xlu0.c.b16.cont [5/8] 0, 128
      %2874 = vxpose.xlu0.c.b16.cont [6/8] 0, 128
      %2875 = vxpose.xlu0.c.b16.cont [7/8] 0, 128
      %2876 = vxpose.xlu0.c.b16.end [8/8] 0, 128
      %v2877 = vpop.trf.xlu0
      %v2878 = vpop.trf.xlu0
      %v2879 = vpop.trf.xlu0
      %v2880 = vpop.trf.xlu0
      %v2881 = vpop.trf.xlu0
      %v2882 = vpop.trf.xlu0
      %v2883 = vpop.trf.xlu0
      %v2884 = vpop.trf.xlu0
      %2885 = vxpose.xlu0.c.b16.start [1/8] %v2655, 128
      %2886 = vxpose.xlu0.c.b16.cont [2/8] 0, 128
      %2887 = vxpose.xlu0.c.b16.cont [3/8] 0, 128
      %2888 = vxpose.xlu0.c.b16.cont [4/8] 0, 128
      %2889 = vxpose.xlu0.c.b16.cont [5/8] 0, 128
      %2890 = vxpose.xlu0.c.b16.cont [6/8] 0, 128
      %2891 = vxpose.xlu0.c.b16.cont [7/8] 0, 128
      %2892 = vxpose.xlu0.c.b16.end [8/8] 0, 128
      %v2893 = vpop.trf.xlu0
      %v2894 = vpop.trf.xlu0
      %v2895 = vpop.trf.xlu0
      %v2896 = vpop.trf.xlu0
      %v2897 = vpop.trf.xlu0
      %v2898 = vpop.trf.xlu0
      %v2899 = vpop.trf.xlu0
      %v2900 = vpop.trf.xlu0
      %2901 = vxpose.xlu0.c.b16.start [1/8] %v2723, 128
      %2902 = vxpose.xlu0.c.b16.cont [2/8] 0, 128
      %2903 = vxpose.xlu0.c.b16.cont [3/8] 0, 128
      %2904 = vxpose.xlu0.c.b16.cont [4/8] 0, 128
      %2905 = vxpose.xlu0.c.b16.cont [5/8] 0, 128
      %2906 = vxpose.xlu0.c.b16.cont [6/8] 0, 128
      %2907 = vxpose.xlu0.c.b16.cont [7/8] 0, 128
      %2908 = vxpose.xlu0.c.b16.end [8/8] 0, 128
      %v2909 = vpop.trf.xlu0
      %v2910 = vpop.trf.xlu0
      %v2911 = vpop.trf.xlu0
      %v2912 = vpop.trf.xlu0
      %v2913 = vpop.trf.xlu0
      %v2914 = vpop.trf.xlu0
      %v2915 = vpop.trf.xlu0
      %v2916 = vpop.trf.xlu0
      %2917 = vxpose.xlu0.c.b16.start [1/8] %v2652, 128
      %2918 = vxpose.xlu0.c.b16.cont [2/8] 0, 128
      %2919 = vxpose.xlu0.c.b16.cont [3/8] 0, 128
      %2920 = vxpose.xlu0.c.b16.cont [4/8] 0, 128
      %2921 = vxpose.xlu0.c.b16.cont [5/8] 0, 128
      %2922 = vxpose.xlu0.c.b16.cont [6/8] 0, 128
      %2923 = vxpose.xlu0.c.b16.cont [7/8] 0, 128
      %2924 = vxpose.xlu0.c.b16.end [8/8] 0, 128
      %v2925 = vpop.trf.xlu0
      %v2926 = vpop.trf.xlu0
      %v2927 = vpop.trf.xlu0
      %v2928 = vpop.trf.xlu0
      %v2929 = vpop.trf.xlu0
      %v2930 = vpop.trf.xlu0
      %v2931 = vpop.trf.xlu0
      %v2932 = vpop.trf.xlu0
      %2933 = vxpose.xlu0.c.b16.start [1/8] %v2720, 128
      %2934 = vxpose.xlu0.c.b16.cont [2/8] 0, 128
      %2935 = vxpose.xlu0.c.b16.cont [3/8] 0, 128
      %2936 = vxpose.xlu0.c.b16.cont [4/8] 0, 128
      %2937 = vxpose.xlu0.c.b16.cont [5/8] 0, 128
      %2938 = vxpose.xlu0.c.b16.cont [6/8] 0, 128
      %2939 = vxpose.xlu0.c.b16.cont [7/8] 0, 128
      %2940 = vxpose.xlu0.c.b16.end [8/8] 0, 128
      %v2941 = vpop.trf.xlu0
      %v2942 = vpop.trf.xlu0
      %v2943 = vpop.trf.xlu0
      %v2944 = vpop.trf.xlu0
      %v2945 = vpop.trf.xlu0
      %v2946 = vpop.trf.xlu0
      %v2947 = vpop.trf.xlu0
      %v2948 = vpop.trf.xlu0
      %2949 = vxpose.xlu0.c.b16.start [1/8] %v2656, 128
      %2950 = vxpose.xlu0.c.b16.cont [2/8] 0, 128
      %2951 = vxpose.xlu0.c.b16.cont [3/8] 0, 128
      %2952 = vxpose.xlu0.c.b16.cont [4/8] 0, 128
      %2953 = vxpose.xlu0.c.b16.cont [5/8] 0, 128
      %2954 = vxpose.xlu0.c.b16.cont [6/8] 0, 128
      %2955 = vxpose.xlu0.c.b16.cont [7/8] 0, 128
      %2956 = vxpose.xlu0.c.b16.end [8/8] 0, 128
      %v2957 = vpop.trf.xlu0
      %v2958 = vpop.trf.xlu0
      %v2959 = vpop.trf.xlu0
      %v2960 = vpop.trf.xlu0
      %v2961 = vpop.trf.xlu0
      %v2962 = vpop.trf.xlu0
      %v2963 = vpop.trf.xlu0
      %v2964 = vpop.trf.xlu0
      %2965 = vxpose.xlu0.c.b16.start [1/8] %v2724, 128
      %2966 = vxpose.xlu0.c.b16.cont [2/8] 0, 128
      %2967 = vxpose.xlu0.c.b16.cont [3/8] 0, 128
      %2968 = vxpose.xlu0.c.b16.cont [4/8] 0, 128
      %2969 = vxpose.xlu0.c.b16.cont [5/8] 0, 128
      %2970 = vxpose.xlu0.c.b16.cont [6/8] 0, 128
      %2971 = vxpose.xlu0.c.b16.cont [7/8] 0, 128
      %2972 = vxpose.xlu0.c.b16.end [8/8] 0, 128
      %v2973 = vpop.trf.xlu0
      %v2974 = vpop.trf.xlu0
      %v2975 = vpop.trf.xlu0
      %v2976 = vpop.trf.xlu0
      %v2977 = vpop.trf.xlu0
      %v2978 = vpop.trf.xlu0
      %v2979 = vpop.trf.xlu0
      %v2980 = vpop.trf.xlu0
      %v2981 = vcombine.low %v2733, %v2797
      %v2983 = vunpack.c.l.s4 1983009808
      %v2984 = vunpack.c.0.s8 %v2983
      %v2985 = vlaneseq
      %v2986 = vshrl.u32 %v2985, 7
      %v2987 = vsub.s32 %v2984, %v2986
      %v2988 = vrot.slane %v2981, %v2987
      %v2989 = vcombine.low %v2765, %v2829
      %v2991 = vunpack.c.l.s4 1983009808
      %v2992 = vunpack.c.0.s8 %v2991
      %v2993 = vlaneseq
      %v2994 = vshrl.u32 %v2993, 7
      %v2995 = vsub.s32 %v2992, %v2994
      %v2996 = vrot.slane %v2989, %v2995
      %v2997 = vcombine.low %v2861, %v2925
      %v2999 = vunpack.c.l.s4 1983009808
      %v3000 = vunpack.c.0.s8 %v2999
      %v3001 = vlaneseq
      %v3002 = vshrl.u32 %v3001, 7
      %v3003 = vsub.s32 %v3000, %v3002
      %v3004 = vrot.slane %v2997, %v3003
      %v3005 = vcombine.low %v2893, %v2957
      %v3007 = vunpack.c.l.s4 1983009808
      %v3008 = vunpack.c.0.s8 %v3007
      %v3009 = vlaneseq
      %v3010 = vshrl.u32 %v3009, 7
      %v3011 = vsub.s32 %v3008, %v3010
      %v3012 = vrot.slane %v3005, %v3011
      %v3013 = vcombine.low %v2988, %v2996
      %v3014 = vcombine.high %v2988, %v2996
      %v3016 = vunpack.c.l.s4 1934713408
      %v3017 = vunpack.c.0.s8 %v3016
      %v3018 = vlaneseq
      %v3019 = vshrl.u32 %v3018, 7
      %v3020 = vsub.s32 %v3017, %v3019
      %v3021 = vrot.slane %v3013, %v3020
      %v3023 = vunpack.c.l.s4 1934713408
      %v3024 = vunpack.c.0.s8 %v3023
      %v3025 = vlaneseq
      %v3026 = vshrl.u32 %v3025, 7
      %v3027 = vsub.s32 %v3024, %v3026
      %v3028 = vrot.slane %v3014, %v3027
      %v3029 = vcombine.low %v3004, %v3012
      %v3030 = vcombine.high %v3004, %v3012
      %v3032 = vunpack.c.l.s4 1934713408
      %v3033 = vunpack.c.0.s8 %v3032
      %v3034 = vlaneseq
      %v3035 = vshrl.u32 %v3034, 7
      %v3036 = vsub.s32 %v3033, %v3035
      %v3037 = vrot.slane %v3029, %v3036
      %v3039 = vunpack.c.l.s4 1934713408
      %v3040 = vunpack.c.0.s8 %v3039
      %v3041 = vlaneseq
      %v3042 = vshrl.u32 %v3041, 7
      %v3043 = vsub.s32 %v3040, %v3042
      %v3044 = vrot.slane %v3030, %v3043
      %v3045 = vcombine.low %v3021, %v3037
      %v3046 = vcombine.high %v3021, %v3037
      %v3047 = vcombine.low %v3028, %v3044
      %v3048 = vcombine.high %v3028, %v3044
      %v3049 = vcombine.low %v2749, %v2813
      %v3051 = vunpack.c.l.s4 1983009808
      %v3052 = vunpack.c.0.s8 %v3051
      %v3053 = vlaneseq
      %v3054 = vshrl.u32 %v3053, 7
      %v3055 = vsub.s32 %v3052, %v3054
      %v3056 = vrot.slane %v3049, %v3055
      %v3057 = vcombine.low %v2781, %v2845
      %v3059 = vunpack.c.l.s4 1983009808
      %v3060 = vunpack.c.0.s8 %v3059
      %v3061 = vlaneseq
      %v3062 = vshrl.u32 %v3061, 7
      %v3063 = vsub.s32 %v3060, %v3062
      %v3064 = vrot.slane %v3057, %v3063
      %v3065 = vcombine.low %v2877, %v2941
      %v3067 = vunpack.c.l.s4 1983009808
      %v3068 = vunpack.c.0.s8 %v3067
      %v3069 = vlaneseq
      %v3070 = vshrl.u32 %v3069, 7
      %v3071 = vsub.s32 %v3068, %v3070
      %v3072 = vrot.slane %v3065, %v3071
      %v3073 = vcombine.low %v2909, %v2973
      %v3075 = vunpack.c.l.s4 1983009808
      %v3076 = vunpack.c.0.s8 %v3075
      %v3077 = vlaneseq
      %v3078 = vshrl.u32 %v3077, 7
      %v3079 = vsub.s32 %v3076, %v3078
      %v3080 = vrot.slane %v3073, %v3079
      %v3081 = vcombine.low %v3056, %v3064
      %v3082 = vcombine.high %v3056, %v3064
      %v3084 = vunpack.c.l.s4 1934713408
      %v3085 = vunpack.c.0.s8 %v3084
      %v3086 = vlaneseq
      %v3087 = vshrl.u32 %v3086, 7
      %v3088 = vsub.s32 %v3085, %v3087
      %v3089 = vrot.slane %v3081, %v3088
      %v3091 = vunpack.c.l.s4 1934713408
      %v3092 = vunpack.c.0.s8 %v3091
      %v3093 = vlaneseq
      %v3094 = vshrl.u32 %v3093, 7
      %v3095 = vsub.s32 %v3092, %v3094
      %v3096 = vrot.slane %v3082, %v3095
      %v3097 = vcombine.low %v3072, %v3080
      %v3098 = vcombine.high %v3072, %v3080
      %v3100 = vunpack.c.l.s4 1934713408
      %v3101 = vunpack.c.0.s8 %v3100
      %v3102 = vlaneseq
      %v3103 = vshrl.u32 %v3102, 7
      %v3104 = vsub.s32 %v3101, %v3103
      %v3105 = vrot.slane %v3097, %v3104
      %v3107 = vunpack.c.l.s4 1934713408
      %v3108 = vunpack.c.0.s8 %v3107
      %v3109 = vlaneseq
      %v3110 = vshrl.u32 %v3109, 7
      %v3111 = vsub.s32 %v3108, %v3110
      %v3112 = vrot.slane %v3098, %v3111
      %v3113 = vcombine.low %v3089, %v3105
      %v3114 = vcombine.high %v3089, %v3105
      %v3115 = vcombine.low %v3096, %v3112
      %v3116 = vcombine.high %v3096, %v3112
      %v3119 = vpack.i.b16 %v3113, %v3045
      %v3120 = vshrl.u32 %v3045, 16
      %v3121 = vshrl.u32 %v3113, 16
      %v3122 = vpack.i.b16 %v3121, %v3120
      %v3125 = vpack.i.b16 %v3114, %v3046
      %v3126 = vshrl.u32 %v3046, 16
      %v3127 = vshrl.u32 %v3114, 16
      %v3128 = vpack.i.b16 %v3127, %v3126
      %v3131 = vpack.i.b16 %v3115, %v3047
      %v3132 = vshrl.u32 %v3047, 16
      %v3133 = vshrl.u32 %v3115, 16
      %v3134 = vpack.i.b16 %v3133, %v3132
      %v3137 = vpack.i.b16 %v3116, %v3048
      %v3138 = vshrl.u32 %v3048, 16
      %v3139 = vshrl.u32 %v3116, 16
      %v3140 = vpack.i.b16 %v3139, %v3138
      %v3142 = vsel %vm418, %v3119, 0
      %v3145 = vsel %vm418, %v2421, 0
      %3147 = vmatprep.subr.bf16.mxu0 0
      %3148 = vmatpush1.bf16.xpose.msra.mxu0 0
      %3149 = vmatprep.subr.bf16.mxu0 0
      %3150 = vmatpush1.bf16.xpose.msra.mxu0 0
      %3151 = vmatprep.subr.bf16.mxu0 0
      %3152 = vmatpush1.bf16.xpose.msra.mxu0 0
      %3153 = vmatprep.subr.bf16.mxu0 0
      %3154 = vmatpush1.bf16.xpose.msra.mxu0 0
      %3155 = vmatprep.subr.bf16.mxu0 0
      %3156 = vmatpush1.bf16.xpose.msra.mxu0 0
      %3157 = vmatprep.subr.bf16.mxu0 0
      %3158 = vmatpush1.bf16.xpose.msra.mxu0 0
      %3159 = vmatprep.subr.bf16.mxu0 0
      %3160 = vmatpush1.bf16.xpose.msra.mxu0 0
      %3161 = vmatprep.subr.bf16.mxu0 0
      %3162 = vmatpush1.bf16.xpose.msra.mxu0 %v3145
      %3163 = vmatprep.subr.bf16.mxu0 0
      %3164 = vmatpush2.bf16.xpose.msra.mxu0 0
      %3165 = vmatprep.subr.bf16.mxu0 0
      %3166 = vmatpush2.bf16.xpose.msra.mxu0 0
      %3167 = vmatprep.subr.bf16.mxu0 0
      %3168 = vmatpush2.bf16.xpose.msra.mxu0 0
      %3169 = vmatprep.subr.bf16.mxu0 0
      %3170 = vmatpush2.bf16.xpose.msra.mxu0 0
      %3171 = vmatprep.subr.bf16.mxu0 0
      %3172 = vmatpush2.bf16.xpose.msra.mxu0 0
      %3173 = vmatprep.subr.bf16.mxu0 0
      %3174 = vmatpush2.bf16.xpose.msra.mxu0 0
      %3175 = vmatprep.subr.bf16.mxu0 0
      %3176 = vmatpush2.bf16.xpose.msra.mxu0 0
      %3177 = vmatprep.subr.bf16.mxu0 0
      %3178 = vmatpush2.bf16.xpose.msra.mxu0 0
      %3179 = vmatprep.mubr.bf16.mxu0 0
      %3180 = vmatmul.mubr.bf16.gmra.mxu0 %v3142
      %v3181 = vpop.f32.mrf.mxu0
      %v3182 = vadd.f32 0.0, %v3181
      %v3183 = vpop.f32.mrf.mxu0
      %v3184 = vpop.f32.mrf.mxu0
      %v3185 = vadd.f32 0.0, %v3184
      %v3186 = vpop.f32.mrf.mxu0
      %3187 = vdwg.mxu0
      %v3189 = vsel %vm418, %v3122, 0
      %v3192 = vsel %vm418, %v2422, 0
      %3194 = vmatprep.subr.bf16.mxu0 0
      %3195 = vmatpush1.bf16.xpose.msra.mxu0 0
      %3196 = vmatprep.subr.bf16.mxu0 0
      %3197 = vmatpush1.bf16.xpose.msra.mxu0 0
      %3198 = vmatprep.subr.bf16.mxu0 0
      %3199 = vmatpush1.bf16.xpose.msra.mxu0 0
      %3200 = vmatprep.subr.bf16.mxu0 0
      %3201 = vmatpush1.bf16.xpose.msra.mxu0 0
      %3202 = vmatprep.subr.bf16.mxu0 0
      %3203 = vmatpush1.bf16.xpose.msra.mxu0 0
      %3204 = vmatprep.subr.bf16.mxu0 0
      %3205 = vmatpush1.bf16.xpose.msra.mxu0 0
      %3206 = vmatprep.subr.bf16.mxu0 0
      %3207 = vmatpush1.bf16.xpose.msra.mxu0 0
      %3208 = vmatprep.subr.bf16.mxu0 0
      %3209 = vmatpush1.bf16.xpose.msra.mxu0 %v3192
      %3210 = vmatprep.subr.bf16.mxu0 0
      %3211 = vmatpush2.bf16.xpose.msra.mxu0 0
      %3212 = vmatprep.subr.bf16.mxu0 0
      %3213 = vmatpush2.bf16.xpose.msra.mxu0 0
      %3214 = vmatprep.subr.bf16.mxu0 0
      %3215 = vmatpush2.bf16.xpose.msra.mxu0 0
      %3216 = vmatprep.subr.bf16.mxu0 0
      %3217 = vmatpush2.bf16.xpose.msra.mxu0 0
      %3218 = vmatprep.subr.bf16.mxu0 0
      %3219 = vmatpush2.bf16.xpose.msra.mxu0 0
      %3220 = vmatprep.subr.bf16.mxu0 0
      %3221 = vmatpush2.bf16.xpose.msra.mxu0 0
      %3222 = vmatprep.subr.bf16.mxu0 0
      %3223 = vmatpush2.bf16.xpose.msra.mxu0 0
      %3224 = vmatprep.subr.bf16.mxu0 0
      %3225 = vmatpush2.bf16.xpose.msra.mxu0 0
      %3226 = vmatprep.mubr.bf16.mxu0 0
      %3227 = vmatmul.mubr.bf16.gmra.mxu0 %v3189
      %v3228 = vpop.f32.mrf.mxu0
      %v3229 = vadd.f32 0.0, %v3228
      %v3230 = vpop.f32.mrf.mxu0
      %v3231 = vpop.f32.mrf.mxu0
      %v3232 = vadd.f32 0.0, %v3231
      %v3233 = vpop.f32.mrf.mxu0
      %3234 = vdwg.mxu0
      %v3236 = vsel %vm418, %v3125, 0
      %v3239 = vsel %vm418, %v2423, 0
      %3241 = vmatprep.subr.bf16.mxu0 0
      %3242 = vmatpush1.bf16.xpose.msra.mxu0 0
      %3243 = vmatprep.subr.bf16.mxu0 0
      %3244 = vmatpush1.bf16.xpose.msra.mxu0 0
      %3245 = vmatprep.subr.bf16.mxu0 0
      %3246 = vmatpush1.bf16.xpose.msra.mxu0 0
      %3247 = vmatprep.subr.bf16.mxu0 0
      %3248 = vmatpush1.bf16.xpose.msra.mxu0 0
      %3249 = vmatprep.subr.bf16.mxu0 0
      %3250 = vmatpush1.bf16.xpose.msra.mxu0 0
      %3251 = vmatprep.subr.bf16.mxu0 0
      %3252 = vmatpush1.bf16.xpose.msra.mxu0 0
      %3253 = vmatprep.subr.bf16.mxu0 0
      %3254 = vmatpush1.bf16.xpose.msra.mxu0 0
      %3255 = vmatprep.subr.bf16.mxu0 0
      %3256 = vmatpush1.bf16.xpose.msra.mxu0 %v3239
      %3257 = vmatprep.subr.bf16.mxu0 0
      %3258 = vmatpush2.bf16.xpose.msra.mxu0 0
      %3259 = vmatprep.subr.bf16.mxu0 0
      %3260 = vmatpush2.bf16.xpose.msra.mxu0 0
      %3261 = vmatprep.subr.bf16.mxu0 0
      %3262 = vmatpush2.bf16.xpose.msra.mxu0 0
      %3263 = vmatprep.subr.bf16.mxu0 0
      %3264 = vmatpush2.bf16.xpose.msra.mxu0 0
      %3265 = vmatprep.subr.bf16.mxu0 0
      %3266 = vmatpush2.bf16.xpose.msra.mxu0 0
      %3267 = vmatprep.subr.bf16.mxu0 0
      %3268 = vmatpush2.bf16.xpose.msra.mxu0 0
      %3269 = vmatprep.subr.bf16.mxu0 0
      %3270 = vmatpush2.bf16.xpose.msra.mxu0 0
      %3271 = vmatprep.subr.bf16.mxu0 0
      %3272 = vmatpush2.bf16.xpose.msra.mxu0 0
      %3273 = vmatprep.mubr.bf16.mxu0 0
      %3274 = vmatmul.mubr.bf16.gmra.mxu0 %v3236
      %v3275 = vpop.f32.mrf.mxu0
      %v3276 = vadd.f32 0.0, %v3275
      %v3277 = vpop.f32.mrf.mxu0
      %v3278 = vpop.f32.mrf.mxu0
      %v3279 = vadd.f32 0.0, %v3278
      %v3280 = vpop.f32.mrf.mxu0
      %3281 = vdwg.mxu0
      %v3283 = vsel %vm418, %v3128, 0
      %v3286 = vsel %vm418, %v2424, 0
      %3288 = vmatprep.subr.bf16.mxu0 0
      %3289 = vmatpush1.bf16.xpose.msra.mxu0 0
      %3290 = vmatprep.subr.bf16.mxu0 0
      %3291 = vmatpush1.bf16.xpose.msra.mxu0 0
      %3292 = vmatprep.subr.bf16.mxu0 0
      %3293 = vmatpush1.bf16.xpose.msra.mxu0 0
      %3294 = vmatprep.subr.bf16.mxu0 0
      %3295 = vmatpush1.bf16.xpose.msra.mxu0 0
      %3296 = vmatprep.subr.bf16.mxu0 0
      %3297 = vmatpush1.bf16.xpose.msra.mxu0 0
      %3298 = vmatprep.subr.bf16.mxu0 0
      %3299 = vmatpush1.bf16.xpose.msra.mxu0 0
      %3300 = vmatprep.subr.bf16.mxu0 0
      %3301 = vmatpush1.bf16.xpose.msra.mxu0 0
      %3302 = vmatprep.subr.bf16.mxu0 0
      %3303 = vmatpush1.bf16.xpose.msra.mxu0 %v3286
      %3304 = vmatprep.subr.bf16.mxu0 0
      %3305 = vmatpush2.bf16.xpose.msra.mxu0 0
      %3306 = vmatprep.subr.bf16.mxu0 0
      %3307 = vmatpush2.bf16.xpose.msra.mxu0 0
      %3308 = vmatprep.subr.bf16.mxu0 0
      %3309 = vmatpush2.bf16.xpose.msra.mxu0 0
      %3310 = vmatprep.subr.bf16.mxu0 0
      %3311 = vmatpush2.bf16.xpose.msra.mxu0 0
      %3312 = vmatprep.subr.bf16.mxu0 0
      %3313 = vmatpush2.bf16.xpose.msra.mxu0 0
      %3314 = vmatprep.subr.bf16.mxu0 0
      %3315 = vmatpush2.bf16.xpose.msra.mxu0 0
      %3316 = vmatprep.subr.bf16.mxu0 0
      %3317 = vmatpush2.bf16.xpose.msra.mxu0 0
      %3318 = vmatprep.subr.bf16.mxu0 0
      %3319 = vmatpush2.bf16.xpose.msra.mxu0 0
      %3320 = vmatprep.mubr.bf16.mxu0 0
      %3321 = vmatmul.mubr.bf16.gmra.mxu0 %v3283
      %v3322 = vpop.f32.mrf.mxu0
      %v3323 = vadd.f32 0.0, %v3322
      %v3324 = vpop.f32.mrf.mxu0
      %v3325 = vpop.f32.mrf.mxu0
      %v3326 = vadd.f32 0.0, %v3325
      %v3327 = vpop.f32.mrf.mxu0
      %3328 = vdwg.mxu0
      %v3330 = vsel %vm418, %v3131, 0
      %v3333 = vsel %vm418, %v2425, 0
      %3335 = vmatprep.subr.bf16.mxu0 0
      %3336 = vmatpush1.bf16.xpose.msra.mxu0 0
      %3337 = vmatprep.subr.bf16.mxu0 0
      %3338 = vmatpush1.bf16.xpose.msra.mxu0 0
      %3339 = vmatprep.subr.bf16.mxu0 0
      %3340 = vmatpush1.bf16.xpose.msra.mxu0 0
      %3341 = vmatprep.subr.bf16.mxu0 0
      %3342 = vmatpush1.bf16.xpose.msra.mxu0 0
      %3343 = vmatprep.subr.bf16.mxu0 0
      %3344 = vmatpush1.bf16.xpose.msra.mxu0 0
      %3345 = vmatprep.subr.bf16.mxu0 0
      %3346 = vmatpush1.bf16.xpose.msra.mxu0 0
      %3347 = vmatprep.subr.bf16.mxu0 0
      %3348 = vmatpush1.bf16.xpose.msra.mxu0 0
      %3349 = vmatprep.subr.bf16.mxu0 0
      %3350 = vmatpush1.bf16.xpose.msra.mxu0 %v3333
      %3351 = vmatprep.subr.bf16.mxu0 0
      %3352 = vmatpush2.bf16.xpose.msra.mxu0 0
      %3353 = vmatprep.subr.bf16.mxu0 0
      %3354 = vmatpush2.bf16.xpose.msra.mxu0 0
      %3355 = vmatprep.subr.bf16.mxu0 0
      %3356 = vmatpush2.bf16.xpose.msra.mxu0 0
      %3357 = vmatprep.subr.bf16.mxu0 0
      %3358 = vmatpush2.bf16.xpose.msra.mxu0 0
      %3359 = vmatprep.subr.bf16.mxu0 0
      %3360 = vmatpush2.bf16.xpose.msra.mxu0 0
      %3361 = vmatprep.subr.bf16.mxu0 0
      %3362 = vmatpush2.bf16.xpose.msra.mxu0 0
      %3363 = vmatprep.subr.bf16.mxu0 0
      %3364 = vmatpush2.bf16.xpose.msra.mxu0 0
      %3365 = vmatprep.subr.bf16.mxu0 0
      %3366 = vmatpush2.bf16.xpose.msra.mxu0 0
      %3367 = vmatprep.mubr.bf16.mxu0 0
      %3368 = vmatmul.mubr.bf16.gmra.mxu0 %v3330
      %v3369 = vpop.f32.mrf.mxu0
      %v3370 = vadd.f32 0.0, %v3369
      %v3371 = vpop.f32.mrf.mxu0
      %v3372 = vpop.f32.mrf.mxu0
      %v3373 = vadd.f32 0.0, %v3372
      %v3374 = vpop.f32.mrf.mxu0
      %3375 = vdwg.mxu0
      %v3377 = vsel %vm418, %v3134, 0
      %v3380 = vsel %vm418, %v2426, 0
      %3382 = vmatprep.subr.bf16.mxu0 0
      %3383 = vmatpush1.bf16.xpose.msra.mxu0 0
      %3384 = vmatprep.subr.bf16.mxu0 0
      %3385 = vmatpush1.bf16.xpose.msra.mxu0 0
      %3386 = vmatprep.subr.bf16.mxu0 0
      %3387 = vmatpush1.bf16.xpose.msra.mxu0 0
      %3388 = vmatprep.subr.bf16.mxu0 0
      %3389 = vmatpush1.bf16.xpose.msra.mxu0 0
      %3390 = vmatprep.subr.bf16.mxu0 0
      %3391 = vmatpush1.bf16.xpose.msra.mxu0 0
      %3392 = vmatprep.subr.bf16.mxu0 0
      %3393 = vmatpush1.bf16.xpose.msra.mxu0 0
      %3394 = vmatprep.subr.bf16.mxu0 0
      %3395 = vmatpush1.bf16.xpose.msra.mxu0 0
      %3396 = vmatprep.subr.bf16.mxu0 0
      %3397 = vmatpush1.bf16.xpose.msra.mxu0 %v3380
      %3398 = vmatprep.subr.bf16.mxu0 0
      %3399 = vmatpush2.bf16.xpose.msra.mxu0 0
      %3400 = vmatprep.subr.bf16.mxu0 0
      %3401 = vmatpush2.bf16.xpose.msra.mxu0 0
      %3402 = vmatprep.subr.bf16.mxu0 0
      %3403 = vmatpush2.bf16.xpose.msra.mxu0 0
      %3404 = vmatprep.subr.bf16.mxu0 0
      %3405 = vmatpush2.bf16.xpose.msra.mxu0 0
      %3406 = vmatprep.subr.bf16.mxu0 0
      %3407 = vmatpush2.bf16.xpose.msra.mxu0 0
      %3408 = vmatprep.subr.bf16.mxu0 0
      %3409 = vmatpush2.bf16.xpose.msra.mxu0 0
      %3410 = vmatprep.subr.bf16.mxu0 0
      %3411 = vmatpush2.bf16.xpose.msra.mxu0 0
      %3412 = vmatprep.subr.bf16.mxu0 0
      %3413 = vmatpush2.bf16.xpose.msra.mxu0 0
      %3414 = vmatprep.mubr.bf16.mxu0 0
      %3415 = vmatmul.mubr.bf16.gmra.mxu0 %v3377
      %v3416 = vpop.f32.mrf.mxu0
      %v3417 = vadd.f32 0.0, %v3416
      %v3418 = vpop.f32.mrf.mxu0
      %v3419 = vpop.f32.mrf.mxu0
      %v3420 = vadd.f32 0.0, %v3419
      %v3421 = vpop.f32.mrf.mxu0
      %3422 = vdwg.mxu0
      %v3424 = vsel %vm418, %v3137, 0
      %v3427 = vsel %vm418, %v2427, 0
      %3429 = vmatprep.subr.bf16.mxu0 0
      %3430 = vmatpush1.bf16.xpose.msra.mxu0 0
      %3431 = vmatprep.subr.bf16.mxu0 0
      %3432 = vmatpush1.bf16.xpose.msra.mxu0 0
      %3433 = vmatprep.subr.bf16.mxu0 0
      %3434 = vmatpush1.bf16.xpose.msra.mxu0 0
      %3435 = vmatprep.subr.bf16.mxu0 0
      %3436 = vmatpush1.bf16.xpose.msra.mxu0 0
      %3437 = vmatprep.subr.bf16.mxu0 0
      %3438 = vmatpush1.bf16.xpose.msra.mxu0 0
      %3439 = vmatprep.subr.bf16.mxu0 0
      %3440 = vmatpush1.bf16.xpose.msra.mxu0 0
      %3441 = vmatprep.subr.bf16.mxu0 0
      %3442 = vmatpush1.bf16.xpose.msra.mxu0 0
      %3443 = vmatprep.subr.bf16.mxu0 0
      %3444 = vmatpush1.bf16.xpose.msra.mxu0 %v3427
      %3445 = vmatprep.subr.bf16.mxu0 0
      %3446 = vmatpush2.bf16.xpose.msra.mxu0 0
      %3447 = vmatprep.subr.bf16.mxu0 0
      %3448 = vmatpush2.bf16.xpose.msra.mxu0 0
      %3449 = vmatprep.subr.bf16.mxu0 0
      %3450 = vmatpush2.bf16.xpose.msra.mxu0 0
      %3451 = vmatprep.subr.bf16.mxu0 0
      %3452 = vmatpush2.bf16.xpose.msra.mxu0 0
      %3453 = vmatprep.subr.bf16.mxu0 0
      %3454 = vmatpush2.bf16.xpose.msra.mxu0 0
      %3455 = vmatprep.subr.bf16.mxu0 0
      %3456 = vmatpush2.bf16.xpose.msra.mxu0 0
      %3457 = vmatprep.subr.bf16.mxu0 0
      %3458 = vmatpush2.bf16.xpose.msra.mxu0 0
      %3459 = vmatprep.subr.bf16.mxu0 0
      %3460 = vmatpush2.bf16.xpose.msra.mxu0 0
      %3461 = vmatprep.mubr.bf16.mxu0 0
      %3462 = vmatmul.mubr.bf16.gmra.mxu0 %v3424
      %v3463 = vpop.f32.mrf.mxu0
      %v3464 = vadd.f32 0.0, %v3463
      %v3465 = vpop.f32.mrf.mxu0
      %v3466 = vpop.f32.mrf.mxu0
      %v3467 = vadd.f32 0.0, %v3466
      %v3468 = vpop.f32.mrf.mxu0
      %3469 = vdwg.mxu0
      %v3471 = vsel %vm418, %v3140, 0
      %v3474 = vsel %vm418, %v2428, 0
      %3476 = vmatprep.subr.bf16.mxu0 0
      %3477 = vmatpush1.bf16.xpose.msra.mxu0 0
      %3478 = vmatprep.subr.bf16.mxu0 0
      %3479 = vmatpush1.bf16.xpose.msra.mxu0 0
      %3480 = vmatprep.subr.bf16.mxu0 0
      %3481 = vmatpush1.bf16.xpose.msra.mxu0 0
      %3482 = vmatprep.subr.bf16.mxu0 0
      %3483 = vmatpush1.bf16.xpose.msra.mxu0 0
      %3484 = vmatprep.subr.bf16.mxu0 0
      %3485 = vmatpush1.bf16.xpose.msra.mxu0 0
      %3486 = vmatprep.subr.bf16.mxu0 0
      %3487 = vmatpush1.bf16.xpose.msra.mxu0 0
      %3488 = vmatprep.subr.bf16.mxu0 0
      %3489 = vmatpush1.bf16.xpose.msra.mxu0 0
      %3490 = vmatprep.subr.bf16.mxu0 0
      %3491 = vmatpush1.bf16.xpose.msra.mxu0 %v3474
      %3492 = vmatprep.subr.bf16.mxu0 0
      %3493 = vmatpush2.bf16.xpose.msra.mxu0 0
      %3494 = vmatprep.subr.bf16.mxu0 0
      %3495 = vmatpush2.bf16.xpose.msra.mxu0 0
      %3496 = vmatprep.subr.bf16.mxu0 0
      %3497 = vmatpush2.bf16.xpose.msra.mxu0 0
      %3498 = vmatprep.subr.bf16.mxu0 0
      %3499 = vmatpush2.bf16.xpose.msra.mxu0 0
      %3500 = vmatprep.subr.bf16.mxu0 0
      %3501 = vmatpush2.bf16.xpose.msra.mxu0 0
      %3502 = vmatprep.subr.bf16.mxu0 0
      %3503 = vmatpush2.bf16.xpose.msra.mxu0 0
      %3504 = vmatprep.subr.bf16.mxu0 0
      %3505 = vmatpush2.bf16.xpose.msra.mxu0 0
      %3506 = vmatprep.subr.bf16.mxu0 0
      %3507 = vmatpush2.bf16.xpose.msra.mxu0 0
      %3508 = vmatprep.mubr.bf16.mxu0 0
      %3509 = vmatmul.mubr.bf16.gmra.mxu0 %v3471
      %v3510 = vpop.f32.mrf.mxu0
      %v3511 = vadd.f32 0.0, %v3510
      %v3512 = vpop.f32.mrf.mxu0
      %v3513 = vpop.f32.mrf.mxu0
      %v3514 = vadd.f32 0.0, %v3513
      %v3515 = vpop.f32.mrf.mxu0
      %3516 = vdwg.mxu0
      %3517 = vxpose.xlu0.b32.start [1/16] %v3182, 128
      %3518 = vxpose.xlu0.b32.cont [2/16] %v3185, 128
      %3519 = vxpose.xlu0.b32.cont [3/16] 0.0, 128
      %3520 = vxpose.xlu0.b32.cont [4/16] 0.0, 128
      %3521 = vxpose.xlu0.b32.cont [5/16] 0.0, 128
      %3522 = vxpose.xlu0.b32.cont [6/16] 0.0, 128
      %3523 = vxpose.xlu0.b32.cont [7/16] 0.0, 128
      %3524 = vxpose.xlu0.b32.cont [8/16] 0.0, 128
      %3525 = vxpose.xlu0.b32.cont [9/16] 0.0, 128
      %3526 = vxpose.xlu0.b32.cont [10/16] 0.0, 128
      %3527 = vxpose.xlu0.b32.cont [11/16] 0.0, 128
      %3528 = vxpose.xlu0.b32.cont [12/16] 0.0, 128
      %3529 = vxpose.xlu0.b32.cont [13/16] 0.0, 128
      %3530 = vxpose.xlu0.b32.cont [14/16] 0.0, 128
      %3531 = vxpose.xlu0.b32.cont [15/16] 0.0, 128
      %3532 = vxpose.xlu0.b32.end [16/16] 0.0, 128
      %v3533 = vpop.trf.xlu0
      %v3534 = vpop.trf.xlu0
      %v3535 = vpop.trf.xlu0
      %v3536 = vpop.trf.xlu0
      %v3537 = vpop.trf.xlu0
      %v3538 = vpop.trf.xlu0
      %v3539 = vpop.trf.xlu0
      %v3540 = vpop.trf.xlu0
      %v3541 = vpop.trf.xlu0
      %v3542 = vpop.trf.xlu0
      %v3543 = vpop.trf.xlu0
      %v3544 = vpop.trf.xlu0
      %v3545 = vpop.trf.xlu0
      %v3546 = vpop.trf.xlu0
      %v3547 = vpop.trf.xlu0
      %v3548 = vpop.trf.xlu0
      %3549 = vxpose.xlu0.b32.start [1/16] %v3229, 128
      %3550 = vxpose.xlu0.b32.cont [2/16] %v3232, 128
      %3551 = vxpose.xlu0.b32.cont [3/16] 0.0, 128
      %3552 = vxpose.xlu0.b32.cont [4/16] 0.0, 128
      %3553 = vxpose.xlu0.b32.cont [5/16] 0.0, 128
      %3554 = vxpose.xlu0.b32.cont [6/16] 0.0, 128
      %3555 = vxpose.xlu0.b32.cont [7/16] 0.0, 128
      %3556 = vxpose.xlu0.b32.cont [8/16] 0.0, 128
      %3557 = vxpose.xlu0.b32.cont [9/16] 0.0, 128
      %3558 = vxpose.xlu0.b32.cont [10/16] 0.0, 128
      %3559 = vxpose.xlu0.b32.cont [11/16] 0.0, 128
      %3560 = vxpose.xlu0.b32.cont [12/16] 0.0, 128
      %3561 = vxpose.xlu0.b32.cont [13/16] 0.0, 128
      %3562 = vxpose.xlu0.b32.cont [14/16] 0.0, 128
      %3563 = vxpose.xlu0.b32.cont [15/16] 0.0, 128
      %3564 = vxpose.xlu0.b32.end [16/16] 0.0, 128
      %v3565 = vpop.trf.xlu0
      %v3566 = vpop.trf.xlu0
      %v3567 = vpop.trf.xlu0
      %v3568 = vpop.trf.xlu0
      %v3569 = vpop.trf.xlu0
      %v3570 = vpop.trf.xlu0
      %v3571 = vpop.trf.xlu0
      %v3572 = vpop.trf.xlu0
      %v3573 = vpop.trf.xlu0
      %v3574 = vpop.trf.xlu0
      %v3575 = vpop.trf.xlu0
      %v3576 = vpop.trf.xlu0
      %v3577 = vpop.trf.xlu0
      %v3578 = vpop.trf.xlu0
      %v3579 = vpop.trf.xlu0
      %v3580 = vpop.trf.xlu0
      %3581 = vxpose.xlu0.b32.start [1/16] %v3276, 128
      %3582 = vxpose.xlu0.b32.cont [2/16] %v3279, 128
      %3583 = vxpose.xlu0.b32.cont [3/16] 0.0, 128
      %3584 = vxpose.xlu0.b32.cont [4/16] 0.0, 128
      %3585 = vxpose.xlu0.b32.cont [5/16] 0.0, 128
      %3586 = vxpose.xlu0.b32.cont [6/16] 0.0, 128
      %3587 = vxpose.xlu0.b32.cont [7/16] 0.0, 128
      %3588 = vxpose.xlu0.b32.cont [8/16] 0.0, 128
      %3589 = vxpose.xlu0.b32.cont [9/16] 0.0, 128
      %3590 = vxpose.xlu0.b32.cont [10/16] 0.0, 128
      %3591 = vxpose.xlu0.b32.cont [11/16] 0.0, 128
      %3592 = vxpose.xlu0.b32.cont [12/16] 0.0, 128
      %3593 = vxpose.xlu0.b32.cont [13/16] 0.0, 128
      %3594 = vxpose.xlu0.b32.cont [14/16] 0.0, 128
      %3595 = vxpose.xlu0.b32.cont [15/16] 0.0, 128
      %3596 = vxpose.xlu0.b32.end [16/16] 0.0, 128
      %v3597 = vpop.trf.xlu0
      %v3598 = vpop.trf.xlu0
      %v3599 = vpop.trf.xlu0
      %v3600 = vpop.trf.xlu0
      %v3601 = vpop.trf.xlu0
      %v3602 = vpop.trf.xlu0
      %v3603 = vpop.trf.xlu0
      %v3604 = vpop.trf.xlu0
      %v3605 = vpop.trf.xlu0
      %v3606 = vpop.trf.xlu0
      %v3607 = vpop.trf.xlu0
      %v3608 = vpop.trf.xlu0
      %v3609 = vpop.trf.xlu0
      %v3610 = vpop.trf.xlu0
      %v3611 = vpop.trf.xlu0
      %v3612 = vpop.trf.xlu0
      %3613 = vxpose.xlu0.b32.start [1/16] %v3323, 128
      %3614 = vxpose.xlu0.b32.cont [2/16] %v3326, 128
      %3615 = vxpose.xlu0.b32.cont [3/16] 0.0, 128
      %3616 = vxpose.xlu0.b32.cont [4/16] 0.0, 128
      %3617 = vxpose.xlu0.b32.cont [5/16] 0.0, 128
      %3618 = vxpose.xlu0.b32.cont [6/16] 0.0, 128
      %3619 = vxpose.xlu0.b32.cont [7/16] 0.0, 128
      %3620 = vxpose.xlu0.b32.cont [8/16] 0.0, 128
      %3621 = vxpose.xlu0.b32.cont [9/16] 0.0, 128
      %3622 = vxpose.xlu0.b32.cont [10/16] 0.0, 128
      %3623 = vxpose.xlu0.b32.cont [11/16] 0.0, 128
      %3624 = vxpose.xlu0.b32.cont [12/16] 0.0, 128
      %3625 = vxpose.xlu0.b32.cont [13/16] 0.0, 128
      %3626 = vxpose.xlu0.b32.cont [14/16] 0.0, 128
      %3627 = vxpose.xlu0.b32.cont [15/16] 0.0, 128
      %3628 = vxpose.xlu0.b32.end [16/16] 0.0, 128
      %v3629 = vpop.trf.xlu0
      %v3630 = vpop.trf.xlu0
      %v3631 = vpop.trf.xlu0
      %v3632 = vpop.trf.xlu0
      %v3633 = vpop.trf.xlu0
      %v3634 = vpop.trf.xlu0
      %v3635 = vpop.trf.xlu0
      %v3636 = vpop.trf.xlu0
      %v3637 = vpop.trf.xlu0
      %v3638 = vpop.trf.xlu0
      %v3639 = vpop.trf.xlu0
      %v3640 = vpop.trf.xlu0
      %v3641 = vpop.trf.xlu0
      %v3642 = vpop.trf.xlu0
      %v3643 = vpop.trf.xlu0
      %v3644 = vpop.trf.xlu0
      %3645 = vxpose.xlu0.b32.start [1/16] %v3370, 128
      %3646 = vxpose.xlu0.b32.cont [2/16] %v3373, 128
      %3647 = vxpose.xlu0.b32.cont [3/16] 0.0, 128
      %3648 = vxpose.xlu0.b32.cont [4/16] 0.0, 128
      %3649 = vxpose.xlu0.b32.cont [5/16] 0.0, 128
      %3650 = vxpose.xlu0.b32.cont [6/16] 0.0, 128
      %3651 = vxpose.xlu0.b32.cont [7/16] 0.0, 128
      %3652 = vxpose.xlu0.b32.cont [8/16] 0.0, 128
      %3653 = vxpose.xlu0.b32.cont [9/16] 0.0, 128
      %3654 = vxpose.xlu0.b32.cont [10/16] 0.0, 128
      %3655 = vxpose.xlu0.b32.cont [11/16] 0.0, 128
      %3656 = vxpose.xlu0.b32.cont [12/16] 0.0, 128
      %3657 = vxpose.xlu0.b32.cont [13/16] 0.0, 128
      %3658 = vxpose.xlu0.b32.cont [14/16] 0.0, 128
      %3659 = vxpose.xlu0.b32.cont [15/16] 0.0, 128
      %3660 = vxpose.xlu0.b32.end [16/16] 0.0, 128
      %v3661 = vpop.trf.xlu0
      %v3662 = vpop.trf.xlu0
      %v3663 = vpop.trf.xlu0
      %v3664 = vpop.trf.xlu0
      %v3665 = vpop.trf.xlu0
      %v3666 = vpop.trf.xlu0
      %v3667 = vpop.trf.xlu0
      %v3668 = vpop.trf.xlu0
      %v3669 = vpop.trf.xlu0
      %v3670 = vpop.trf.xlu0
      %v3671 = vpop.trf.xlu0
      %v3672 = vpop.trf.xlu0
      %v3673 = vpop.trf.xlu0
      %v3674 = vpop.trf.xlu0
      %v3675 = vpop.trf.xlu0
      %v3676 = vpop.trf.xlu0
      %3677 = vxpose.xlu0.b32.start [1/16] %v3417, 128
      %3678 = vxpose.xlu0.b32.cont [2/16] %v3420, 128
      %3679 = vxpose.xlu0.b32.cont [3/16] 0.0, 128
      %3680 = vxpose.xlu0.b32.cont [4/16] 0.0, 128
      %3681 = vxpose.xlu0.b32.cont [5/16] 0.0, 128
      %3682 = vxpose.xlu0.b32.cont [6/16] 0.0, 128
      %3683 = vxpose.xlu0.b32.cont [7/16] 0.0, 128
      %3684 = vxpose.xlu0.b32.cont [8/16] 0.0, 128
      %3685 = vxpose.xlu0.b32.cont [9/16] 0.0, 128
      %3686 = vxpose.xlu0.b32.cont [10/16] 0.0, 128
      %3687 = vxpose.xlu0.b32.cont [11/16] 0.0, 128
      %3688 = vxpose.xlu0.b32.cont [12/16] 0.0, 128
      %3689 = vxpose.xlu0.b32.cont [13/16] 0.0, 128
      %3690 = vxpose.xlu0.b32.cont [14/16] 0.0, 128
      %3691 = vxpose.xlu0.b32.cont [15/16] 0.0, 128
      %3692 = vxpose.xlu0.b32.end [16/16] 0.0, 128
      %v3693 = vpop.trf.xlu0
      %v3694 = vpop.trf.xlu0
      %v3695 = vpop.trf.xlu0
      %v3696 = vpop.trf.xlu0
      %v3697 = vpop.trf.xlu0
      %v3698 = vpop.trf.xlu0
      %v3699 = vpop.trf.xlu0
      %v3700 = vpop.trf.xlu0
      %v3701 = vpop.trf.xlu0
      %v3702 = vpop.trf.xlu0
      %v3703 = vpop.trf.xlu0
      %v3704 = vpop.trf.xlu0
      %v3705 = vpop.trf.xlu0
      %v3706 = vpop.trf.xlu0
      %v3707 = vpop.trf.xlu0
      %v3708 = vpop.trf.xlu0
      %3709 = vxpose.xlu0.b32.start [1/16] %v3464, 128
      %3710 = vxpose.xlu0.b32.cont [2/16] %v3467, 128
      %3711 = vxpose.xlu0.b32.cont [3/16] 0.0, 128
      %3712 = vxpose.xlu0.b32.cont [4/16] 0.0, 128
      %3713 = vxpose.xlu0.b32.cont [5/16] 0.0, 128
      %3714 = vxpose.xlu0.b32.cont [6/16] 0.0, 128
      %3715 = vxpose.xlu0.b32.cont [7/16] 0.0, 128
      %3716 = vxpose.xlu0.b32.cont [8/16] 0.0, 128
      %3717 = vxpose.xlu0.b32.cont [9/16] 0.0, 128
      %3718 = vxpose.xlu0.b32.cont [10/16] 0.0, 128
      %3719 = vxpose.xlu0.b32.cont [11/16] 0.0, 128
      %3720 = vxpose.xlu0.b32.cont [12/16] 0.0, 128
      %3721 = vxpose.xlu0.b32.cont [13/16] 0.0, 128
      %3722 = vxpose.xlu0.b32.cont [14/16] 0.0, 128
      %3723 = vxpose.xlu0.b32.cont [15/16] 0.0, 128
      %3724 = vxpose.xlu0.b32.end [16/16] 0.0, 128
      %v3725 = vpop.trf.xlu0
      %v3726 = vpop.trf.xlu0
      %v3727 = vpop.trf.xlu0
      %v3728 = vpop.trf.xlu0
      %v3729 = vpop.trf.xlu0
      %v3730 = vpop.trf.xlu0
      %v3731 = vpop.trf.xlu0
      %v3732 = vpop.trf.xlu0
      %v3733 = vpop.trf.xlu0
      %v3734 = vpop.trf.xlu0
      %v3735 = vpop.trf.xlu0
      %v3736 = vpop.trf.xlu0
      %v3737 = vpop.trf.xlu0
      %v3738 = vpop.trf.xlu0
      %v3739 = vpop.trf.xlu0
      %v3740 = vpop.trf.xlu0
      %3741 = vxpose.xlu0.b32.start [1/16] %v3511, 128
      %3742 = vxpose.xlu0.b32.cont [2/16] %v3514, 128
      %3743 = vxpose.xlu0.b32.cont [3/16] 0.0, 128
      %3744 = vxpose.xlu0.b32.cont [4/16] 0.0, 128
      %3745 = vxpose.xlu0.b32.cont [5/16] 0.0, 128
      %3746 = vxpose.xlu0.b32.cont [6/16] 0.0, 128
      %3747 = vxpose.xlu0.b32.cont [7/16] 0.0, 128
      %3748 = vxpose.xlu0.b32.cont [8/16] 0.0, 128
      %3749 = vxpose.xlu0.b32.cont [9/16] 0.0, 128
      %3750 = vxpose.xlu0.b32.cont [10/16] 0.0, 128
      %3751 = vxpose.xlu0.b32.cont [11/16] 0.0, 128
      %3752 = vxpose.xlu0.b32.cont [12/16] 0.0, 128
      %3753 = vxpose.xlu0.b32.cont [13/16] 0.0, 128
      %3754 = vxpose.xlu0.b32.cont [14/16] 0.0, 128
      %3755 = vxpose.xlu0.b32.cont [15/16] 0.0, 128
      %3756 = vxpose.xlu0.b32.end [16/16] 0.0, 128
      %v3757 = vpop.trf.xlu0
      %v3758 = vpop.trf.xlu0
      %v3759 = vpop.trf.xlu0
      %v3760 = vpop.trf.xlu0
      %v3761 = vpop.trf.xlu0
      %v3762 = vpop.trf.xlu0
      %v3763 = vpop.trf.xlu0
      %v3764 = vpop.trf.xlu0
      %v3765 = vpop.trf.xlu0
      %v3766 = vpop.trf.xlu0
      %v3767 = vpop.trf.xlu0
      %v3768 = vpop.trf.xlu0
      %v3769 = vpop.trf.xlu0
      %v3770 = vpop.trf.xlu0
      %v3771 = vpop.trf.xlu0
      %v3772 = vpop.trf.xlu0
      %v3773 = vcombine.low %v3533, %v3597
      %v3774 = vcombine.high %v3533, %v3597
      %v3776 = vunpack.c.l.s4 1983009808
      %v3777 = vunpack.c.0.s8 %v3776
      %v3778 = vlaneseq
      %v3779 = vshrl.u32 %v3778, 7
      %v3780 = vsub.s32 %v3777, %v3779
      %v3781 = vrot.slane %v3773, %v3780
      %v3783 = vunpack.c.l.s4 1983009808
      %v3784 = vunpack.c.0.s8 %v3783
      %v3785 = vlaneseq
      %v3786 = vshrl.u32 %v3785, 7
      %v3787 = vsub.s32 %v3784, %v3786
      %v3788 = vrot.slane %v3774, %v3787
      %v3789 = vcombine.low %v3565, %v3629
      %v3790 = vcombine.high %v3565, %v3629
      %v3792 = vunpack.c.l.s4 1983009808
      %v3793 = vunpack.c.0.s8 %v3792
      %v3794 = vlaneseq
      %v3795 = vshrl.u32 %v3794, 7
      %v3796 = vsub.s32 %v3793, %v3795
      %v3797 = vrot.slane %v3789, %v3796
      %v3799 = vunpack.c.l.s4 1983009808
      %v3800 = vunpack.c.0.s8 %v3799
      %v3801 = vlaneseq
      %v3802 = vshrl.u32 %v3801, 7
      %v3803 = vsub.s32 %v3800, %v3802
      %v3804 = vrot.slane %v3790, %v3803
      %v3805 = vcombine.low %v3661, %v3725
      %v3806 = vcombine.high %v3661, %v3725
      %v3808 = vunpack.c.l.s4 1983009808
      %v3809 = vunpack.c.0.s8 %v3808
      %v3810 = vlaneseq
      %v3811 = vshrl.u32 %v3810, 7
      %v3812 = vsub.s32 %v3809, %v3811
      %v3813 = vrot.slane %v3805, %v3812
      %v3815 = vunpack.c.l.s4 1983009808
      %v3816 = vunpack.c.0.s8 %v3815
      %v3817 = vlaneseq
      %v3818 = vshrl.u32 %v3817, 7
      %v3819 = vsub.s32 %v3816, %v3818
      %v3820 = vrot.slane %v3806, %v3819
      %v3821 = vcombine.low %v3693, %v3757
      %v3822 = vcombine.high %v3693, %v3757
      %v3824 = vunpack.c.l.s4 1983009808
      %v3825 = vunpack.c.0.s8 %v3824
      %v3826 = vlaneseq
      %v3827 = vshrl.u32 %v3826, 7
      %v3828 = vsub.s32 %v3825, %v3827
      %v3829 = vrot.slane %v3821, %v3828
      %v3831 = vunpack.c.l.s4 1983009808
      %v3832 = vunpack.c.0.s8 %v3831
      %v3833 = vlaneseq
      %v3834 = vshrl.u32 %v3833, 7
      %v3835 = vsub.s32 %v3832, %v3834
      %v3836 = vrot.slane %v3822, %v3835
      %v3837 = vcombine.low %v3781, %v3797
      %v3838 = vcombine.high %v3781, %v3797
      %v3840 = vunpack.c.l.s4 1934713408
      %v3841 = vunpack.c.0.s8 %v3840
      %v3842 = vlaneseq
      %v3843 = vshrl.u32 %v3842, 7
      %v3844 = vsub.s32 %v3841, %v3843
      %v3845 = vrot.slane %v3837, %v3844
      %v3847 = vunpack.c.l.s4 1934713408
      %v3848 = vunpack.c.0.s8 %v3847
      %v3849 = vlaneseq
      %v3850 = vshrl.u32 %v3849, 7
      %v3851 = vsub.s32 %v3848, %v3850
      %v3852 = vrot.slane %v3838, %v3851
      %v3853 = vcombine.low %v3788, %v3804
      %v3854 = vcombine.high %v3788, %v3804
      %v3856 = vunpack.c.l.s4 1934713408
      %v3857 = vunpack.c.0.s8 %v3856
      %v3858 = vlaneseq
      %v3859 = vshrl.u32 %v3858, 7
      %v3860 = vsub.s32 %v3857, %v3859
      %v3861 = vrot.slane %v3853, %v3860
      %v3863 = vunpack.c.l.s4 1934713408
      %v3864 = vunpack.c.0.s8 %v3863
      %v3865 = vlaneseq
      %v3866 = vshrl.u32 %v3865, 7
      %v3867 = vsub.s32 %v3864, %v3866
      %v3868 = vrot.slane %v3854, %v3867
      %v3869 = vcombine.low %v3813, %v3829
      %v3870 = vcombine.high %v3813, %v3829
      %v3872 = vunpack.c.l.s4 1934713408
      %v3873 = vunpack.c.0.s8 %v3872
      %v3874 = vlaneseq
      %v3875 = vshrl.u32 %v3874, 7
      %v3876 = vsub.s32 %v3873, %v3875
      %v3877 = vrot.slane %v3869, %v3876
      %v3879 = vunpack.c.l.s4 1934713408
      %v3880 = vunpack.c.0.s8 %v3879
      %v3881 = vlaneseq
      %v3882 = vshrl.u32 %v3881, 7
      %v3883 = vsub.s32 %v3880, %v3882
      %v3884 = vrot.slane %v3870, %v3883
      %v3885 = vcombine.low %v3820, %v3836
      %v3886 = vcombine.high %v3820, %v3836
      %v3888 = vunpack.c.l.s4 1934713408
      %v3889 = vunpack.c.0.s8 %v3888
      %v3890 = vlaneseq
      %v3891 = vshrl.u32 %v3890, 7
      %v3892 = vsub.s32 %v3889, %v3891
      %v3893 = vrot.slane %v3885, %v3892
      %v3895 = vunpack.c.l.s4 1934713408
      %v3896 = vunpack.c.0.s8 %v3895
      %v3897 = vlaneseq
      %v3898 = vshrl.u32 %v3897, 7
      %v3899 = vsub.s32 %v3896, %v3898
      %v3900 = vrot.slane %v3886, %v3899
      %v3901 = vcombine.low %v3845, %v3877
      %v3902 = vcombine.high %v3845, %v3877
      %v3903 = vcombine.low %v3852, %v3884
      %v3904 = vcombine.high %v3852, %v3884
      %v3905 = vcombine.low %v3861, %v3893
      %v3906 = vcombine.high %v3861, %v3893
      %v3907 = vcombine.low %v3868, %v3900
      %v3908 = vcombine.high %v3868, %v3900
      %v3909 = vcombine.low %v3901, %v3903
      %v3910 = vcombine.high %v3901, %v3903
      %v3912 = vunpack.c.l.s4 1983009808
      %v3913 = vunpack.c.0.s8 %v3912
      %v3914 = vlaneseq
      %v3915 = vshrl.u32 %v3914, 7
      %v3916 = vsub.s32 %v3913, %v3915
      %v3917 = vrot.slane %v3909, %v3916
      %v3919 = vunpack.c.l.s4 1983009808
      %v3920 = vunpack.c.0.s8 %v3919
      %v3921 = vlaneseq
      %v3922 = vshrl.u32 %v3921, 7
      %v3923 = vsub.s32 %v3920, %v3922
      %v3924 = vrot.slane %v3910, %v3923
      %v3925 = vcombine.low %v3902, %v3904
      %v3926 = vcombine.high %v3902, %v3904
      %v3928 = vunpack.c.l.s4 1983009808
      %v3929 = vunpack.c.0.s8 %v3928
      %v3930 = vlaneseq
      %v3931 = vshrl.u32 %v3930, 7
      %v3932 = vsub.s32 %v3929, %v3931
      %v3933 = vrot.slane %v3925, %v3932
      %v3935 = vunpack.c.l.s4 1983009808
      %v3936 = vunpack.c.0.s8 %v3935
      %v3937 = vlaneseq
      %v3938 = vshrl.u32 %v3937, 7
      %v3939 = vsub.s32 %v3936, %v3938
      %v3940 = vrot.slane %v3926, %v3939
      %v3941 = vcombine.low %v3905, %v3907
      %v3942 = vcombine.high %v3905, %v3907
      %v3944 = vunpack.c.l.s4 1983009808
      %v3945 = vunpack.c.0.s8 %v3944
      %v3946 = vlaneseq
      %v3947 = vshrl.u32 %v3946, 7
      %v3948 = vsub.s32 %v3945, %v3947
      %v3949 = vrot.slane %v3941, %v3948
      %v3951 = vunpack.c.l.s4 1983009808
      %v3952 = vunpack.c.0.s8 %v3951
      %v3953 = vlaneseq
      %v3954 = vshrl.u32 %v3953, 7
      %v3955 = vsub.s32 %v3952, %v3954
      %v3956 = vrot.slane %v3942, %v3955
      %v3957 = vcombine.low %v3906, %v3908
      %v3958 = vcombine.high %v3906, %v3908
      %v3960 = vunpack.c.l.s4 1983009808
      %v3961 = vunpack.c.0.s8 %v3960
      %v3962 = vlaneseq
      %v3963 = vshrl.u32 %v3962, 7
      %v3964 = vsub.s32 %v3961, %v3963
      %v3965 = vrot.slane %v3957, %v3964
      %v3967 = vunpack.c.l.s4 1983009808
      %v3968 = vunpack.c.0.s8 %v3967
      %v3969 = vlaneseq
      %v3970 = vshrl.u32 %v3969, 7
      %v3971 = vsub.s32 %v3968, %v3970
      %v3972 = vrot.slane %v3958, %v3971
      %v3973 = vcombine.low %v3917, %v3933
      %v3974 = vcombine.high %v3917, %v3933
      %v3976 = vunpack.c.l.s4 1934713408
      %v3977 = vunpack.c.0.s8 %v3976
      %v3978 = vlaneseq
      %v3979 = vshrl.u32 %v3978, 7
      %v3980 = vsub.s32 %v3977, %v3979
      %v3981 = vrot.slane %v3973, %v3980
      %v3983 = vunpack.c.l.s4 1934713408
      %v3984 = vunpack.c.0.s8 %v3983
      %v3985 = vlaneseq
      %v3986 = vshrl.u32 %v3985, 7
      %v3987 = vsub.s32 %v3984, %v3986
      %v3988 = vrot.slane %v3974, %v3987
      %v3989 = vcombine.low %v3924, %v3940
      %v3990 = vcombine.high %v3924, %v3940
      %v3992 = vunpack.c.l.s4 1934713408
      %v3993 = vunpack.c.0.s8 %v3992
      %v3994 = vlaneseq
      %v3995 = vshrl.u32 %v3994, 7
      %v3996 = vsub.s32 %v3993, %v3995
      %v3997 = vrot.slane %v3989, %v3996
      %v3999 = vunpack.c.l.s4 1934713408
      %v4000 = vunpack.c.0.s8 %v3999
      %v4001 = vlaneseq
      %v4002 = vshrl.u32 %v4001, 7
      %v4003 = vsub.s32 %v4000, %v4002
      %v4004 = vrot.slane %v3990, %v4003
      %v4005 = vcombine.low %v3949, %v3965
      %v4006 = vcombine.high %v3949, %v3965
      %v4008 = vunpack.c.l.s4 1934713408
      %v4009 = vunpack.c.0.s8 %v4008
      %v4010 = vlaneseq
      %v4011 = vshrl.u32 %v4010, 7
      %v4012 = vsub.s32 %v4009, %v4011
      %v4013 = vrot.slane %v4005, %v4012
      %v4015 = vunpack.c.l.s4 1934713408
      %v4016 = vunpack.c.0.s8 %v4015
      %v4017 = vlaneseq
      %v4018 = vshrl.u32 %v4017, 7
      %v4019 = vsub.s32 %v4016, %v4018
      %v4020 = vrot.slane %v4006, %v4019
      %v4021 = vcombine.low %v3956, %v3972
      %v4022 = vcombine.high %v3956, %v3972
      %v4024 = vunpack.c.l.s4 1934713408
      %v4025 = vunpack.c.0.s8 %v4024
      %v4026 = vlaneseq
      %v4027 = vshrl.u32 %v4026, 7
      %v4028 = vsub.s32 %v4025, %v4027
      %v4029 = vrot.slane %v4021, %v4028
      %v4031 = vunpack.c.l.s4 1934713408
      %v4032 = vunpack.c.0.s8 %v4031
      %v4033 = vlaneseq
      %v4034 = vshrl.u32 %v4033, 7
      %v4035 = vsub.s32 %v4032, %v4034
      %v4036 = vrot.slane %v4022, %v4035
      %v4037 = vcombine.low %v3981, %v4013
      %v4038 = vcombine.high %v3981, %v4013
      %v4039 = vcombine.low %v3988, %v4020
      %v4040 = vcombine.high %v3988, %v4020
      %v4041 = vcombine.low %v3997, %v4029
      %v4042 = vcombine.high %v3997, %v4029
      %v4043 = vcombine.low %v4004, %v4036
      %v4044 = vcombine.high %v4004, %v4036
      %4046 = vrot.lane.b32.xlu0 %v4038, 16
      %v4047 = vpop.permute.xlu0 %4046
      %4050 = vrot.lane.b32.xlu0 %v4039, 32
      %v4051 = vpop.permute.xlu0 %4050
      %4054 = vrot.lane.b32.xlu0 %v4040, 48
      %v4055 = vpop.permute.xlu0 %4054
      %4058 = vrot.lane.b32.xlu0 %v4041, 64
      %v4059 = vpop.permute.xlu0 %4058
      %4062 = vrot.lane.b32.xlu0 %v4042, 80
      %v4063 = vpop.permute.xlu0 %4062
      %4066 = vrot.lane.b32.xlu0 %v4043, 96
      %v4067 = vpop.permute.xlu0 %4066
      %4070 = vrot.lane.b32.xlu0 %v4044, 112
      %v4071 = vpop.permute.xlu0 %4070
      %v4073 = vsel %vm1988, %v4037, %v4047
      %vm4074 = vcmask 261120
      %v4075 = vsel %vm4074, %v4073, %v4051
      %vm4076 = vcmask 392192
      %v4077 = vsel %vm4076, %v4075, %v4055
      %vm4078 = vcmask 523264
      %v4079 = vsel %vm4078, %v4077, %v4059
      %vm4080 = vcmask 654336
      %v4081 = vsel %vm4080, %v4079, %v4063
      %vm4082 = vcmask 785408
      %v4083 = vsel %vm4082, %v4081, %v4067
      %vm4084 = vcmask 916480
      %v4085 = vsel %vm4084, %v4083, %v4071
      %4086 = vst [vmem:[%s263] sm:$0xff] %v4085
      %p4087 = scmp.lt.s32.totalorder %s17, 1
      %s4088 = scalar_select %p4087, %s17, 1
      %s4089 = smul.addr %s4088, 8
      %s4090 = scalar_lea.vmem %s6, %s4089
      // Predicated region
      $region45: #{cross_attention_forward.1} parent=43 // pred_check
        %p4091 = pneg %p171
      $region46: #{cross_attention_forward.1} parent=43 // pred_check_branch
        %4093 = sbr.rel (%p4091) target = $region48
      $region47: #{cross_attention_forward.1} parent=43 // pred_region
        _
      $region48: #{cross_attention_forward.1} parent=43 // pred_fallthru
        _
    $region44: #{cross_attention_forward.1} parent=5 // pred_fallthru
      _
    %p4094 = scmp.le.s32.totalorder 2, %s12
    // Predicated region
    $region49: #{cross_attention_forward.1} parent=5 // pred_check
      %p4095 = pneg %p4094
    $region50: #{cross_attention_forward.1} parent=5 // pred_check_branch
      %4097 = sbr.rel (%p4095) target = $region52
    $region51: #{cross_attention_forward.1} parent=5 // pred_region
      %s4098 = ssub.s32 %s12, 2
      // Predicated region
      $region53: #{cross_attention_forward.1} parent=51 // pred_check
        %p4099 = pneg %p177
      $region54: #{cross_attention_forward.1} parent=51 // pred_check_branch
        %4101 = sbr.rel (%p4099) target = $region56
      $region55: #{cross_attention_forward.1} parent=51 // pred_region
        %p4102 = scmp.lt.s32.totalorder %s18, 1
        %s4103 = scalar_select %p4102, %s18, 1
        %s4104 = smul.addr %s4103, 8
        %s4105 = scalar_lea.vmem %s6, %s4104
      $region56: #{cross_attention_forward.1} parent=51 // pred_fallthru
        _
    $region52: #{cross_attention_forward.1} parent=5 // pred_fallthru
      _
  $region6: #{cross_attention_forward.1} parent=0 // loop_footer
    %s16 = sadd.s32 1, %s12
  $region7: #{cross_attention_forward.1} parent=0 // loop_footer_branch
    %11 = sbr.rel target = $region3
  $region8: #{cross_attention_forward.1} parent=0 // loop_exit
    _

</llo_original>
